<compile_context>
chip_gen: v7x
topology: tpu7x:2x2x1
jax: 0.10.0
libtpu: 0.0.40
codegen_flags: <defaults>
</compile_context>

<pallas_src>
import math

import jax
import jax.numpy as jnp
from jax.experimental import pallas as pl
from jax.experimental.pallas import tpu as pltpu

# ---- small synthetic BERT config ------------------------------------------
B = 2            # batch
S = 8            # sequence length
H = 32           # hidden size
NH = 4           # attention heads
DH = H // NH     # head dim
I = 128          # FFN intermediate size
C = 2            # num_classes
V = 64           # vocab size
NUM_LAYERS = 2
EPS = 1e-12
G = B * NH       # fused (batch, head) groups
OUT_LANES = 128  # lane-padded classifier / output width

# ---- packed-buffer layout constants ----------------------------------------
# head slab rows: [word_emb | pos_emb | pool_w | type_emb0 | emb_ln_g | emb_ln_b | pool_b]
WE = 0
PE = WE + V            # 64
PW = PE + S            # 72   (8-aligned for the pooler matmul RHS)
TY = PW + H            # 104
EG = TY + 1            # 105
EB = EG + 1            # 106
PB = EB + 1            # 107
HEAD_ROWS = PB + 1     # 108

# per-layer H-row weight slab lanes: [wqkv | wo | wi]
O_WQKV = 0
O_WO = 3 * H           # 96
O_WI = 4 * H           # 128
WH_LANES = 4 * H + I   # 256

# per-layer bias / LN vector slab lanes
O_BQKV = 0
O_BO = O_BQKV + 3 * H  # 96
O_LN1G = O_BO + H      # 128
O_LN1B = O_LN1G + H    # 160
O_BI = O_LN1B + H      # 192
O_BF = O_BI + I        # 320
O_LN2G = O_BF + H      # 352
O_LN2B = O_LN2G + H    # 384
VEC_LANES = O_LN2B + H  # 416


# ---- in-kernel helpers ------------------------------------------------------
def _layernorm(x, gamma, beta):
    mu = jnp.mean(x, axis=-1, keepdims=True)
    var = jnp.mean((x - mu) ** 2, axis=-1, keepdims=True)
    return (x - mu) * jax.lax.rsqrt(var + EPS) * gamma + beta


def _gelu(x):
    # tanh-approx GELU (PyTorch nn.GELU default is erf form; differs ~1e-3)
    return 0.5 * x * (1.0 + jnp.tanh(0.7978845608028654 * (x + 0.044715 * x * x * x)))


def _split_heads(t):
    # (B*S, H) -> (B*NH, S, DH) via one reshape+transpose (no per-head slices)
    return t.reshape(B, S, NH, DH).transpose(0, 2, 1, 3).reshape(G, S, DH)


def _merge_heads(t):
    # (B*NH, S, DH) -> (B*S, H)
    return t.reshape(B, NH, S, DH).transpose(0, 2, 1, 3).reshape(B * S, H)


# ---- single fused kernel ----------------------------------------------------
def fused_bert_kernel(ids_ref, mask_ref,
                      lwh_ref, lwf_ref, lvec_ref, head_ref, cls_ref,
                      o_ref):
    # ---- embeddings: one-hot gather (MXU) + pos + type + LayerNorm ----------
    word_emb = head_ref[WE:WE + V, :]                       # (V, H)
    pos_emb = head_ref[PE:PE + S, :]                        # (S, H)
    type0 = head_ref[TY:TY + 1, :]                          # (1, H)
    eg = head_ref[EG:EG + 1, :]                             # (1, H)
    eb = head_ref[EB:EB + 1, :]                             # (1, H)

    ids = ids_ref[...]                                      # (B*S, 1) int32
    onehot = (jax.lax.broadcasted_iota(jnp.int32, (B * S, V), 1) == ids
              ).astype(jnp.float32)                         # (B*S, V)
    tok = jnp.dot(onehot, word_emb, preferred_element_type=jnp.float32)
    x = tok + jnp.tile(pos_emb, (B, 1)) + type0             # (B*S, H)
    xf = _layernorm(x, eg, eb)

    # ---- additive attention mask for all (batch, head) groups ---------------
    add = (1.0 - mask_ref[...].astype(jnp.float32)) * -1e9          # (B, S)
    mask_g = jnp.broadcast_to(add[:, None, None, :], (B, NH, 1, S)).reshape(G, 1, S)

    # ---- encoder layers (static unroll) --------------------------------------
    for l in range(NUM_LAYERS):
        wqkv = lwh_ref[l, :, O_WQKV:O_WO]                   # (H, 3H), Q pre-scaled
        wo = lwh_ref[l, :, O_WO:O_WI]                       # (H, H)
        wi = lwh_ref[l, :, O_WI:O_WI + I]                   # (H, I)
        wf = lwf_ref[l]                                     # (I, H)
        bqkv = lvec_ref[l, :, O_BQKV:O_BO]                  # (1, 3H)
        bo = lvec_ref[l, :, O_BO:O_LN1G]                    # (1, H)
        ln1_g = lvec_ref[l, :, O_LN1G:O_LN1B]
        ln1_b = lvec_ref[l, :, O_LN1B:O_BI]
        bi = lvec_ref[l, :, O_BI:O_BF]                      # (1, I)
        bf = lvec_ref[l, :, O_BF:O_LN2G]
        ln2_g = lvec_ref[l, :, O_LN2G:O_LN2B]
        ln2_b = lvec_ref[l, :, O_LN2B:O_LN2B + H]

        # fused QKV projection: one (B*S, H) x (H, 3H) MXU matmul
        qkv = jnp.dot(xf, wqkv, preferred_element_type=jnp.float32) + bqkv
        q = _split_heads(qkv[:, 0 * H:1 * H])               # 1/sqrt(DH) folded into weights
        k = _split_heads(qkv[:, 1 * H:2 * H])
        v = _split_heads(qkv[:, 2 * H:3 * H])

        # scores + softmax for all (batch, head) groups at once
        s = jnp.einsum('gqd,gkd->gqk', q, k,
                       preferred_element_type=jnp.float32) + mask_g          # (G, S, S)
        s = s - jnp.max(s, axis=-1, keepdims=True)           # kept for overflow safety
        p = jnp.exp(s)
        p = p * pl.reciprocal(jnp.sum(p, axis=-1, keepdims=True), approx=True)

        ctx = _merge_heads(jnp.einsum('gqk,gkd->gqd', p, v,
                                      preferred_element_type=jnp.float32))   # (B*S, H)

        attn = jnp.dot(ctx, wo, preferred_element_type=jnp.float32) + bo
        x1 = _layernorm(xf + attn, ln1_g, ln1_b)

        hdn = _gelu(jnp.dot(x1, wi, preferred_element_type=jnp.float32) + bi)
        ffn = jnp.dot(hdn, wf, preferred_element_type=jnp.float32) + bf
        xf = _layernorm(x1 + ffn, ln2_g, ln2_b)

    # ---- pooler + (Dropout -> identity in eval) + lane-padded classifier ----
    pool_w = head_ref[PW:PW + H, :]                          # (H, H)
    pool_b = head_ref[PB:PB + 1, :]                          # (1, H)
    cls_w = cls_ref[0:H, :]                                  # (H, 128) zero-padded
    cls_b = cls_ref[H:H + 1, :]                              # (1, 128) zero-padded

    cls_tok = xf.reshape(B, S, H)[:, 0, :]                   # (B, H) [CLS]
    pooled = jnp.tanh(jnp.dot(cls_tok, pool_w,
                              preferred_element_type=jnp.float32) + pool_b)
    o_ref[...] = jnp.dot(pooled, cls_w,
                         preferred_element_type=jnp.float32) + cls_b         # (B, 128)


# ---- pallas_call wrapper ----------------------------------------------------
def run_fused_forward(input_ids, attention_mask, packed):
    layer_wh, layer_wf, layer_vec, head_h, head_cls = packed
    ids_col = input_ids.reshape(B * S, 1).astype(jnp.int32)
    vmem = pl.BlockSpec(memory_space=pltpu.MemorySpace.VMEM)
    logits_pad = pl.pallas_call(
        fused_bert_kernel,
        out_shape=jax.ShapeDtypeStruct((B, OUT_LANES), jnp.float32),
        in_specs=[vmem] * 7,
        out_specs=vmem,
    )(ids_col, attention_mask.astype(jnp.int32),
      layer_wh, layer_wf, layer_vec, head_h, head_cls)
    return logits_pad[:, :C]


# ---- deterministic parameter init + host-side packing -----------------------
def init_params(key):
    keys = iter(jax.random.split(key, 64))

    def normal(shape, scale=0.02):
        return (scale * jax.random.normal(next(keys), shape)).astype(jnp.float32)

    def stacked(shape):
        return jnp.stack([normal(shape) for _ in range(NUM_LAYERS)], axis=0)

    return {
        "word_emb": normal((V, H)),
        "pos_emb": normal((S, H)),
        "type_emb": normal((2, H)),
        "emb_ln_g": jnp.ones((1, H), jnp.float32),
        "emb_ln_b": jnp.zeros((1, H), jnp.float32),
        # fused QKV weight: [Wq | Wk | Wv] along the output dim, stacked over layers
        "wqkv": stacked((H, 3 * H)),
        "bqkv": jnp.zeros((NUM_LAYERS, 1, 3 * H), jnp.float32),
        "wo": stacked((H, H)),
        "bo": jnp.zeros((NUM_LAYERS, 1, H), jnp.float32),
        "ln1_g": jnp.ones((NUM_LAYERS, 1, H), jnp.float32),
        "ln1_b": jnp.zeros((NUM_LAYERS, 1, H), jnp.float32),
        "wi": stacked((H, I)),
        "bi": jnp.zeros((NUM_LAYERS, 1, I), jnp.float32),
        "wf": stacked((I, H)),
        "bf": jnp.zeros((NUM_LAYERS, 1, H), jnp.float32),
        "ln2_g": jnp.ones((NUM_LAYERS, 1, H), jnp.float32),
        "ln2_b": jnp.zeros((NUM_LAYERS, 1, H), jnp.float32),
        "pool_w": normal((H, H)),
        "pool_b": jnp.zeros((1, H), jnp.float32),
        "cls_w": normal((H, C)),
        "cls_b": jnp.zeros((1, C), jnp.float32),
    }


def pack_params(p):
    """One-time host transform: fold attention scale + pack into 5 VMEM slabs."""
    scale = 1.0 / math.sqrt(DH)
    wqkv = p["wqkv"].at[:, :, 0:H].multiply(scale)     # fold 1/sqrt(DH) into Q cols
    bqkv = p["bqkv"].at[:, :, 0:H].multiply(scale)

    layer_wh = jnp.concatenate([wqkv, p["wo"], p["wi"]], axis=-1)      # (L, H, 256)
    layer_wf = p["wf"]                                                  # (L, I, H)
    layer_vec = jnp.concatenate([bqkv, p["bo"], p["ln1_g"], p["ln1_b"],
                                 p["bi"], p["bf"], p["ln2_g"], p["ln2_b"]],
                                axis=-1)                                # (L, 1, 416)
    head_h = jnp.concatenate([p["word_emb"], p["pos_emb"], p["pool_w"],
                              p["type_emb"][0:1], p["emb_ln_g"], p["emb_ln_b"],
                              p["pool_b"]], axis=0)                     # (108, H)
    head_cls = jnp.concatenate(
        [jnp.pad(p["cls_w"], ((0, 0), (0, OUT_LANES - C))),
         jnp.pad(p["cls_b"], ((0, 0), (0, OUT_LANES - C)))], axis=0)    # (H+1, 128)
    return layer_wh, layer_wf, layer_vec, head_h, head_cls


# ---- forward pass (== OffensiveWordClassifier.forward, eval mode) -----------
@jax.jit
def offensive_word_classifier_forward(packed, input_ids, attention_mask):
    # token_type_ids assumed all-zero (single-sentence classification)
    return run_fused_forward(input_ids, attention_mask, packed)          # (B, C)


if __name__ == "__main__":
    key = jax.random.PRNGKey(0)
    pkey, dkey = jax.random.split(key)
    params = init_params(pkey)
    packed = pack_params(params)

    input_ids = jax.random.randint(dkey, (B, S), 0, V, dtype=jnp.int32)
    attention_mask = jnp.array([[1, 1, 1, 1, 1, 1, 1, 1],
                                [1, 1, 1, 1, 1, 1, 0, 0]], dtype=jnp.int32)

    logits = offensive_word_classifier_forward(packed, input_ids, attention_mask)
    logits = jax.block_until_ready(logits)
    assert logits.shape == (B, C) and logits.dtype == jnp.float32
    print("KERNEL_OK")
</pallas_src>

<mosaic_0001>
module attributes {stable_mosaic.version = 11 : i64} {
  func.func @fused_bert_kernel(%arg0: memref<16x1xi32, #tpu.memory_space<vmem>>, %arg1: memref<2x8xi32, #tpu.memory_space<vmem>>, %arg2: memref<2x32x256xf32, #tpu.memory_space<vmem>>, %arg3: memref<2x128x32xf32, #tpu.memory_space<vmem>>, %arg4: memref<2x1x416xf32, #tpu.memory_space<vmem>>, %arg5: memref<108x32xf32, #tpu.memory_space<vmem>>, %arg6: memref<33x128xf32, #tpu.memory_space<vmem>>, %arg7: memref<2x128xf32, #tpu.memory_space<vmem>>) attributes {dimension_semantics = [], scalar_prefetch = 0 : i64, scratch_operands = 0 : i64, tpu.core_type = #tpu.core_type<tc>} {
    %c0 = arith.constant 0 : index
    %c0_0 = arith.constant 0 : index
    %0 = vector.load %arg5[%c0, %c0_0] : memref<108x32xf32, #tpu.memory_space<vmem>>, vector<64x32xf32>
    %c64 = arith.constant 64 : index
    %c0_1 = arith.constant 0 : index
    %1 = vector.load %arg5[%c64, %c0_1] : memref<108x32xf32, #tpu.memory_space<vmem>>, vector<8x32xf32>
    %c104 = arith.constant 104 : index
    %c0_2 = arith.constant 0 : index
    %2 = vector.load %arg5[%c104, %c0_2] : memref<108x32xf32, #tpu.memory_space<vmem>>, vector<1x32xf32>
    %c105 = arith.constant 105 : index
    %c0_3 = arith.constant 0 : index
    %3 = vector.load %arg5[%c105, %c0_3] : memref<108x32xf32, #tpu.memory_space<vmem>>, vector<1x32xf32>
    %c106 = arith.constant 106 : index
    %c0_4 = arith.constant 0 : index
    %4 = vector.load %arg5[%c106, %c0_4] : memref<108x32xf32, #tpu.memory_space<vmem>>, vector<1x32xf32>
    %c0_5 = arith.constant 0 : index
    %c0_6 = arith.constant 0 : index
    %5 = vector.load %arg0[%c0_5, %c0_6] : memref<16x1xi32, #tpu.memory_space<vmem>>, vector<16x1xi32>
    %6 = tpu.iota {dimensions = array<i32: 1>} : vector<16x64xi32>
    %7 = vector.broadcast %5 : vector<16x1xi32> to vector<16x64xi32>
    %8 = arith.cmpi eq, %6, %7 : vector<16x64xi32>
    %9 = arith.extui %8 : vector<16x64xi1> to vector<16x64xi32>
    %10 = arith.sitofp %9 : vector<16x64xi32> to vector<16x64xf32>
    %cst = arith.constant dense<0.000000e+00> : vector<16x32xf32>
    %11 = tpu.matmul %10, %0, %cst {dimension_numbers = #tpu.dot_dimension_numbers<[1], [0], [0], [1], [0, 0, 1, 1], [], []>} : vector<16x64xf32>, vector<64x32xf32>, vector<16x32xf32> -> vector<16x32xf32>
    %12 = tpu.concatenate %1, %1 in 0 : vector<8x32xf32>, vector<8x32xf32> -> vector<16x32xf32>
    %13 = arith.addf %11, %12 : vector<16x32xf32>
    %14 = vector.broadcast %2 : vector<1x32xf32> to vector<16x32xf32>
    %15 = arith.addf %13, %14 : vector<16x32xf32>
    %cst_7 = arith.constant dense<0.000000e+00> : vector<16xf32>
    %16 = vector.multi_reduction <add>, %15, %cst_7 [1] : vector<16x32xf32> to vector<16xf32>
    %17 = vector.shape_cast %16 : vector<16xf32> to vector<16x1xf32>
    %cst_8 = arith.constant 3.200000e+01 : f32
    %18 = vector.broadcast %cst_8 : f32 to vector<16x1xf32>
    %19 = arith.divf %17, %18 : vector<16x1xf32>
    %20 = vector.broadcast %19 : vector<16x1xf32> to vector<16x32xf32>
    %21 = arith.subf %15, %20 : vector<16x32xf32>
    %22 = arith.mulf %21, %21 : vector<16x32xf32>
    %cst_9 = arith.constant dense<0.000000e+00> : vector<16xf32>
    %23 = vector.multi_reduction <add>, %22, %cst_9 [1] : vector<16x32xf32> to vector<16xf32>
    %24 = vector.shape_cast %23 : vector<16xf32> to vector<16x1xf32>
    %cst_10 = arith.constant 3.200000e+01 : f32
    %25 = vector.broadcast %cst_10 : f32 to vector<16x1xf32>
    %26 = arith.divf %24, %25 : vector<16x1xf32>
    %27 = vector.broadcast %19 : vector<16x1xf32> to vector<16x32xf32>
    %28 = arith.subf %15, %27 : vector<16x32xf32>
    %cst_11 = arith.constant 9.99999996E-13 : f32
    %29 = vector.broadcast %cst_11 : f32 to vector<16x1xf32>
    %30 = arith.addf %26, %29 : vector<16x1xf32>
    %31 = math.rsqrt %30 : vector<16x1xf32>
    %32 = vector.broadcast %31 : vector<16x1xf32> to vector<16x32xf32>
    %33 = arith.mulf %28, %32 : vector<16x32xf32>
    %34 = vector.broadcast %3 : vector<1x32xf32> to vector<16x32xf32>
    %35 = arith.mulf %33, %34 : vector<16x32xf32>
    %36 = vector.broadcast %4 : vector<1x32xf32> to vector<16x32xf32>
    %37 = arith.addf %35, %36 : vector<16x32xf32>
    %c0_12 = arith.constant 0 : index
    %c0_13 = arith.constant 0 : index
    %38 = vector.load %arg1[%c0_12, %c0_13] : memref<2x8xi32, #tpu.memory_space<vmem>>, vector<2x8xi32>
    %39 = arith.sitofp %38 : vector<2x8xi32> to vector<2x8xf32>
    %cst_14 = arith.constant 1.000000e+00 : f32
    %40 = vector.broadcast %cst_14 : f32 to vector<2x8xf32>
    %41 = arith.subf %40, %39 : vector<2x8xf32>
    %cst_15 = arith.constant -1.000000e+09 : f32
    %42 = vector.broadcast %cst_15 : f32 to vector<2x8xf32>
    %43 = arith.mulf %41, %42 : vector<2x8xf32>
    %44 = vector.shape_cast %43 : vector<2x8xf32> to vector<2x1x1x8xf32>
    %45 = vector.shape_cast %44 : vector<2x1x1x8xf32> to vector<2x1x1x8xf32>
    %46 = vector.broadcast %45 : vector<2x1x1x8xf32> to vector<2x4x1x8xf32>
    %47 = vector.shape_cast %46 : vector<2x4x1x8xf32> to vector<8x1x8xf32>
    %c0_16 = arith.constant 0 : index
    %c0_17 = arith.constant 0 : index
    %c0_18 = arith.constant 0 : index
    %48 = vector.load %arg2[%c0_16, %c0_17, %c0_18] : memref<2x32x256xf32, #tpu.memory_space<vmem>>, vector<1x32x96xf32>
    %49 = vector.shape_cast %48 : vector<1x32x96xf32> to vector<32x96xf32>
    %c0_19 = arith.constant 0 : index
    %c0_20 = arith.constant 0 : index
    %c96 = arith.constant 96 : index
    %50 = vector.load %arg2[%c0_19, %c0_20, %c96] : memref<2x32x256xf32, #tpu.memory_space<vmem>>, vector<1x32x32xf32>
    %51 = vector.shape_cast %50 : vector<1x32x32xf32> to vector<32x32xf32>
    %c0_21 = arith.constant 0 : index
    %c0_22 = arith.constant 0 : index
    %c128 = arith.constant 128 : index
    %52 = vector.load %arg2[%c0_21, %c0_22, %c128] : memref<2x32x256xf32, #tpu.memory_space<vmem>>, vector<1x32x128xf32>
    %53 = vector.shape_cast %52 : vector<1x32x128xf32> to vector<32x128xf32>
    %c0_23 = arith.constant 0 : index
    %c0_24 = arith.constant 0 : index
    %c0_25 = arith.constant 0 : index
    %54 = vector.load %arg3[%c0_23, %c0_24, %c0_25] : memref<2x128x32xf32, #tpu.memory_space<vmem>>, vector<1x128x32xf32>
    %55 = vector.shape_cast %54 : vector<1x128x32xf32> to vector<128x32xf32>
    %c0_26 = arith.constant 0 : index
    %c0_27 = arith.constant 0 : index
    %c0_28 = arith.constant 0 : index
    %56 = vector.load %arg4[%c0_26, %c0_27, %c0_28] : memref<2x1x416xf32, #tpu.memory_space<vmem>>, vector<1x1x96xf32>
    %57 = vector.shape_cast %56 : vector<1x1x96xf32> to vector<1x96xf32>
    %c0_29 = arith.constant 0 : index
    %c0_30 = arith.constant 0 : index
    %c96_31 = arith.constant 96 : index
    %58 = vector.load %arg4[%c0_29, %c0_30, %c96_31] : memref<2x1x416xf32, #tpu.memory_space<vmem>>, vector<1x1x32xf32>
    %59 = vector.shape_cast %58 : vector<1x1x32xf32> to vector<1x32xf32>
    %c0_32 = arith.constant 0 : index
    %c0_33 = arith.constant 0 : index
    %c128_34 = arith.constant 128 : index
    %60 = vector.load %arg4[%c0_32, %c0_33, %c128_34] : memref<2x1x416xf32, #tpu.memory_space<vmem>>, vector<1x1x32xf32>
    %61 = vector.shape_cast %60 : vector<1x1x32xf32> to vector<1x32xf32>
    %c0_35 = arith.constant 0 : index
    %c0_36 = arith.constant 0 : index
    %c160 = arith.constant 160 : index
    %62 = vector.load %arg4[%c0_35, %c0_36, %c160] : memref<2x1x416xf32, #tpu.memory_space<vmem>>, vector<1x1x32xf32>
    %63 = vector.shape_cast %62 : vector<1x1x32xf32> to vector<1x32xf32>
    %c0_37 = arith.constant 0 : index
    %c0_38 = arith.constant 0 : index
    %c192 = arith.constant 192 : index
    %64 = vector.load %arg4[%c0_37, %c0_38, %c192] : memref<2x1x416xf32, #tpu.memory_space<vmem>>, vector<1x1x128xf32>
    %65 = vector.shape_cast %64 : vector<1x1x128xf32> to vector<1x128xf32>
    %c0_39 = arith.constant 0 : index
    %c0_40 = arith.constant 0 : index
    %c320 = arith.constant 320 : index
    %66 = vector.load %arg4[%c0_39, %c0_40, %c320] : memref<2x1x416xf32, #tpu.memory_space<vmem>>, vector<1x1x32xf32>
    %67 = vector.shape_cast %66 : vector<1x1x32xf32> to vector<1x32xf32>
    %c0_41 = arith.constant 0 : index
    %c0_42 = arith.constant 0 : index
    %c352 = arith.constant 352 : index
    %68 = vector.load %arg4[%c0_41, %c0_42, %c352] : memref<2x1x416xf32, #tpu.memory_space<vmem>>, vector<1x1x32xf32>
    %69 = vector.shape_cast %68 : vector<1x1x32xf32> to vector<1x32xf32>
    %c0_43 = arith.constant 0 : index
    %c0_44 = arith.constant 0 : index
    %c384 = arith.constant 384 : index
    %70 = vector.load %arg4[%c0_43, %c0_44, %c384] : memref<2x1x416xf32, #tpu.memory_space<vmem>>, vector<1x1x32xf32>
    %71 = vector.shape_cast %70 : vector<1x1x32xf32> to vector<1x32xf32>
    %cst_45 = arith.constant dense<0.000000e+00> : vector<16x96xf32>
    %72 = tpu.matmul %37, %49, %cst_45 {dimension_numbers = #tpu.dot_dimension_numbers<[1], [0], [0], [1], [0, 0, 1, 1], [], []>} : vector<16x32xf32>, vector<32x96xf32>, vector<16x96xf32> -> vector<16x96xf32>
    %73 = vector.broadcast %57 : vector<1x96xf32> to vector<16x96xf32>
    %74 = arith.addf %72, %73 : vector<16x96xf32>
    %75 = vector.extract_strided_slice %74 {offsets = [0, 0], sizes = [16, 32], strides = [1, 1]} : vector<16x96xf32> to vector<16x32xf32>
    %76 = vector.shape_cast %75 : vector<16x32xf32> to vector<2x8x4x8xf32>
    %77 = tpu.transpose %76, [0, 2, 1, 3] : vector<2x8x4x8xf32> -> vector<2x4x8x8xf32>
    %78 = vector.shape_cast %77 : vector<2x4x8x8xf32> to vector<8x8x8xf32>
    %79 = vector.extract_strided_slice %74 {offsets = [0, 32], sizes = [16, 32], strides = [1, 1]} : vector<16x96xf32> to vector<16x32xf32>
    %80 = vector.shape_cast %79 : vector<16x32xf32> to vector<2x8x4x8xf32>
    %81 = tpu.transpose %80, [0, 2, 1, 3] : vector<2x8x4x8xf32> -> vector<2x4x8x8xf32>
    %82 = vector.shape_cast %81 : vector<2x4x8x8xf32> to vector<8x8x8xf32>
    %83 = vector.extract_strided_slice %74 {offsets = [0, 64], sizes = [16, 32], strides = [1, 1]} : vector<16x96xf32> to vector<16x32xf32>
    %84 = vector.shape_cast %83 : vector<16x32xf32> to vector<2x8x4x8xf32>
    %85 = tpu.transpose %84, [0, 2, 1, 3] : vector<2x8x4x8xf32> -> vector<2x4x8x8xf32>
    %86 = vector.shape_cast %85 : vector<2x4x8x8xf32> to vector<8x8x8xf32>
    "tpu.trace_start"() <{level = 10 : i32, message = "gqd,gkd->gqk"}> : () -> ()
    %cst_46 = arith.constant dense<0.000000e+00> : vector<8x8x8xf32>
    %87 = tpu.matmul %78, %82, %cst_46 {dimension_numbers = #tpu.dot_dimension_numbers<[2], [2], [1], [1], [0, 0, 0, 1, 1, 1], [0], [0]>} : vector<8x8x8xf32>, vector<8x8x8xf32>, vector<8x8x8xf32> -> vector<8x8x8xf32>
    "tpu.trace_stop"() : () -> ()
    %88 = vector.broadcast %47 : vector<8x1x8xf32> to vector<8x8x8xf32>
    %89 = arith.addf %87, %88 : vector<8x8x8xf32>
    %cst_47 = arith.constant dense<0xFF800000> : vector<8x8xf32>
    %90 = vector.multi_reduction <maximumf>, %89, %cst_47 [2] : vector<8x8x8xf32> to vector<8x8xf32>
    %91 = vector.shape_cast %90 : vector<8x8xf32> to vector<8x8x1xf32>
    %92 = vector.broadcast %91 : vector<8x8x1xf32> to vector<8x8x8xf32>
    %93 = arith.subf %89, %92 : vector<8x8x8xf32>
    %94 = math.exp %93 : vector<8x8x8xf32>
    %cst_48 = arith.constant dense<0.000000e+00> : vector<8x8xf32>
    %95 = vector.multi_reduction <add>, %94, %cst_48 [2] : vector<8x8x8xf32> to vector<8x8xf32>
    %96 = vector.shape_cast %95 : vector<8x8xf32> to vector<8x8x1xf32>
    %97 = tpu.reciprocal %96 {approx = true} : vector<8x8x1xf32> -> vector<8x8x1xf32>
    %98 = vector.broadcast %97 : vector<8x8x1xf32> to vector<8x8x8xf32>
    %99 = arith.mulf %94, %98 : vector<8x8x8xf32>
    "tpu.trace_start"() <{level = 10 : i32, message = "gqk,gkd->gqd"}> : () -> ()
    %cst_49 = arith.constant dense<0.000000e+00> : vector<8x8x8xf32>
    %100 = tpu.matmul %99, %86, %cst_49 {dimension_numbers = #tpu.dot_dimension_numbers<[2], [1], [1], [2], [0, 0, 0, 1, 1, 2], [0], [0]>} : vector<8x8x8xf32>, vector<8x8x8xf32>, vector<8x8x8xf32> -> vector<8x8x8xf32>
    "tpu.trace_stop"() : () -> ()
    %101 = vector.shape_cast %100 : vector<8x8x8xf32> to vector<2x4x8x8xf32>
    %102 = tpu.transpose %101, [0, 2, 1, 3] : vector<2x4x8x8xf32> -> vector<2x8x4x8xf32>
    %103 = vector.shape_cast %102 : vector<2x8x4x8xf32> to vector<16x32xf32>
    %cst_50 = arith.constant dense<0.000000e+00> : vector<16x32xf32>
    %104 = tpu.matmul %103, %51, %cst_50 {dimension_numbers = #tpu.dot_dimension_numbers<[1], [0], [0], [1], [0, 0, 1, 1], [], []>} : vector<16x32xf32>, vector<32x32xf32>, vector<16x32xf32> -> vector<16x32xf32>
    %105 = vector.broadcast %59 : vector<1x32xf32> to vector<16x32xf32>
    %106 = arith.addf %104, %105 : vector<16x32xf32>
    %107 = arith.addf %37, %106 : vector<16x32xf32>
    %cst_51 = arith.constant dense<0.000000e+00> : vector<16xf32>
    %108 = vector.multi_reduction <add>, %107, %cst_51 [1] : vector<16x32xf32> to vector<16xf32>
    %109 = vector.shape_cast %108 : vector<16xf32> to vector<16x1xf32>
    %cst_52 = arith.constant 3.200000e+01 : f32
    %110 = vector.broadcast %cst_52 : f32 to vector<16x1xf32>
    %111 = arith.divf %109, %110 : vector<16x1xf32>
    %112 = vector.broadcast %111 : vector<16x1xf32> to vector<16x32xf32>
    %113 = arith.subf %107, %112 : vector<16x32xf32>
    %114 = arith.mulf %113, %113 : vector<16x32xf32>
    %cst_53 = arith.constant dense<0.000000e+00> : vector<16xf32>
    %115 = vector.multi_reduction <add>, %114, %cst_53 [1] : vector<16x32xf32> to vector<16xf32>
    %116 = vector.shape_cast %115 : vector<16xf32> to vector<16x1xf32>
    %cst_54 = arith.constant 3.200000e+01 : f32
    %117 = vector.broadcast %cst_54 : f32 to vector<16x1xf32>
    %118 = arith.divf %116, %117 : vector<16x1xf32>
    %119 = vector.broadcast %111 : vector<16x1xf32> to vector<16x32xf32>
    %120 = arith.subf %107, %119 : vector<16x32xf32>
    %cst_55 = arith.constant 9.99999996E-13 : f32
    %121 = vector.broadcast %cst_55 : f32 to vector<16x1xf32>
    %122 = arith.addf %118, %121 : vector<16x1xf32>
    %123 = math.rsqrt %122 : vector<16x1xf32>
    %124 = vector.broadcast %123 : vector<16x1xf32> to vector<16x32xf32>
    %125 = arith.mulf %120, %124 : vector<16x32xf32>
    %126 = vector.broadcast %61 : vector<1x32xf32> to vector<16x32xf32>
    %127 = arith.mulf %125, %126 : vector<16x32xf32>
    %128 = vector.broadcast %63 : vector<1x32xf32> to vector<16x32xf32>
    %129 = arith.addf %127, %128 : vector<16x32xf32>
    %cst_56 = arith.constant dense<0.000000e+00> : vector<16x128xf32>
    %130 = tpu.matmul %129, %53, %cst_56 {dimension_numbers = #tpu.dot_dimension_numbers<[1], [0], [0], [1], [0, 0, 1, 1], [], []>} : vector<16x32xf32>, vector<32x128xf32>, vector<16x128xf32> -> vector<16x128xf32>
    %131 = vector.broadcast %65 : vector<1x128xf32> to vector<16x128xf32>
    %132 = arith.addf %130, %131 : vector<16x128xf32>
    %cst_57 = arith.constant 5.000000e-01 : f32
    %133 = vector.broadcast %cst_57 : f32 to vector<16x128xf32>
    %134 = arith.mulf %133, %132 : vector<16x128xf32>
    %cst_58 = arith.constant 4.471500e-02 : f32
    %135 = vector.broadcast %cst_58 : f32 to vector<16x128xf32>
    %136 = arith.mulf %135, %132 : vector<16x128xf32>
    %137 = arith.mulf %136, %132 : vector<16x128xf32>
    %138 = arith.mulf %137, %132 : vector<16x128xf32>
    %139 = arith.addf %132, %138 : vector<16x128xf32>
    %cst_59 = arith.constant 0.797884583 : f32
    %140 = vector.broadcast %cst_59 : f32 to vector<16x128xf32>
    %141 = arith.mulf %140, %139 : vector<16x128xf32>
    %142 = math.tanh %141 : vector<16x128xf32>
    %cst_60 = arith.constant 1.000000e+00 : f32
    %143 = vector.broadcast %cst_60 : f32 to vector<16x128xf32>
    %144 = arith.addf %143, %142 : vector<16x128xf32>
    %145 = arith.mulf %134, %144 : vector<16x128xf32>
    %cst_61 = arith.constant dense<0.000000e+00> : vector<16x32xf32>
    %146 = tpu.matmul %145, %55, %cst_61 {dimension_numbers = #tpu.dot_dimension_numbers<[1], [0], [0], [1], [0, 0, 1, 1], [], []>} : vector<16x128xf32>, vector<128x32xf32>, vector<16x32xf32> -> vector<16x32xf32>
    %147 = vector.broadcast %67 : vector<1x32xf32> to vector<16x32xf32>
    %148 = arith.addf %146, %147 : vector<16x32xf32>
    %149 = arith.addf %129, %148 : vector<16x32xf32>
    %cst_62 = arith.constant dense<0.000000e+00> : vector<16xf32>
    %150 = vector.multi_reduction <add>, %149, %cst_62 [1] : vector<16x32xf32> to vector<16xf32>
    %151 = vector.shape_cast %150 : vector<16xf32> to vector<16x1xf32>
    %cst_63 = arith.constant 3.200000e+01 : f32
    %152 = vector.broadcast %cst_63 : f32 to vector<16x1xf32>
    %153 = arith.divf %151, %152 : vector<16x1xf32>
    %154 = vector.broadcast %153 : vector<16x1xf32> to vector<16x32xf32>
    %155 = arith.subf %149, %154 : vector<16x32xf32>
    %156 = arith.mulf %155, %155 : vector<16x32xf32>
    %cst_64 = arith.constant dense<0.000000e+00> : vector<16xf32>
    %157 = vector.multi_reduction <add>, %156, %cst_64 [1] : vector<16x32xf32> to vector<16xf32>
    %158 = vector.shape_cast %157 : vector<16xf32> to vector<16x1xf32>
    %cst_65 = arith.constant 3.200000e+01 : f32
    %159 = vector.broadcast %cst_65 : f32 to vector<16x1xf32>
    %160 = arith.divf %158, %159 : vector<16x1xf32>
    %161 = vector.broadcast %153 : vector<16x1xf32> to vector<16x32xf32>
    %162 = arith.subf %149, %161 : vector<16x32xf32>
    %cst_66 = arith.constant 9.99999996E-13 : f32
    %163 = vector.broadcast %cst_66 : f32 to vector<16x1xf32>
    %164 = arith.addf %160, %163 : vector<16x1xf32>
    %165 = math.rsqrt %164 : vector<16x1xf32>
    %166 = vector.broadcast %165 : vector<16x1xf32> to vector<16x32xf32>
    %167 = arith.mulf %162, %166 : vector<16x32xf32>
    %168 = vector.broadcast %69 : vector<1x32xf32> to vector<16x32xf32>
    %169 = arith.mulf %167, %168 : vector<16x32xf32>
    %170 = vector.broadcast %71 : vector<1x32xf32> to vector<16x32xf32>
    %171 = arith.addf %169, %170 : vector<16x32xf32>
    %c1 = arith.constant 1 : index
    %c0_67 = arith.constant 0 : index
    %c0_68 = arith.constant 0 : index
    %172 = vector.load %arg2[%c1, %c0_67, %c0_68] : memref<2x32x256xf32, #tpu.memory_space<vmem>>, vector<1x32x96xf32>
    %173 = vector.shape_cast %172 : vector<1x32x96xf32> to vector<32x96xf32>
    %c1_69 = arith.constant 1 : index
    %c0_70 = arith.constant 0 : index
    %c96_71 = arith.constant 96 : index
    %174 = vector.load %arg2[%c1_69, %c0_70, %c96_71] : memref<2x32x256xf32, #tpu.memory_space<vmem>>, vector<1x32x32xf32>
    %175 = vector.shape_cast %174 : vector<1x32x32xf32> to vector<32x32xf32>
    %c1_72 = arith.constant 1 : index
    %c0_73 = arith.constant 0 : index
    %c128_74 = arith.constant 128 : index
    %176 = vector.load %arg2[%c1_72, %c0_73, %c128_74] : memref<2x32x256xf32, #tpu.memory_space<vmem>>, vector<1x32x128xf32>
    %177 = vector.shape_cast %176 : vector<1x32x128xf32> to vector<32x128xf32>
    %c1_75 = arith.constant 1 : index
    %c0_76 = arith.constant 0 : index
    %c0_77 = arith.constant 0 : index
    %178 = vector.load %arg3[%c1_75, %c0_76, %c0_77] : memref<2x128x32xf32, #tpu.memory_space<vmem>>, vector<1x128x32xf32>
    %179 = vector.shape_cast %178 : vector<1x128x32xf32> to vector<128x32xf32>
    %c1_78 = arith.constant 1 : index
    %c0_79 = arith.constant 0 : index
    %c0_80 = arith.constant 0 : index
    %180 = vector.load %arg4[%c1_78, %c0_79, %c0_80] : memref<2x1x416xf32, #tpu.memory_space<vmem>>, vector<1x1x96xf32>
    %181 = vector.shape_cast %180 : vector<1x1x96xf32> to vector<1x96xf32>
    %c1_81 = arith.constant 1 : index
    %c0_82 = arith.constant 0 : index
    %c96_83 = arith.constant 96 : index
    %182 = vector.load %arg4[%c1_81, %c0_82, %c96_83] : memref<2x1x416xf32, #tpu.memory_space<vmem>>, vector<1x1x32xf32>
    %183 = vector.shape_cast %182 : vector<1x1x32xf32> to vector<1x32xf32>
    %c1_84 = arith.constant 1 : index
    %c0_85 = arith.constant 0 : index
    %c128_86 = arith.constant 128 : index
    %184 = vector.load %arg4[%c1_84, %c0_85, %c128_86] : memref<2x1x416xf32, #tpu.memory_space<vmem>>, vector<1x1x32xf32>
    %185 = vector.shape_cast %184 : vector<1x1x32xf32> to vector<1x32xf32>
    %c1_87 = arith.constant 1 : index
    %c0_88 = arith.constant 0 : index
    %c160_89 = arith.constant 160 : index
    %186 = vector.load %arg4[%c1_87, %c0_88, %c160_89] : memref<2x1x416xf32, #tpu.memory_space<vmem>>, vector<1x1x32xf32>
    %187 = vector.shape_cast %186 : vector<1x1x32xf32> to vector<1x32xf32>
    %c1_90 = arith.constant 1 : index
    %c0_91 = arith.constant 0 : index
    %c192_92 = arith.constant 192 : index
    %188 = vector.load %arg4[%c1_90, %c0_91, %c192_92] : memref<2x1x416xf32, #tpu.memory_space<vmem>>, vector<1x1x128xf32>
    %189 = vector.shape_cast %188 : vector<1x1x128xf32> to vector<1x128xf32>
    %c1_93 = arith.constant 1 : index
    %c0_94 = arith.constant 0 : index
    %c320_95 = arith.constant 320 : index
    %190 = vector.load %arg4[%c1_93, %c0_94, %c320_95] : memref<2x1x416xf32, #tpu.memory_space<vmem>>, vector<1x1x32xf32>
    %191 = vector.shape_cast %190 : vector<1x1x32xf32> to vector<1x32xf32>
    %c1_96 = arith.constant 1 : index
    %c0_97 = arith.constant 0 : index
    %c352_98 = arith.constant 352 : index
    %192 = vector.load %arg4[%c1_96, %c0_97, %c352_98] : memref<2x1x416xf32, #tpu.memory_space<vmem>>, vector<1x1x32xf32>
    %193 = vector.shape_cast %192 : vector<1x1x32xf32> to vector<1x32xf32>
    %c1_99 = arith.constant 1 : index
    %c0_100 = arith.constant 0 : index
    %c384_101 = arith.constant 384 : index
    %194 = vector.load %arg4[%c1_99, %c0_100, %c384_101] : memref<2x1x416xf32, #tpu.memory_space<vmem>>, vector<1x1x32xf32>
    %195 = vector.shape_cast %194 : vector<1x1x32xf32> to vector<1x32xf32>
    %cst_102 = arith.constant dense<0.000000e+00> : vector<16x96xf32>
    %196 = tpu.matmul %171, %173, %cst_102 {dimension_numbers = #tpu.dot_dimension_numbers<[1], [0], [0], [1], [0, 0, 1, 1], [], []>} : vector<16x32xf32>, vector<32x96xf32>, vector<16x96xf32> -> vector<16x96xf32>
    %197 = vector.broadcast %181 : vector<1x96xf32> to vector<16x96xf32>
    %198 = arith.addf %196, %197 : vector<16x96xf32>
    %199 = vector.extract_strided_slice %198 {offsets = [0, 0], sizes = [16, 32], strides = [1, 1]} : vector<16x96xf32> to vector<16x32xf32>
    %200 = vector.shape_cast %199 : vector<16x32xf32> to vector<2x8x4x8xf32>
    %201 = tpu.transpose %200, [0, 2, 1, 3] : vector<2x8x4x8xf32> -> vector<2x4x8x8xf32>
    %202 = vector.shape_cast %201 : vector<2x4x8x8xf32> to vector<8x8x8xf32>
    %203 = vector.extract_strided_slice %198 {offsets = [0, 32], sizes = [16, 32], strides = [1, 1]} : vector<16x96xf32> to vector<16x32xf32>
    %204 = vector.shape_cast %203 : vector<16x32xf32> to vector<2x8x4x8xf32>
    %205 = tpu.transpose %204, [0, 2, 1, 3] : vector<2x8x4x8xf32> -> vector<2x4x8x8xf32>
    %206 = vector.shape_cast %205 : vector<2x4x8x8xf32> to vector<8x8x8xf32>
    %207 = vector.extract_strided_slice %198 {offsets = [0, 64], sizes = [16, 32], strides = [1, 1]} : vector<16x96xf32> to vector<16x32xf32>
    %208 = vector.shape_cast %207 : vector<16x32xf32> to vector<2x8x4x8xf32>
    %209 = tpu.transpose %208, [0, 2, 1, 3] : vector<2x8x4x8xf32> -> vector<2x4x8x8xf32>
    %210 = vector.shape_cast %209 : vector<2x4x8x8xf32> to vector<8x8x8xf32>
    "tpu.trace_start"() <{level = 10 : i32, message = "gqd,gkd->gqk"}> : () -> ()
    %cst_103 = arith.constant dense<0.000000e+00> : vector<8x8x8xf32>
    %211 = tpu.matmul %202, %206, %cst_103 {dimension_numbers = #tpu.dot_dimension_numbers<[2], [2], [1], [1], [0, 0, 0, 1, 1, 1], [0], [0]>} : vector<8x8x8xf32>, vector<8x8x8xf32>, vector<8x8x8xf32> -> vector<8x8x8xf32>
    "tpu.trace_stop"() : () -> ()
    %212 = vector.broadcast %47 : vector<8x1x8xf32> to vector<8x8x8xf32>
    %213 = arith.addf %211, %212 : vector<8x8x8xf32>
    %cst_104 = arith.constant dense<0xFF800000> : vector<8x8xf32>
    %214 = vector.multi_reduction <maximumf>, %213, %cst_104 [2] : vector<8x8x8xf32> to vector<8x8xf32>
    %215 = vector.shape_cast %214 : vector<8x8xf32> to vector<8x8x1xf32>
    %216 = vector.broadcast %215 : vector<8x8x1xf32> to vector<8x8x8xf32>
    %217 = arith.subf %213, %216 : vector<8x8x8xf32>
    %218 = math.exp %217 : vector<8x8x8xf32>
    %cst_105 = arith.constant dense<0.000000e+00> : vector<8x8xf32>
    %219 = vector.multi_reduction <add>, %218, %cst_105 [2] : vector<8x8x8xf32> to vector<8x8xf32>
    %220 = vector.shape_cast %219 : vector<8x8xf32> to vector<8x8x1xf32>
    %221 = tpu.reciprocal %220 {approx = true} : vector<8x8x1xf32> -> vector<8x8x1xf32>
    %222 = vector.broadcast %221 : vector<8x8x1xf32> to vector<8x8x8xf32>
    %223 = arith.mulf %218, %222 : vector<8x8x8xf32>
    "tpu.trace_start"() <{level = 10 : i32, message = "gqk,gkd->gqd"}> : () -> ()
    %cst_106 = arith.constant dense<0.000000e+00> : vector<8x8x8xf32>
    %224 = tpu.matmul %223, %210, %cst_106 {dimension_numbers = #tpu.dot_dimension_numbers<[2], [1], [1], [2], [0, 0, 0, 1, 1, 2], [0], [0]>} : vector<8x8x8xf32>, vector<8x8x8xf32>, vector<8x8x8xf32> -> vector<8x8x8xf32>
    "tpu.trace_stop"() : () -> ()
    %225 = vector.shape_cast %224 : vector<8x8x8xf32> to vector<2x4x8x8xf32>
    %226 = tpu.transpose %225, [0, 2, 1, 3] : vector<2x4x8x8xf32> -> vector<2x8x4x8xf32>
    %227 = vector.shape_cast %226 : vector<2x8x4x8xf32> to vector<16x32xf32>
    %cst_107 = arith.constant dense<0.000000e+00> : vector<16x32xf32>
    %228 = tpu.matmul %227, %175, %cst_107 {dimension_numbers = #tpu.dot_dimension_numbers<[1], [0], [0], [1], [0, 0, 1, 1], [], []>} : vector<16x32xf32>, vector<32x32xf32>, vector<16x32xf32> -> vector<16x32xf32>
    %229 = vector.broadcast %183 : vector<1x32xf32> to vector<16x32xf32>
    %230 = arith.addf %228, %229 : vector<16x32xf32>
    %231 = arith.addf %171, %230 : vector<16x32xf32>
    %cst_108 = arith.constant dense<0.000000e+00> : vector<16xf32>
    %232 = vector.multi_reduction <add>, %231, %cst_108 [1] : vector<16x32xf32> to vector<16xf32>
    %233 = vector.shape_cast %232 : vector<16xf32> to vector<16x1xf32>
    %cst_109 = arith.constant 3.200000e+01 : f32
    %234 = vector.broadcast %cst_109 : f32 to vector<16x1xf32>
    %235 = arith.divf %233, %234 : vector<16x1xf32>
    %236 = vector.broadcast %235 : vector<16x1xf32> to vector<16x32xf32>
    %237 = arith.subf %231, %236 : vector<16x32xf32>
    %238 = arith.mulf %237, %237 : vector<16x32xf32>
    %cst_110 = arith.constant dense<0.000000e+00> : vector<16xf32>
    %239 = vector.multi_reduction <add>, %238, %cst_110 [1] : vector<16x32xf32> to vector<16xf32>
    %240 = vector.shape_cast %239 : vector<16xf32> to vector<16x1xf32>
    %cst_111 = arith.constant 3.200000e+01 : f32
    %241 = vector.broadcast %cst_111 : f32 to vector<16x1xf32>
    %242 = arith.divf %240, %241 : vector<16x1xf32>
    %243 = vector.broadcast %235 : vector<16x1xf32> to vector<16x32xf32>
    %244 = arith.subf %231, %243 : vector<16x32xf32>
    %cst_112 = arith.constant 9.99999996E-13 : f32
    %245 = vector.broadcast %cst_112 : f32 to vector<16x1xf32>
    %246 = arith.addf %242, %245 : vector<16x1xf32>
    %247 = math.rsqrt %246 : vector<16x1xf32>
    %248 = vector.broadcast %247 : vector<16x1xf32> to vector<16x32xf32>
    %249 = arith.mulf %244, %248 : vector<16x32xf32>
    %250 = vector.broadcast %185 : vector<1x32xf32> to vector<16x32xf32>
    %251 = arith.mulf %249, %250 : vector<16x32xf32>
    %252 = vector.broadcast %187 : vector<1x32xf32> to vector<16x32xf32>
    %253 = arith.addf %251, %252 : vector<16x32xf32>
    %cst_113 = arith.constant dense<0.000000e+00> : vector<16x128xf32>
    %254 = tpu.matmul %253, %177, %cst_113 {dimension_numbers = #tpu.dot_dimension_numbers<[1], [0], [0], [1], [0, 0, 1, 1], [], []>} : vector<16x32xf32>, vector<32x128xf32>, vector<16x128xf32> -> vector<16x128xf32>
    %255 = vector.broadcast %189 : vector<1x128xf32> to vector<16x128xf32>
    %256 = arith.addf %254, %255 : vector<16x128xf32>
    %cst_114 = arith.constant 5.000000e-01 : f32
    %257 = vector.broadcast %cst_114 : f32 to vector<16x128xf32>
    %258 = arith.mulf %257, %256 : vector<16x128xf32>
    %cst_115 = arith.constant 4.471500e-02 : f32
    %259 = vector.broadcast %cst_115 : f32 to vector<16x128xf32>
    %260 = arith.mulf %259, %256 : vector<16x128xf32>
    %261 = arith.mulf %260, %256 : vector<16x128xf32>
    %262 = arith.mulf %261, %256 : vector<16x128xf32>
    %263 = arith.addf %256, %262 : vector<16x128xf32>
    %cst_116 = arith.constant 0.797884583 : f32
    %264 = vector.broadcast %cst_116 : f32 to vector<16x128xf32>
    %265 = arith.mulf %264, %263 : vector<16x128xf32>
    %266 = math.tanh %265 : vector<16x128xf32>
    %cst_117 = arith.constant 1.000000e+00 : f32
    %267 = vector.broadcast %cst_117 : f32 to vector<16x128xf32>
    %268 = arith.addf %267, %266 : vector<16x128xf32>
    %269 = arith.mulf %258, %268 : vector<16x128xf32>
    %cst_118 = arith.constant dense<0.000000e+00> : vector<16x32xf32>
    %270 = tpu.matmul %269, %179, %cst_118 {dimension_numbers = #tpu.dot_dimension_numbers<[1], [0], [0], [1], [0, 0, 1, 1], [], []>} : vector<16x128xf32>, vector<128x32xf32>, vector<16x32xf32> -> vector<16x32xf32>
    %271 = vector.broadcast %191 : vector<1x32xf32> to vector<16x32xf32>
    %272 = arith.addf %270, %271 : vector<16x32xf32>
    %273 = arith.addf %253, %272 : vector<16x32xf32>
    %cst_119 = arith.constant dense<0.000000e+00> : vector<16xf32>
    %274 = vector.multi_reduction <add>, %273, %cst_119 [1] : vector<16x32xf32> to vector<16xf32>
    %275 = vector.shape_cast %274 : vector<16xf32> to vector<16x1xf32>
    %cst_120 = arith.constant 3.200000e+01 : f32
    %276 = vector.broadcast %cst_120 : f32 to vector<16x1xf32>
    %277 = arith.divf %275, %276 : vector<16x1xf32>
    %278 = vector.broadcast %277 : vector<16x1xf32> to vector<16x32xf32>
    %279 = arith.subf %273, %278 : vector<16x32xf32>
    %280 = arith.mulf %279, %279 : vector<16x32xf32>
    %cst_121 = arith.constant dense<0.000000e+00> : vector<16xf32>
    %281 = vector.multi_reduction <add>, %280, %cst_121 [1] : vector<16x32xf32> to vector<16xf32>
    %282 = vector.shape_cast %281 : vector<16xf32> to vector<16x1xf32>
    %cst_122 = arith.constant 3.200000e+01 : f32
    %283 = vector.broadcast %cst_122 : f32 to vector<16x1xf32>
    %284 = arith.divf %282, %283 : vector<16x1xf32>
    %285 = vector.broadcast %277 : vector<16x1xf32> to vector<16x32xf32>
    %286 = arith.subf %273, %285 : vector<16x32xf32>
    %cst_123 = arith.constant 9.99999996E-13 : f32
    %287 = vector.broadcast %cst_123 : f32 to vector<16x1xf32>
    %288 = arith.addf %284, %287 : vector<16x1xf32>
    %289 = math.rsqrt %288 : vector<16x1xf32>
    %290 = vector.broadcast %289 : vector<16x1xf32> to vector<16x32xf32>
    %291 = arith.mulf %286, %290 : vector<16x32xf32>
    %292 = vector.broadcast %193 : vector<1x32xf32> to vector<16x32xf32>
    %293 = arith.mulf %291, %292 : vector<16x32xf32>
    %294 = vector.broadcast %195 : vector<1x32xf32> to vector<16x32xf32>
    %295 = arith.addf %293, %294 : vector<16x32xf32>
    %c72 = arith.constant 72 : index
    %c0_124 = arith.constant 0 : index
    %296 = vector.load %arg5[%c72, %c0_124] : memref<108x32xf32, #tpu.memory_space<vmem>>, vector<32x32xf32>
    %c107 = arith.constant 107 : index
    %c0_125 = arith.constant 0 : index
    %297 = vector.load %arg5[%c107, %c0_125] : memref<108x32xf32, #tpu.memory_space<vmem>>, vector<1x32xf32>
    %c0_126 = arith.constant 0 : index
    %c0_127 = arith.constant 0 : index
    %298 = vector.load %arg6[%c0_126, %c0_127] : memref<33x128xf32, #tpu.memory_space<vmem>>, vector<32x128xf32>
    %c32 = arith.constant 32 : index
    %c0_128 = arith.constant 0 : index
    %299 = vector.load %arg6[%c32, %c0_128] : memref<33x128xf32, #tpu.memory_space<vmem>>, vector<1x128xf32>
    %300 = vector.shape_cast %295 : vector<16x32xf32> to vector<2x8x32xf32>
    %301 = vector.extract_strided_slice %300 {offsets = [0, 0, 0], sizes = [2, 1, 32], strides = [1, 1, 1]} : vector<2x8x32xf32> to vector<2x1x32xf32>
    %302 = vector.shape_cast %301 : vector<2x1x32xf32> to vector<2x32xf32>
    %cst_129 = arith.constant dense<0.000000e+00> : vector<2x32xf32>
    %303 = tpu.matmul %302, %296, %cst_129 {dimension_numbers = #tpu.dot_dimension_numbers<[1], [0], [0], [1], [0, 0, 1, 1], [], []>} : vector<2x32xf32>, vector<32x32xf32>, vector<2x32xf32> -> vector<2x32xf32>
    %304 = vector.broadcast %297 : vector<1x32xf32> to vector<2x32xf32>
    %305 = arith.addf %303, %304 : vector<2x32xf32>
    %306 = math.tanh %305 : vector<2x32xf32>
    %cst_130 = arith.constant dense<0.000000e+00> : vector<2x128xf32>
    %307 = tpu.matmul %306, %298, %cst_130 {dimension_numbers = #tpu.dot_dimension_numbers<[1], [0], [0], [1], [0, 0, 1, 1], [], []>} : vector<2x32xf32>, vector<32x128xf32>, vector<2x128xf32> -> vector<2x128xf32>
    %308 = vector.broadcast %299 : vector<1x128xf32> to vector<2x128xf32>
    %309 = arith.addf %307, %308 : vector<2x128xf32>
    %c0_131 = arith.constant 0 : index
    %c0_132 = arith.constant 0 : index
    %310 = vector.load %arg7[%c0_131, %c0_132] : memref<2x128xf32, #tpu.memory_space<vmem>>, vector<2x128xf32>
    tpu.vector_store %arg7[%c0_131, %c0_132], %309 {strides = array<i32>} : memref<2x128xf32, #tpu.memory_space<vmem>>, vector<2x128xf32>,
    return
  }
}

</mosaic_0001>

<llo_original>
// kernel: offensive_word_classifier_forward.1
$region0: #{offensive_word_classifier_forward.1}
  #allocation0 [shape = 'u32[]', space=smem, size = 0x4, offset = 0x4, fixed_abs, tag = 'smem constant byte address 0x4 - core index']
  #allocation1 [shape = 'u32[144,128]{1,0:T(1,128)}', space=vmem, size = 0x12000, scoped, tag = 'internal scratch']
  %s0 = inlined_call_operand.vmem [shape: s32[16,1], index: 0, kind: input, shape index: {}]
  %s1 = inlined_call_operand.vmem [shape: s32[2,8], index: 1, kind: input, shape index: {}]
  %s2 = inlined_call_operand.vmem [shape: f32[2,32,256], index: 2, kind: input, shape index: {}]
  %s3 = inlined_call_operand.vmem [shape: f32[2,128,32], index: 3, kind: input, shape index: {}]
  %s4 = inlined_call_operand.vmem [shape: f32[2,1,416], index: 4, kind: input, shape index: {}]
  %s5 = inlined_call_operand.vmem [shape: f32[108,32], index: 5, kind: input, shape index: {}]
  %s6 = inlined_call_operand.vmem [shape: f32[33,128], index: 6, kind: input, shape index: {}]
  %s7 = inlined_call_operand.hbm [shape: f32[2,128], index: 7, kind: output, shape index: {}]
  %s8 = sld [smem:[#allocation0]]
  $region38: #{offensive_word_classifier_forward.1} parent=0
    _
  %s10 = ssub.s32 1, %s8
  %s11 = scalar_select 0, %s10, %s8
  $region1: #{offensive_word_classifier_forward.1} parent=0
    #allocation2 [shape = 'u8[1024]{0}', space=vmem, size = 0x400, scoped, tag = 'output window, operand 0, single buffered']
    #allocation3 [shape = 's32[1]{0}', space=sflag, size = 0x4, scoped, tag = 'scoped memory for offensive_word_classifier_forward.1']
    %12 = vsyncpa [#allocation3], 0
    // Predicated region
    $region2: #{offensive_word_classifier_forward.1} parent=1 // pred_check
      _
    $region3: #{offensive_word_classifier_forward.1} parent=1 // pred_check_branch
      %14 = sbr.rel (0) target = $region5
    $region4: #{offensive_word_classifier_forward.1} parent=1 // pred_region
      _
    $region5: #{offensive_word_classifier_forward.1} parent=1 // pred_fallthru
      _
    // Predicated region
    $region6: #{offensive_word_classifier_forward.1} parent=1 // pred_check
      _
    $region7: #{offensive_word_classifier_forward.1} parent=1 // pred_check_branch
      %16 = sbr.rel (0) target = $region9
    $region8: #{offensive_word_classifier_forward.1} parent=1 // pred_region
      _
    $region9: #{offensive_word_classifier_forward.1} parent=1 // pred_fallthru
      _
    // Predicated region
    $region10: #{offensive_word_classifier_forward.1} parent=1 // pred_check
      _
    $region11: #{offensive_word_classifier_forward.1} parent=1 // pred_check_branch
      %18 = sbr.rel (0) target = $region13
    $region12: #{offensive_word_classifier_forward.1} parent=1 // pred_region
      _
    $region13: #{offensive_word_classifier_forward.1} parent=1 // pred_fallthru
      _
    // Predicated region
    $region14: #{offensive_word_classifier_forward.1} parent=1 // pred_check
      _
    $region15: #{offensive_word_classifier_forward.1} parent=1 // pred_check_branch
      %20 = sbr.rel (0) target = $region17
    $region16: #{offensive_word_classifier_forward.1} parent=1 // pred_region
      _
    $region17: #{offensive_word_classifier_forward.1} parent=1 // pred_fallthru
      _
    // Predicated region
    $region18: #{offensive_word_classifier_forward.1} parent=1 // pred_check
      _
    $region19: #{offensive_word_classifier_forward.1} parent=1 // pred_check_branch
      %22 = sbr.rel (0) target = $region21
    $region20: #{offensive_word_classifier_forward.1} parent=1 // pred_region
      _
    $region21: #{offensive_word_classifier_forward.1} parent=1 // pred_fallthru
      _
    // Predicated region
    $region22: #{offensive_word_classifier_forward.1} parent=1 // pred_check
      _
    $region23: #{offensive_word_classifier_forward.1} parent=1 // pred_check_branch
      %24 = sbr.rel (0) target = $region25
    $region24: #{offensive_word_classifier_forward.1} parent=1 // pred_region
      _
    $region25: #{offensive_word_classifier_forward.1} parent=1 // pred_fallthru
      _
    // Predicated region
    $region26: #{offensive_word_classifier_forward.1} parent=1 // pred_check
      _
    $region27: #{offensive_word_classifier_forward.1} parent=1 // pred_check_branch
      %26 = sbr.rel (0) target = $region29
    $region28: #{offensive_word_classifier_forward.1} parent=1 // pred_region
      _
    $region29: #{offensive_word_classifier_forward.1} parent=1 // pred_fallthru
      _
    %v27 = vld [vmem:[%s5] sm:$0xff]
    %v28 = vld [vmem:[%s5 + $0x8] sm:$0xff]
    %v29 = vld [vmem:[%s5 + $0x10] sm:$0xff]
    %v30 = vld [vmem:[%s5 + $0x18] sm:$0xff]
    %v31 = vld [vmem:[%s5 + $0x20] sm:$0xff]
    %v32 = vld [vmem:[%s5 + $0x28] sm:$0xff]
    %v33 = vld [vmem:[%s5 + $0x30] sm:$0xff]
    %v34 = vld [vmem:[%s5 + $0x38] sm:$0xff]
    %v35 = vld [vmem:[%s5 + $0x40] sm:$0xff]
    %v36 = vld [vmem:[%s5 + $0x68] sm:$0x1]
    %v37 = vld [vmem:[%s5 + $0x69] sm:$0x1]
    %v38 = vld [vmem:[%s5 + $0x6a] sm:$0x1]
    %v39 = vld [vmem:[%s0] sm:$0xff]
    %v40 = vld [vmem:[%s0 + $0x8] sm:$0xff]
    %v41 = vlaneseq
    %v42 = vand.u32 %v41, 127
    %43 = vset.pattern.permute.xlu0 0
    %44 = vperm.xlu0 %43, %v39
    %v45 = vpop.permute.xlu0 %44
    %46 = vset.pattern.permute.xlu0 0
    %47 = vperm.xlu0 %46, %v40
    %v48 = vpop.permute.xlu0 %47
    %vm49 = vcmp.eq.s32.totalorder %v42, %v45
    %vm50 = vcmp.eq.s32.totalorder %v42, %v48
    %v51 = vsel %vm49, 1, 0
    %v52 = vsel %vm50, 1, 0
    %v53 = vcvt.s32.f32 %v51
    %v54 = vcvt.s32.f32 %v52
    %vm55 = vcmask 523264
    %v57 = vsel %vm55, %v53, 0
    %v60 = vsel %vm55, %v54, 0
    %62 = vmatprep.subr.mxu0 0.0
    %63 = vmatpush1.msra.mxu0 %v27
    %64 = vmatprep.subr.mxu0 0.0
    %65 = vmatpush1.msra.mxu0 %v28
    %66 = vmatprep.subr.mxu0 0.0
    %67 = vmatpush1.msra.mxu0 %v29
    %68 = vmatprep.subr.mxu0 0.0
    %69 = vmatpush1.msra.mxu0 %v30
    %70 = vmatprep.subr.mxu0 0.0
    %71 = vmatpush1.msra.mxu0 %v31
    %72 = vmatprep.subr.mxu0 0.0
    %73 = vmatpush1.msra.mxu0 %v32
    %74 = vmatprep.subr.mxu0 0.0
    %75 = vmatpush1.msra.mxu0 %v33
    %76 = vmatprep.subr.mxu0 0.0
    %77 = vmatpush1.msra.mxu0 %v34
    %78 = vmatprep.subr.mxu0 0.0
    %79 = vmatpush1.msra.mxu0 0.0
    %80 = vmatprep.subr.mxu0 0.0
    %81 = vmatpush1.msra.mxu0 0.0
    %82 = vmatprep.subr.mxu0 0.0
    %83 = vmatpush1.msra.mxu0 0.0
    %84 = vmatprep.subr.mxu0 0.0
    %85 = vmatpush1.msra.mxu0 0.0
    %86 = vmatprep.subr.mxu0 0.0
    %87 = vmatpush1.msra.mxu0 0.0
    %88 = vmatprep.subr.mxu0 0.0
    %89 = vmatpush1.msra.mxu0 0.0
    %90 = vmatprep.subr.mxu0 0.0
    %91 = vmatpush1.msra.mxu0 0.0
    %92 = vmatprep.subr.mxu0 0.0
    %93 = vmatpush1.msra.mxu0 0.0
    %94 = vmatprep.subr.mxu0 0.0
    %95 = vmatpush1.msra.mxu0 0.0
    %96 = vmatprep.subr.mxu0 0.0
    %97 = vmatpush1.msra.mxu0 0.0
    %98 = vmatprep.subr.mxu0 0.0
    %99 = vmatpush1.msra.mxu0 0.0
    %100 = vmatprep.subr.mxu0 0.0
    %101 = vmatpush1.msra.mxu0 0.0
    %102 = vmatprep.subr.mxu0 0.0
    %103 = vmatpush1.msra.mxu0 0.0
    %104 = vmatprep.subr.mxu0 0.0
    %105 = vmatpush1.msra.mxu0 0.0
    %106 = vmatprep.subr.mxu0 0.0
    %107 = vmatpush1.msra.mxu0 0.0
    %108 = vmatprep.subr.mxu0 0.0
    %109 = vmatpush1.msra.mxu0 0.0
    %110 = vmatprep.subr.mxu0 0.0
    %111 = vmatpush1.msra.mxu0 0.0
    %112 = vmatprep.subr.mxu0 0.0
    %113 = vmatpush1.msra.mxu0 0.0
    %114 = vmatprep.subr.mxu0 0.0
    %115 = vmatpush1.msra.mxu0 0.0
    %116 = vmatprep.subr.mxu0 0.0
    %117 = vmatpush1.msra.mxu0 0.0
    %118 = vmatprep.subr.mxu0 0.0
    %119 = vmatpush1.msra.mxu0 0.0
    %120 = vmatprep.subr.mxu0 0.0
    %121 = vmatpush1.msra.mxu0 0.0
    %122 = vmatprep.subr.mxu0 0.0
    %123 = vmatpush1.msra.mxu0 0.0
    %124 = vmatprep.subr.mxu0 0.0
    %125 = vmatpush1.msra.mxu0 0.0
    %126 = vmatprep.mubr.f32.mxu0 0.0
    %127 = vmatmul.mubr.f32.gmra.mrb[0].mxu0 %v57
    %v128 = vpop.f32.mrb[0].mxu0
    %v129 = vadd.f32 %v35, %v128
    %v130 = vpop.f32.mrb[0].mxu0
    %131 = vmatprep.mubr.f32.mxu0 0.0
    %132 = vmatmul.mubr.f32.gmra.mrb[0].mxu0 %v60
    %v133 = vpop.f32.mrb[0].mxu0
    %v134 = vadd.f32 %v35, %v133
    %v135 = vpop.f32.mrb[0].mxu0
    %136 = vdwg.mxu0
    %v137 = vlaneseq
    %v138 = vshrl.u32 %v137, 7
    %v139 = vsub.s32 0, %v138
    %v140 = vrot.slane %v36, %v139
    %v141 = vadd.f32 %v129, %v140
    %v142 = vadd.f32 %v134, %v140
    %vm143 = vcmask 261120
    %v144 = vsel %vm143, %v141, 0.0
    %145 = vadd.xlane.f32.xlu0 %v144
    %v146 = vpop.xlane.xlu0 %145
    %v147 = vsel %vm143, %v142, 0.0
    %148 = vadd.xlane.f32.xlu0 %v147
    %v149 = vpop.xlane.xlu0 %148
    %v150 = vrcp.pop 32.0
    %v151 = vmul.f32 %v146, %v150
    %v152 = vmul.f32 %v149, %v150
    %v153 = vsub.f32 %v141, %v151
    %v154 = vsub.f32 %v142, %v152
    %v155 = vmul.f32 %v153, %v153
    %v156 = vmul.f32 %v154, %v154
    %v157 = vsel %vm143, %v155, 0.0
    %158 = vadd.xlane.f32.xlu0 %v157
    %v159 = vpop.xlane.xlu0 %158
    %v160 = vsel %vm143, %v156, 0.0
    %161 = vadd.xlane.f32.xlu0 %v160
    %v162 = vpop.xlane.xlu0 %161
    %v163 = vmul.f32 %v159, %v150
    %v164 = vmul.f32 %v162, %v150
    %v165 = vadd.f32 %v163, 1e-12
    %v166 = vadd.f32 %v164, 1e-12
    %v167 = vrsqrt.pop %v165
    %v168 = vrsqrt.pop %v166
    %v169 = vmul.f32 %v153, %v167
    %v170 = vmul.f32 %v154, %v168
    %v171 = vlaneseq
    %v172 = vshrl.u32 %v171, 7
    %v173 = vsub.s32 0, %v172
    %v174 = vrot.slane %v37, %v173
    %v175 = vmul.f32 %v169, %v174
    %v176 = vmul.f32 %v170, %v174
    %v177 = vlaneseq
    %v178 = vshrl.u32 %v177, 7
    %v179 = vsub.s32 0, %v178
    %v180 = vrot.slane %v38, %v179
    %v181 = vadd.f32 %v175, %v180
    %v182 = vadd.f32 %v176, %v180
    %v183 = vld [vmem:[%s1] sm:$0x3]
    %v184 = vcvt.s32.f32 %v183
    %v185 = vsub.f32 1.0, %v184
    %v186 = vmul.f32 %v185, -1e+09
    %v189 = vunpack.c.l.s4 1966171168
    %v190 = vunpack.c.0.s8 %v189
    %v191 = vlaneseq
    %v192 = vshrl.u32 %v191, 7
    %v193 = vsub.s32 %v190, %v192
    %v194 = vrot.slane %v186, %v193
    %v195 = vcombine.high %v194, %v194
    %v197 = vunpack.c.l.s4 1966171168
    %v198 = vunpack.c.0.s8 %v197
    %v199 = vlaneseq
    %v200 = vshrl.u32 %v199, 7
    %v201 = vsub.s32 %v198, %v200
    %v202 = vrot.slane %v194, %v201
    %v204 = vunpack.c.l.s4 1966171168
    %v205 = vunpack.c.0.s8 %v204
    %v206 = vlaneseq
    %v207 = vshrl.u32 %v206, 7
    %v208 = vsub.s32 %v205, %v207
    %v209 = vrot.slane %v195, %v208
    %v210 = vld [vmem:[%s2] sm:$0xff]
    %v211 = vld [vmem:[%s2 + $0x10] sm:$0xff]
    %v212 = vld [vmem:[%s2 + $0x20] sm:$0xff]
    %v213 = vld [vmem:[%s2 + $0x30] sm:$0xff]
    %v214 = vld [vmem:[%s2 + $0x8] sm:$0xff]
    %v215 = vld [vmem:[%s2 + $0x18] sm:$0xff]
    %v216 = vld [vmem:[%s2 + $0x28] sm:$0xff]
    %v217 = vld [vmem:[%s2 + $0x38] sm:$0xff]
    %v218 = vld [vmem:[%s3] sm:$0xff]
    %v219 = vld [vmem:[%s3 + $0x8] sm:$0xff]
    %v220 = vld [vmem:[%s3 + $0x10] sm:$0xff]
    %v221 = vld [vmem:[%s3 + $0x18] sm:$0xff]
    %v222 = vld [vmem:[%s3 + $0x20] sm:$0xff]
    %v223 = vld [vmem:[%s3 + $0x28] sm:$0xff]
    %v224 = vld [vmem:[%s3 + $0x30] sm:$0xff]
    %v225 = vld [vmem:[%s3 + $0x38] sm:$0xff]
    %v226 = vld [vmem:[%s3 + $0x40] sm:$0xff]
    %v227 = vld [vmem:[%s3 + $0x48] sm:$0xff]
    %v228 = vld [vmem:[%s3 + $0x50] sm:$0xff]
    %v229 = vld [vmem:[%s3 + $0x58] sm:$0xff]
    %v230 = vld [vmem:[%s3 + $0x60] sm:$0xff]
    %v231 = vld [vmem:[%s3 + $0x68] sm:$0xff]
    %v232 = vld [vmem:[%s3 + $0x70] sm:$0xff]
    %v233 = vld [vmem:[%s3 + $0x78] sm:$0xff]
    %v234 = vld [vmem:[%s4] sm:$0x1]
    %v235 = vld [vmem:[%s4 + $0x1] sm:$0x1]
    %v236 = vld [vmem:[%s4 + $0x1] sm:$0x3]
    %v237 = vld [vmem:[%s4 + $0x2] sm:$0x1]
    %v238 = vld [vmem:[%s4 + $0x3] sm:$0x1]
    %v240 = vlaneseq
    %v241 = vshrl.u32 %v240, 7
    %v242 = vsub.s32 0, %v241
    %v243 = vrot.slane %v234, %v242
    %v246 = vsel %vm143, %v181, 0
    %v249 = vsel %vm143, %v182, 0
    %251 = vmatprep.subr.mxu0 0.0
    %252 = vmatpush1.msra.mxu0 %v210
    %253 = vmatprep.subr.mxu0 0.0
    %254 = vmatpush1.msra.mxu0 %v211
    %255 = vmatprep.subr.mxu0 0.0
    %256 = vmatpush1.msra.mxu0 %v212
    %257 = vmatprep.subr.mxu0 0.0
    %258 = vmatpush1.msra.mxu0 %v213
    %259 = vmatprep.subr.mxu0 0.0
    %260 = vmatpush1.msra.mxu0 0.0
    %261 = vmatprep.subr.mxu0 0.0
    %262 = vmatpush1.msra.mxu0 0.0
    %263 = vmatprep.subr.mxu0 0.0
    %264 = vmatpush1.msra.mxu0 0.0
    %265 = vmatprep.subr.mxu0 0.0
    %266 = vmatpush1.msra.mxu0 0.0
    %267 = vmatprep.subr.mxu0 0.0
    %268 = vmatpush1.msra.mxu0 0.0
    %269 = vmatprep.subr.mxu0 0.0
    %270 = vmatpush1.msra.mxu0 0.0
    %271 = vmatprep.subr.mxu0 0.0
    %272 = vmatpush1.msra.mxu0 0.0
    %273 = vmatprep.subr.mxu0 0.0
    %274 = vmatpush1.msra.mxu0 0.0
    %275 = vmatprep.subr.mxu0 0.0
    %276 = vmatpush1.msra.mxu0 0.0
    %277 = vmatprep.subr.mxu0 0.0
    %278 = vmatpush1.msra.mxu0 0.0
    %279 = vmatprep.subr.mxu0 0.0
    %280 = vmatpush1.msra.mxu0 0.0
    %281 = vmatprep.subr.mxu0 0.0
    %282 = vmatpush1.msra.mxu0 0.0
    %283 = vmatprep.subr.mxu0 0.0
    %284 = vmatpush1.msra.mxu0 0.0
    %285 = vmatprep.subr.mxu0 0.0
    %286 = vmatpush1.msra.mxu0 0.0
    %287 = vmatprep.subr.mxu0 0.0
    %288 = vmatpush1.msra.mxu0 0.0
    %289 = vmatprep.subr.mxu0 0.0
    %290 = vmatpush1.msra.mxu0 0.0
    %291 = vmatprep.subr.mxu0 0.0
    %292 = vmatpush1.msra.mxu0 0.0
    %293 = vmatprep.subr.mxu0 0.0
    %294 = vmatpush1.msra.mxu0 0.0
    %295 = vmatprep.subr.mxu0 0.0
    %296 = vmatpush1.msra.mxu0 0.0
    %297 = vmatprep.subr.mxu0 0.0
    %298 = vmatpush1.msra.mxu0 0.0
    %299 = vmatprep.subr.mxu0 0.0
    %300 = vmatpush1.msra.mxu0 0.0
    %301 = vmatprep.subr.mxu0 0.0
    %302 = vmatpush1.msra.mxu0 0.0
    %303 = vmatprep.subr.mxu0 0.0
    %304 = vmatpush1.msra.mxu0 0.0
    %305 = vmatprep.subr.mxu0 0.0
    %306 = vmatpush1.msra.mxu0 0.0
    %307 = vmatprep.subr.mxu0 0.0
    %308 = vmatpush1.msra.mxu0 0.0
    %309 = vmatprep.subr.mxu0 0.0
    %310 = vmatpush1.msra.mxu0 0.0
    %311 = vmatprep.subr.mxu0 0.0
    %312 = vmatpush1.msra.mxu0 0.0
    %313 = vmatprep.subr.mxu0 0.0
    %314 = vmatpush1.msra.mxu0 0.0
    %315 = vmatprep.mubr.f32.mxu0 0.0
    %316 = vmatmul.mubr.f32.gmra.mrb[0].mxu0 %v246
    %v317 = vpop.f32.mrb[0].mxu0
    %v318 = vadd.f32 %v243, %v317
    %v319 = vpop.f32.mrb[0].mxu0
    %320 = vmatprep.mubr.f32.mxu0 0.0
    %321 = vmatmul.mubr.f32.gmra.mrb[0].mxu0 %v249
    %v322 = vpop.f32.mrb[0].mxu0
    %v323 = vadd.f32 %v243, %v322
    %v324 = vpop.f32.mrb[0].mxu0
    %325 = vdwg.mxu0
    %328 = vrot.lane.b32.xlu0 %v318, 120
    %v329 = vpop.permute.xlu0 %328
    %330 = vrot.lane.b32.xlu0 %v323, 120
    %v331 = vpop.permute.xlu0 %330
    %334 = vrot.lane.b32.xlu0 %v318, 112
    %v335 = vpop.permute.xlu0 %334
    %336 = vrot.lane.b32.xlu0 %v323, 112
    %v337 = vpop.permute.xlu0 %336
    %340 = vrot.lane.b32.xlu0 %v318, 104
    %v341 = vpop.permute.xlu0 %340
    %342 = vrot.lane.b32.xlu0 %v323, 104
    %v343 = vpop.permute.xlu0 %342
    %v346 = vcombine.low %v318, %v335
    %v347 = vcombine.high %v318, %v335
    %v349 = vunpack.c.l.s4 1983009808
    %v350 = vunpack.c.0.s8 %v349
    %v351 = vlaneseq
    %v352 = vshrl.u32 %v351, 7
    %v353 = vsub.s32 %v350, %v352
    %v354 = vrot.slane %v346, %v353
    %v356 = vunpack.c.l.s4 1983009808
    %v357 = vunpack.c.0.s8 %v356
    %v358 = vlaneseq
    %v359 = vshrl.u32 %v358, 7
    %v360 = vsub.s32 %v357, %v359
    %v361 = vrot.slane %v347, %v360
    %v362 = vcombine.low %v329, %v341
    %v363 = vcombine.high %v329, %v341
    %v365 = vunpack.c.l.s4 1983009808
    %v366 = vunpack.c.0.s8 %v365
    %v367 = vlaneseq
    %v368 = vshrl.u32 %v367, 7
    %v369 = vsub.s32 %v366, %v368
    %v370 = vrot.slane %v362, %v369
    %v372 = vunpack.c.l.s4 1983009808
    %v373 = vunpack.c.0.s8 %v372
    %v374 = vlaneseq
    %v375 = vshrl.u32 %v374, 7
    %v376 = vsub.s32 %v373, %v375
    %v377 = vrot.slane %v363, %v376
    %v378 = vcombine.low %v354, %v370
    %v379 = vcombine.high %v354, %v370
    %v381 = vunpack.c.l.s4 1934713408
    %v382 = vunpack.c.0.s8 %v381
    %v383 = vlaneseq
    %v384 = vshrl.u32 %v383, 7
    %v385 = vsub.s32 %v382, %v384
    %v386 = vrot.slane %v378, %v385
    %v388 = vunpack.c.l.s4 1934713408
    %v389 = vunpack.c.0.s8 %v388
    %v390 = vlaneseq
    %v391 = vshrl.u32 %v390, 7
    %v392 = vsub.s32 %v389, %v391
    %v393 = vrot.slane %v379, %v392
    %v394 = vcombine.low %v361, %v377
    %v395 = vcombine.high %v361, %v377
    %v397 = vunpack.c.l.s4 1934713408
    %v398 = vunpack.c.0.s8 %v397
    %v399 = vlaneseq
    %v400 = vshrl.u32 %v399, 7
    %v401 = vsub.s32 %v398, %v400
    %v402 = vrot.slane %v394, %v401
    %v404 = vunpack.c.l.s4 1934713408
    %v405 = vunpack.c.0.s8 %v404
    %v406 = vlaneseq
    %v407 = vshrl.u32 %v406, 7
    %v408 = vsub.s32 %v405, %v407
    %v409 = vrot.slane %v395, %v408
    %v410 = vcombine.high %v386, 0.0
    %v411 = vcombine.high %v393, 0.0
    %v412 = vcombine.high %v402, 0.0
    %v413 = vcombine.high %v409, 0.0
    %v414 = vcombine.low %v323, %v337
    %v415 = vcombine.high %v323, %v337
    %v417 = vunpack.c.l.s4 1983009808
    %v418 = vunpack.c.0.s8 %v417
    %v419 = vlaneseq
    %v420 = vshrl.u32 %v419, 7
    %v421 = vsub.s32 %v418, %v420
    %v422 = vrot.slane %v414, %v421
    %v424 = vunpack.c.l.s4 1983009808
    %v425 = vunpack.c.0.s8 %v424
    %v426 = vlaneseq
    %v427 = vshrl.u32 %v426, 7
    %v428 = vsub.s32 %v425, %v427
    %v429 = vrot.slane %v415, %v428
    %v430 = vcombine.low %v331, %v343
    %v431 = vcombine.high %v331, %v343
    %v433 = vunpack.c.l.s4 1983009808
    %v434 = vunpack.c.0.s8 %v433
    %v435 = vlaneseq
    %v436 = vshrl.u32 %v435, 7
    %v437 = vsub.s32 %v434, %v436
    %v438 = vrot.slane %v430, %v437
    %v440 = vunpack.c.l.s4 1983009808
    %v441 = vunpack.c.0.s8 %v440
    %v442 = vlaneseq
    %v443 = vshrl.u32 %v442, 7
    %v444 = vsub.s32 %v441, %v443
    %v445 = vrot.slane %v431, %v444
    %v446 = vcombine.low %v422, %v438
    %v447 = vcombine.high %v422, %v438
    %v449 = vunpack.c.l.s4 1934713408
    %v450 = vunpack.c.0.s8 %v449
    %v451 = vlaneseq
    %v452 = vshrl.u32 %v451, 7
    %v453 = vsub.s32 %v450, %v452
    %v454 = vrot.slane %v446, %v453
    %v456 = vunpack.c.l.s4 1934713408
    %v457 = vunpack.c.0.s8 %v456
    %v458 = vlaneseq
    %v459 = vshrl.u32 %v458, 7
    %v460 = vsub.s32 %v457, %v459
    %v461 = vrot.slane %v447, %v460
    %v462 = vcombine.low %v429, %v445
    %v463 = vcombine.high %v429, %v445
    %v465 = vunpack.c.l.s4 1934713408
    %v466 = vunpack.c.0.s8 %v465
    %v467 = vlaneseq
    %v468 = vshrl.u32 %v467, 7
    %v469 = vsub.s32 %v466, %v468
    %v470 = vrot.slane %v462, %v469
    %v472 = vunpack.c.l.s4 1934713408
    %v473 = vunpack.c.0.s8 %v472
    %v474 = vlaneseq
    %v475 = vshrl.u32 %v474, 7
    %v476 = vsub.s32 %v473, %v475
    %v477 = vrot.slane %v463, %v476
    %v478 = vcombine.high %v454, 0.0
    %v479 = vcombine.high %v461, 0.0
    %v480 = vcombine.high %v470, 0.0
    %v481 = vcombine.high %v477, 0.0
    %v482 = vcombine.low %v386, %v393
    %v484 = vunpack.c.l.s4 1983009808
    %v485 = vunpack.c.0.s8 %v484
    %v486 = vlaneseq
    %v487 = vshrl.u32 %v486, 7
    %v488 = vsub.s32 %v485, %v487
    %v489 = vrot.slane %v482, %v488
    %v490 = vcombine.low %v410, %v411
    %v492 = vunpack.c.l.s4 1983009808
    %v493 = vunpack.c.0.s8 %v492
    %v494 = vlaneseq
    %v495 = vshrl.u32 %v494, 7
    %v496 = vsub.s32 %v493, %v495
    %v497 = vrot.slane %v490, %v496
    %v498 = vcombine.low %v402, %v409
    %v500 = vunpack.c.l.s4 1983009808
    %v501 = vunpack.c.0.s8 %v500
    %v502 = vlaneseq
    %v503 = vshrl.u32 %v502, 7
    %v504 = vsub.s32 %v501, %v503
    %v505 = vrot.slane %v498, %v504
    %v506 = vcombine.low %v412, %v413
    %v508 = vunpack.c.l.s4 1983009808
    %v509 = vunpack.c.0.s8 %v508
    %v510 = vlaneseq
    %v511 = vshrl.u32 %v510, 7
    %v512 = vsub.s32 %v509, %v511
    %v513 = vrot.slane %v506, %v512
    %v514 = vcombine.low %v489, %v497
    %v515 = vcombine.high %v489, %v497
    %v517 = vunpack.c.l.s4 1934713408
    %v518 = vunpack.c.0.s8 %v517
    %v519 = vlaneseq
    %v520 = vshrl.u32 %v519, 7
    %v521 = vsub.s32 %v518, %v520
    %v522 = vrot.slane %v514, %v521
    %v524 = vunpack.c.l.s4 1934713408
    %v525 = vunpack.c.0.s8 %v524
    %v526 = vlaneseq
    %v527 = vshrl.u32 %v526, 7
    %v528 = vsub.s32 %v525, %v527
    %v529 = vrot.slane %v515, %v528
    %v530 = vcombine.low %v505, %v513
    %v531 = vcombine.high %v505, %v513
    %v533 = vunpack.c.l.s4 1934713408
    %v534 = vunpack.c.0.s8 %v533
    %v535 = vlaneseq
    %v536 = vshrl.u32 %v535, 7
    %v537 = vsub.s32 %v534, %v536
    %v538 = vrot.slane %v530, %v537
    %v540 = vunpack.c.l.s4 1934713408
    %v541 = vunpack.c.0.s8 %v540
    %v542 = vlaneseq
    %v543 = vshrl.u32 %v542, 7
    %v544 = vsub.s32 %v541, %v543
    %v545 = vrot.slane %v531, %v544
    %v546 = vcombine.low %v522, %v538
    %v547 = vcombine.high %v522, %v538
    %v548 = vcombine.low %v529, %v545
    %v549 = vcombine.high %v529, %v545
    %v550 = vcombine.low %v454, %v461
    %v552 = vunpack.c.l.s4 1983009808
    %v553 = vunpack.c.0.s8 %v552
    %v554 = vlaneseq
    %v555 = vshrl.u32 %v554, 7
    %v556 = vsub.s32 %v553, %v555
    %v557 = vrot.slane %v550, %v556
    %v558 = vcombine.low %v478, %v479
    %v560 = vunpack.c.l.s4 1983009808
    %v561 = vunpack.c.0.s8 %v560
    %v562 = vlaneseq
    %v563 = vshrl.u32 %v562, 7
    %v564 = vsub.s32 %v561, %v563
    %v565 = vrot.slane %v558, %v564
    %v566 = vcombine.low %v470, %v477
    %v568 = vunpack.c.l.s4 1983009808
    %v569 = vunpack.c.0.s8 %v568
    %v570 = vlaneseq
    %v571 = vshrl.u32 %v570, 7
    %v572 = vsub.s32 %v569, %v571
    %v573 = vrot.slane %v566, %v572
    %v574 = vcombine.low %v480, %v481
    %v576 = vunpack.c.l.s4 1983009808
    %v577 = vunpack.c.0.s8 %v576
    %v578 = vlaneseq
    %v579 = vshrl.u32 %v578, 7
    %v580 = vsub.s32 %v577, %v579
    %v581 = vrot.slane %v574, %v580
    %v582 = vcombine.low %v557, %v565
    %v583 = vcombine.high %v557, %v565
    %v585 = vunpack.c.l.s4 1934713408
    %v586 = vunpack.c.0.s8 %v585
    %v587 = vlaneseq
    %v588 = vshrl.u32 %v587, 7
    %v589 = vsub.s32 %v586, %v588
    %v590 = vrot.slane %v582, %v589
    %v592 = vunpack.c.l.s4 1934713408
    %v593 = vunpack.c.0.s8 %v592
    %v594 = vlaneseq
    %v595 = vshrl.u32 %v594, 7
    %v596 = vsub.s32 %v593, %v595
    %v597 = vrot.slane %v583, %v596
    %v598 = vcombine.low %v573, %v581
    %v599 = vcombine.high %v573, %v581
    %v601 = vunpack.c.l.s4 1934713408
    %v602 = vunpack.c.0.s8 %v601
    %v603 = vlaneseq
    %v604 = vshrl.u32 %v603, 7
    %v605 = vsub.s32 %v602, %v604
    %v606 = vrot.slane %v598, %v605
    %v608 = vunpack.c.l.s4 1934713408
    %v609 = vunpack.c.0.s8 %v608
    %v610 = vlaneseq
    %v611 = vshrl.u32 %v610, 7
    %v612 = vsub.s32 %v609, %v611
    %v613 = vrot.slane %v599, %v612
    %v614 = vcombine.low %v590, %v606
    %v615 = vcombine.high %v590, %v606
    %v616 = vcombine.low %v597, %v613
    %v617 = vcombine.high %v597, %v613
    %618 = vrot.lane.b32.xlu0 %v318, 96
    %v619 = vpop.permute.xlu0 %618
    %620 = vrot.lane.b32.xlu0 %v323, 96
    %v621 = vpop.permute.xlu0 %620
    %622 = vrot.lane.b32.xlu0 %v329, 96
    %v623 = vpop.permute.xlu0 %622
    %624 = vrot.lane.b32.xlu0 %v331, 96
    %v625 = vpop.permute.xlu0 %624
    %626 = vrot.lane.b32.xlu0 %v335, 96
    %v627 = vpop.permute.xlu0 %626
    %628 = vrot.lane.b32.xlu0 %v337, 96
    %v629 = vpop.permute.xlu0 %628
    %630 = vrot.lane.b32.xlu0 %v341, 96
    %v631 = vpop.permute.xlu0 %630
    %632 = vrot.lane.b32.xlu0 %v343, 96
    %v633 = vpop.permute.xlu0 %632
    %v642 = vcombine.low %v619, %v627
    %v643 = vcombine.high %v619, %v627
    %v645 = vunpack.c.l.s4 1983009808
    %v646 = vunpack.c.0.s8 %v645
    %v647 = vlaneseq
    %v648 = vshrl.u32 %v647, 7
    %v649 = vsub.s32 %v646, %v648
    %v650 = vrot.slane %v642, %v649
    %v652 = vunpack.c.l.s4 1983009808
    %v653 = vunpack.c.0.s8 %v652
    %v654 = vlaneseq
    %v655 = vshrl.u32 %v654, 7
    %v656 = vsub.s32 %v653, %v655
    %v657 = vrot.slane %v643, %v656
    %v658 = vcombine.low %v623, %v631
    %v659 = vcombine.high %v623, %v631
    %v661 = vunpack.c.l.s4 1983009808
    %v662 = vunpack.c.0.s8 %v661
    %v663 = vlaneseq
    %v664 = vshrl.u32 %v663, 7
    %v665 = vsub.s32 %v662, %v664
    %v666 = vrot.slane %v658, %v665
    %v668 = vunpack.c.l.s4 1983009808
    %v669 = vunpack.c.0.s8 %v668
    %v670 = vlaneseq
    %v671 = vshrl.u32 %v670, 7
    %v672 = vsub.s32 %v669, %v671
    %v673 = vrot.slane %v659, %v672
    %v674 = vcombine.low %v650, %v666
    %v675 = vcombine.high %v650, %v666
    %v677 = vunpack.c.l.s4 1934713408
    %v678 = vunpack.c.0.s8 %v677
    %v679 = vlaneseq
    %v680 = vshrl.u32 %v679, 7
    %v681 = vsub.s32 %v678, %v680
    %v682 = vrot.slane %v674, %v681
    %v684 = vunpack.c.l.s4 1934713408
    %v685 = vunpack.c.0.s8 %v684
    %v686 = vlaneseq
    %v687 = vshrl.u32 %v686, 7
    %v688 = vsub.s32 %v685, %v687
    %v689 = vrot.slane %v675, %v688
    %v690 = vcombine.low %v657, %v673
    %v691 = vcombine.high %v657, %v673
    %v693 = vunpack.c.l.s4 1934713408
    %v694 = vunpack.c.0.s8 %v693
    %v695 = vlaneseq
    %v696 = vshrl.u32 %v695, 7
    %v697 = vsub.s32 %v694, %v696
    %v698 = vrot.slane %v690, %v697
    %v700 = vunpack.c.l.s4 1934713408
    %v701 = vunpack.c.0.s8 %v700
    %v702 = vlaneseq
    %v703 = vshrl.u32 %v702, 7
    %v704 = vsub.s32 %v701, %v703
    %v705 = vrot.slane %v691, %v704
    %v706 = vcombine.high %v682, 0.0
    %v707 = vcombine.high %v689, 0.0
    %v708 = vcombine.high %v698, 0.0
    %v709 = vcombine.high %v705, 0.0
    %v710 = vcombine.low %v621, %v629
    %v711 = vcombine.high %v621, %v629
    %v713 = vunpack.c.l.s4 1983009808
    %v714 = vunpack.c.0.s8 %v713
    %v715 = vlaneseq
    %v716 = vshrl.u32 %v715, 7
    %v717 = vsub.s32 %v714, %v716
    %v718 = vrot.slane %v710, %v717
    %v720 = vunpack.c.l.s4 1983009808
    %v721 = vunpack.c.0.s8 %v720
    %v722 = vlaneseq
    %v723 = vshrl.u32 %v722, 7
    %v724 = vsub.s32 %v721, %v723
    %v725 = vrot.slane %v711, %v724
    %v726 = vcombine.low %v625, %v633
    %v727 = vcombine.high %v625, %v633
    %v729 = vunpack.c.l.s4 1983009808
    %v730 = vunpack.c.0.s8 %v729
    %v731 = vlaneseq
    %v732 = vshrl.u32 %v731, 7
    %v733 = vsub.s32 %v730, %v732
    %v734 = vrot.slane %v726, %v733
    %v736 = vunpack.c.l.s4 1983009808
    %v737 = vunpack.c.0.s8 %v736
    %v738 = vlaneseq
    %v739 = vshrl.u32 %v738, 7
    %v740 = vsub.s32 %v737, %v739
    %v741 = vrot.slane %v727, %v740
    %v742 = vcombine.low %v718, %v734
    %v743 = vcombine.high %v718, %v734
    %v745 = vunpack.c.l.s4 1934713408
    %v746 = vunpack.c.0.s8 %v745
    %v747 = vlaneseq
    %v748 = vshrl.u32 %v747, 7
    %v749 = vsub.s32 %v746, %v748
    %v750 = vrot.slane %v742, %v749
    %v752 = vunpack.c.l.s4 1934713408
    %v753 = vunpack.c.0.s8 %v752
    %v754 = vlaneseq
    %v755 = vshrl.u32 %v754, 7
    %v756 = vsub.s32 %v753, %v755
    %v757 = vrot.slane %v743, %v756
    %v758 = vcombine.low %v725, %v741
    %v759 = vcombine.high %v725, %v741
    %v761 = vunpack.c.l.s4 1934713408
    %v762 = vunpack.c.0.s8 %v761
    %v763 = vlaneseq
    %v764 = vshrl.u32 %v763, 7
    %v765 = vsub.s32 %v762, %v764
    %v766 = vrot.slane %v758, %v765
    %v768 = vunpack.c.l.s4 1934713408
    %v769 = vunpack.c.0.s8 %v768
    %v770 = vlaneseq
    %v771 = vshrl.u32 %v770, 7
    %v772 = vsub.s32 %v769, %v771
    %v773 = vrot.slane %v759, %v772
    %v774 = vcombine.high %v750, 0.0
    %v775 = vcombine.high %v757, 0.0
    %v776 = vcombine.high %v766, 0.0
    %v777 = vcombine.high %v773, 0.0
    %v778 = vcombine.low %v682, %v689
    %v780 = vunpack.c.l.s4 1983009808
    %v781 = vunpack.c.0.s8 %v780
    %v782 = vlaneseq
    %v783 = vshrl.u32 %v782, 7
    %v784 = vsub.s32 %v781, %v783
    %v785 = vrot.slane %v778, %v784
    %v786 = vcombine.low %v706, %v707
    %v788 = vunpack.c.l.s4 1983009808
    %v789 = vunpack.c.0.s8 %v788
    %v790 = vlaneseq
    %v791 = vshrl.u32 %v790, 7
    %v792 = vsub.s32 %v789, %v791
    %v793 = vrot.slane %v786, %v792
    %v794 = vcombine.low %v698, %v705
    %v796 = vunpack.c.l.s4 1983009808
    %v797 = vunpack.c.0.s8 %v796
    %v798 = vlaneseq
    %v799 = vshrl.u32 %v798, 7
    %v800 = vsub.s32 %v797, %v799
    %v801 = vrot.slane %v794, %v800
    %v802 = vcombine.low %v708, %v709
    %v804 = vunpack.c.l.s4 1983009808
    %v805 = vunpack.c.0.s8 %v804
    %v806 = vlaneseq
    %v807 = vshrl.u32 %v806, 7
    %v808 = vsub.s32 %v805, %v807
    %v809 = vrot.slane %v802, %v808
    %v810 = vcombine.low %v785, %v793
    %v811 = vcombine.high %v785, %v793
    %v813 = vunpack.c.l.s4 1934713408
    %v814 = vunpack.c.0.s8 %v813
    %v815 = vlaneseq
    %v816 = vshrl.u32 %v815, 7
    %v817 = vsub.s32 %v814, %v816
    %v818 = vrot.slane %v810, %v817
    %v820 = vunpack.c.l.s4 1934713408
    %v821 = vunpack.c.0.s8 %v820
    %v822 = vlaneseq
    %v823 = vshrl.u32 %v822, 7
    %v824 = vsub.s32 %v821, %v823
    %v825 = vrot.slane %v811, %v824
    %v826 = vcombine.low %v801, %v809
    %v827 = vcombine.high %v801, %v809
    %v829 = vunpack.c.l.s4 1934713408
    %v830 = vunpack.c.0.s8 %v829
    %v831 = vlaneseq
    %v832 = vshrl.u32 %v831, 7
    %v833 = vsub.s32 %v830, %v832
    %v834 = vrot.slane %v826, %v833
    %v836 = vunpack.c.l.s4 1934713408
    %v837 = vunpack.c.0.s8 %v836
    %v838 = vlaneseq
    %v839 = vshrl.u32 %v838, 7
    %v840 = vsub.s32 %v837, %v839
    %v841 = vrot.slane %v827, %v840
    %v842 = vcombine.low %v818, %v834
    %v843 = vcombine.high %v818, %v834
    %v844 = vcombine.low %v825, %v841
    %v845 = vcombine.high %v825, %v841
    %v846 = vcombine.low %v750, %v757
    %v848 = vunpack.c.l.s4 1983009808
    %v849 = vunpack.c.0.s8 %v848
    %v850 = vlaneseq
    %v851 = vshrl.u32 %v850, 7
    %v852 = vsub.s32 %v849, %v851
    %v853 = vrot.slane %v846, %v852
    %v854 = vcombine.low %v774, %v775
    %v856 = vunpack.c.l.s4 1983009808
    %v857 = vunpack.c.0.s8 %v856
    %v858 = vlaneseq
    %v859 = vshrl.u32 %v858, 7
    %v860 = vsub.s32 %v857, %v859
    %v861 = vrot.slane %v854, %v860
    %v862 = vcombine.low %v766, %v773
    %v864 = vunpack.c.l.s4 1983009808
    %v865 = vunpack.c.0.s8 %v864
    %v866 = vlaneseq
    %v867 = vshrl.u32 %v866, 7
    %v868 = vsub.s32 %v865, %v867
    %v869 = vrot.slane %v862, %v868
    %v870 = vcombine.low %v776, %v777
    %v872 = vunpack.c.l.s4 1983009808
    %v873 = vunpack.c.0.s8 %v872
    %v874 = vlaneseq
    %v875 = vshrl.u32 %v874, 7
    %v876 = vsub.s32 %v873, %v875
    %v877 = vrot.slane %v870, %v876
    %v878 = vcombine.low %v853, %v861
    %v879 = vcombine.high %v853, %v861
    %v881 = vunpack.c.l.s4 1934713408
    %v882 = vunpack.c.0.s8 %v881
    %v883 = vlaneseq
    %v884 = vshrl.u32 %v883, 7
    %v885 = vsub.s32 %v882, %v884
    %v886 = vrot.slane %v878, %v885
    %v888 = vunpack.c.l.s4 1934713408
    %v889 = vunpack.c.0.s8 %v888
    %v890 = vlaneseq
    %v891 = vshrl.u32 %v890, 7
    %v892 = vsub.s32 %v889, %v891
    %v893 = vrot.slane %v879, %v892
    %v894 = vcombine.low %v869, %v877
    %v895 = vcombine.high %v869, %v877
    %v897 = vunpack.c.l.s4 1934713408
    %v898 = vunpack.c.0.s8 %v897
    %v899 = vlaneseq
    %v900 = vshrl.u32 %v899, 7
    %v901 = vsub.s32 %v898, %v900
    %v902 = vrot.slane %v894, %v901
    %v904 = vunpack.c.l.s4 1934713408
    %v905 = vunpack.c.0.s8 %v904
    %v906 = vlaneseq
    %v907 = vshrl.u32 %v906, 7
    %v908 = vsub.s32 %v905, %v907
    %v909 = vrot.slane %v895, %v908
    %v910 = vcombine.low %v886, %v902
    %v911 = vcombine.high %v886, %v902
    %v912 = vcombine.low %v893, %v909
    %v913 = vcombine.high %v893, %v909
    %914 = vrot.lane.b32.xlu0 %v318, 64
    %v915 = vpop.permute.xlu0 %914
    %916 = vrot.lane.b32.xlu0 %v323, 64
    %v917 = vpop.permute.xlu0 %916
    %918 = vrot.lane.b32.xlu0 %v329, 64
    %v919 = vpop.permute.xlu0 %918
    %920 = vrot.lane.b32.xlu0 %v331, 64
    %v921 = vpop.permute.xlu0 %920
    %922 = vrot.lane.b32.xlu0 %v335, 64
    %v923 = vpop.permute.xlu0 %922
    %924 = vrot.lane.b32.xlu0 %v337, 64
    %v925 = vpop.permute.xlu0 %924
    %926 = vrot.lane.b32.xlu0 %v341, 64
    %v927 = vpop.permute.xlu0 %926
    %928 = vrot.lane.b32.xlu0 %v343, 64
    %v929 = vpop.permute.xlu0 %928
    %v938 = vcombine.low %v915, %v923
    %v939 = vcombine.high %v915, %v923
    %v941 = vunpack.c.l.s4 1983009808
    %v942 = vunpack.c.0.s8 %v941
    %v943 = vlaneseq
    %v944 = vshrl.u32 %v943, 7
    %v945 = vsub.s32 %v942, %v944
    %v946 = vrot.slane %v938, %v945
    %v948 = vunpack.c.l.s4 1983009808
    %v949 = vunpack.c.0.s8 %v948
    %v950 = vlaneseq
    %v951 = vshrl.u32 %v950, 7
    %v952 = vsub.s32 %v949, %v951
    %v953 = vrot.slane %v939, %v952
    %v954 = vcombine.low %v919, %v927
    %v955 = vcombine.high %v919, %v927
    %v957 = vunpack.c.l.s4 1983009808
    %v958 = vunpack.c.0.s8 %v957
    %v959 = vlaneseq
    %v960 = vshrl.u32 %v959, 7
    %v961 = vsub.s32 %v958, %v960
    %v962 = vrot.slane %v954, %v961
    %v964 = vunpack.c.l.s4 1983009808
    %v965 = vunpack.c.0.s8 %v964
    %v966 = vlaneseq
    %v967 = vshrl.u32 %v966, 7
    %v968 = vsub.s32 %v965, %v967
    %v969 = vrot.slane %v955, %v968
    %v970 = vcombine.low %v946, %v962
    %v971 = vcombine.high %v946, %v962
    %v973 = vunpack.c.l.s4 1934713408
    %v974 = vunpack.c.0.s8 %v973
    %v975 = vlaneseq
    %v976 = vshrl.u32 %v975, 7
    %v977 = vsub.s32 %v974, %v976
    %v978 = vrot.slane %v970, %v977
    %v980 = vunpack.c.l.s4 1934713408
    %v981 = vunpack.c.0.s8 %v980
    %v982 = vlaneseq
    %v983 = vshrl.u32 %v982, 7
    %v984 = vsub.s32 %v981, %v983
    %v985 = vrot.slane %v971, %v984
    %v986 = vcombine.low %v953, %v969
    %v987 = vcombine.high %v953, %v969
    %v989 = vunpack.c.l.s4 1934713408
    %v990 = vunpack.c.0.s8 %v989
    %v991 = vlaneseq
    %v992 = vshrl.u32 %v991, 7
    %v993 = vsub.s32 %v990, %v992
    %v994 = vrot.slane %v986, %v993
    %v996 = vunpack.c.l.s4 1934713408
    %v997 = vunpack.c.0.s8 %v996
    %v998 = vlaneseq
    %v999 = vshrl.u32 %v998, 7
    %v1000 = vsub.s32 %v997, %v999
    %v1001 = vrot.slane %v987, %v1000
    %v1002 = vcombine.high %v978, 0.0
    %v1003 = vcombine.high %v985, 0.0
    %v1004 = vcombine.high %v994, 0.0
    %v1005 = vcombine.high %v1001, 0.0
    %v1006 = vcombine.low %v917, %v925
    %v1007 = vcombine.high %v917, %v925
    %v1009 = vunpack.c.l.s4 1983009808
    %v1010 = vunpack.c.0.s8 %v1009
    %v1011 = vlaneseq
    %v1012 = vshrl.u32 %v1011, 7
    %v1013 = vsub.s32 %v1010, %v1012
    %v1014 = vrot.slane %v1006, %v1013
    %v1016 = vunpack.c.l.s4 1983009808
    %v1017 = vunpack.c.0.s8 %v1016
    %v1018 = vlaneseq
    %v1019 = vshrl.u32 %v1018, 7
    %v1020 = vsub.s32 %v1017, %v1019
    %v1021 = vrot.slane %v1007, %v1020
    %v1022 = vcombine.low %v921, %v929
    %v1023 = vcombine.high %v921, %v929
    %v1025 = vunpack.c.l.s4 1983009808
    %v1026 = vunpack.c.0.s8 %v1025
    %v1027 = vlaneseq
    %v1028 = vshrl.u32 %v1027, 7
    %v1029 = vsub.s32 %v1026, %v1028
    %v1030 = vrot.slane %v1022, %v1029
    %v1032 = vunpack.c.l.s4 1983009808
    %v1033 = vunpack.c.0.s8 %v1032
    %v1034 = vlaneseq
    %v1035 = vshrl.u32 %v1034, 7
    %v1036 = vsub.s32 %v1033, %v1035
    %v1037 = vrot.slane %v1023, %v1036
    %v1038 = vcombine.low %v1014, %v1030
    %v1039 = vcombine.high %v1014, %v1030
    %v1041 = vunpack.c.l.s4 1934713408
    %v1042 = vunpack.c.0.s8 %v1041
    %v1043 = vlaneseq
    %v1044 = vshrl.u32 %v1043, 7
    %v1045 = vsub.s32 %v1042, %v1044
    %v1046 = vrot.slane %v1038, %v1045
    %v1048 = vunpack.c.l.s4 1934713408
    %v1049 = vunpack.c.0.s8 %v1048
    %v1050 = vlaneseq
    %v1051 = vshrl.u32 %v1050, 7
    %v1052 = vsub.s32 %v1049, %v1051
    %v1053 = vrot.slane %v1039, %v1052
    %v1054 = vcombine.low %v1021, %v1037
    %v1055 = vcombine.high %v1021, %v1037
    %v1057 = vunpack.c.l.s4 1934713408
    %v1058 = vunpack.c.0.s8 %v1057
    %v1059 = vlaneseq
    %v1060 = vshrl.u32 %v1059, 7
    %v1061 = vsub.s32 %v1058, %v1060
    %v1062 = vrot.slane %v1054, %v1061
    %v1064 = vunpack.c.l.s4 1934713408
    %v1065 = vunpack.c.0.s8 %v1064
    %v1066 = vlaneseq
    %v1067 = vshrl.u32 %v1066, 7
    %v1068 = vsub.s32 %v1065, %v1067
    %v1069 = vrot.slane %v1055, %v1068
    %v1070 = vcombine.high %v1046, 0.0
    %v1071 = vcombine.high %v1053, 0.0
    %v1072 = vcombine.high %v1062, 0.0
    %v1073 = vcombine.high %v1069, 0.0
    %v1074 = vcombine.low %v978, %v985
    %v1076 = vunpack.c.l.s4 1983009808
    %v1077 = vunpack.c.0.s8 %v1076
    %v1078 = vlaneseq
    %v1079 = vshrl.u32 %v1078, 7
    %v1080 = vsub.s32 %v1077, %v1079
    %v1081 = vrot.slane %v1074, %v1080
    %v1082 = vcombine.low %v1002, %v1003
    %v1084 = vunpack.c.l.s4 1983009808
    %v1085 = vunpack.c.0.s8 %v1084
    %v1086 = vlaneseq
    %v1087 = vshrl.u32 %v1086, 7
    %v1088 = vsub.s32 %v1085, %v1087
    %v1089 = vrot.slane %v1082, %v1088
    %v1090 = vcombine.low %v994, %v1001
    %v1092 = vunpack.c.l.s4 1983009808
    %v1093 = vunpack.c.0.s8 %v1092
    %v1094 = vlaneseq
    %v1095 = vshrl.u32 %v1094, 7
    %v1096 = vsub.s32 %v1093, %v1095
    %v1097 = vrot.slane %v1090, %v1096
    %v1098 = vcombine.low %v1004, %v1005
    %v1100 = vunpack.c.l.s4 1983009808
    %v1101 = vunpack.c.0.s8 %v1100
    %v1102 = vlaneseq
    %v1103 = vshrl.u32 %v1102, 7
    %v1104 = vsub.s32 %v1101, %v1103
    %v1105 = vrot.slane %v1098, %v1104
    %v1106 = vcombine.low %v1081, %v1089
    %v1107 = vcombine.high %v1081, %v1089
    %v1109 = vunpack.c.l.s4 1934713408
    %v1110 = vunpack.c.0.s8 %v1109
    %v1111 = vlaneseq
    %v1112 = vshrl.u32 %v1111, 7
    %v1113 = vsub.s32 %v1110, %v1112
    %v1114 = vrot.slane %v1106, %v1113
    %v1116 = vunpack.c.l.s4 1934713408
    %v1117 = vunpack.c.0.s8 %v1116
    %v1118 = vlaneseq
    %v1119 = vshrl.u32 %v1118, 7
    %v1120 = vsub.s32 %v1117, %v1119
    %v1121 = vrot.slane %v1107, %v1120
    %v1122 = vcombine.low %v1097, %v1105
    %v1123 = vcombine.high %v1097, %v1105
    %v1125 = vunpack.c.l.s4 1934713408
    %v1126 = vunpack.c.0.s8 %v1125
    %v1127 = vlaneseq
    %v1128 = vshrl.u32 %v1127, 7
    %v1129 = vsub.s32 %v1126, %v1128
    %v1130 = vrot.slane %v1122, %v1129
    %v1132 = vunpack.c.l.s4 1934713408
    %v1133 = vunpack.c.0.s8 %v1132
    %v1134 = vlaneseq
    %v1135 = vshrl.u32 %v1134, 7
    %v1136 = vsub.s32 %v1133, %v1135
    %v1137 = vrot.slane %v1123, %v1136
    %v1138 = vcombine.low %v1114, %v1130
    %v1139 = vcombine.high %v1114, %v1130
    %v1140 = vcombine.low %v1121, %v1137
    %v1141 = vcombine.high %v1121, %v1137
    %v1142 = vcombine.low %v1046, %v1053
    %v1144 = vunpack.c.l.s4 1983009808
    %v1145 = vunpack.c.0.s8 %v1144
    %v1146 = vlaneseq
    %v1147 = vshrl.u32 %v1146, 7
    %v1148 = vsub.s32 %v1145, %v1147
    %v1149 = vrot.slane %v1142, %v1148
    %v1150 = vcombine.low %v1070, %v1071
    %v1152 = vunpack.c.l.s4 1983009808
    %v1153 = vunpack.c.0.s8 %v1152
    %v1154 = vlaneseq
    %v1155 = vshrl.u32 %v1154, 7
    %v1156 = vsub.s32 %v1153, %v1155
    %v1157 = vrot.slane %v1150, %v1156
    %v1158 = vcombine.low %v1062, %v1069
    %v1160 = vunpack.c.l.s4 1983009808
    %v1161 = vunpack.c.0.s8 %v1160
    %v1162 = vlaneseq
    %v1163 = vshrl.u32 %v1162, 7
    %v1164 = vsub.s32 %v1161, %v1163
    %v1165 = vrot.slane %v1158, %v1164
    %v1166 = vcombine.low %v1072, %v1073
    %v1168 = vunpack.c.l.s4 1983009808
    %v1169 = vunpack.c.0.s8 %v1168
    %v1170 = vlaneseq
    %v1171 = vshrl.u32 %v1170, 7
    %v1172 = vsub.s32 %v1169, %v1171
    %v1173 = vrot.slane %v1166, %v1172
    %v1174 = vcombine.low %v1149, %v1157
    %v1175 = vcombine.high %v1149, %v1157
    %v1177 = vunpack.c.l.s4 1934713408
    %v1178 = vunpack.c.0.s8 %v1177
    %v1179 = vlaneseq
    %v1180 = vshrl.u32 %v1179, 7
    %v1181 = vsub.s32 %v1178, %v1180
    %v1182 = vrot.slane %v1174, %v1181
    %v1184 = vunpack.c.l.s4 1934713408
    %v1185 = vunpack.c.0.s8 %v1184
    %v1186 = vlaneseq
    %v1187 = vshrl.u32 %v1186, 7
    %v1188 = vsub.s32 %v1185, %v1187
    %v1189 = vrot.slane %v1175, %v1188
    %v1190 = vcombine.low %v1165, %v1173
    %v1191 = vcombine.high %v1165, %v1173
    %v1193 = vunpack.c.l.s4 1934713408
    %v1194 = vunpack.c.0.s8 %v1193
    %v1195 = vlaneseq
    %v1196 = vshrl.u32 %v1195, 7
    %v1197 = vsub.s32 %v1194, %v1196
    %v1198 = vrot.slane %v1190, %v1197
    %v1200 = vunpack.c.l.s4 1934713408
    %v1201 = vunpack.c.0.s8 %v1200
    %v1202 = vlaneseq
    %v1203 = vshrl.u32 %v1202, 7
    %v1204 = vsub.s32 %v1201, %v1203
    %v1205 = vrot.slane %v1191, %v1204
    %v1206 = vcombine.low %v1182, %v1198
    %v1207 = vcombine.high %v1182, %v1198
    %v1208 = vcombine.low %v1189, %v1205
    %v1209 = vcombine.high %v1189, %v1205
    %v1210 = vlaneseq
    %v1211 = vshrl.u32 %v1210, 7
    %v1212 = vsub.s32 0, %v1211
    %v1213 = vrot.slane %v202, %v1212
    %v1214 = vlaneseq
    %v1215 = vshrl.u32 %v1214, 7
    %v1216 = vsub.s32 0, %v1215
    %v1217 = vrot.slane %v209, %v1216
    %vm1220 = vcmask 64512
    %v1222 = vsel %vm1220, %v546, 0
    %v1225 = vsel %vm1220, %v842, 0
    %1227 = vmatprep.subr.mxu0 0.0
    %1228 = vmatpush1.xpose.msra.mxu0 %v1225
    %1229 = vmatprep.subr.mxu0 0.0
    %1230 = vmatpush1.xpose.msra.mxu0 0.0
    %1231 = vmatprep.subr.mxu0 0.0
    %1232 = vmatpush1.xpose.msra.mxu0 0.0
    %1233 = vmatprep.subr.mxu0 0.0
    %1234 = vmatpush1.xpose.msra.mxu0 0.0
    %1235 = vmatprep.subr.mxu0 0.0
    %1236 = vmatpush1.xpose.msra.mxu0 0.0
    %1237 = vmatprep.subr.mxu0 0.0
    %1238 = vmatpush1.xpose.msra.mxu0 0.0
    %1239 = vmatprep.subr.mxu0 0.0
    %1240 = vmatpush1.xpose.msra.mxu0 0.0
    %1241 = vmatprep.subr.mxu0 0.0
    %1242 = vmatpush1.xpose.msra.mxu0 0.0
    %1243 = vmatprep.subr.mxu0 0.0
    %1244 = vmatpush1.xpose.msra.mxu0 0.0
    %1245 = vmatprep.subr.mxu0 0.0
    %1246 = vmatpush1.xpose.msra.mxu0 0.0
    %1247 = vmatprep.subr.mxu0 0.0
    %1248 = vmatpush1.xpose.msra.mxu0 0.0
    %1249 = vmatprep.subr.mxu0 0.0
    %1250 = vmatpush1.xpose.msra.mxu0 0.0
    %1251 = vmatprep.subr.mxu0 0.0
    %1252 = vmatpush1.xpose.msra.mxu0 0.0
    %1253 = vmatprep.subr.mxu0 0.0
    %1254 = vmatpush1.xpose.msra.mxu0 0.0
    %1255 = vmatprep.subr.mxu0 0.0
    %1256 = vmatpush1.xpose.msra.mxu0 0.0
    %1257 = vmatprep.subr.mxu0 0.0
    %1258 = vmatpush1.xpose.msra.mxu0 0.0
    %1259 = vmatprep.subr.mxu0 0.0
    %1260 = vmatpush1.xpose.msra.mxu0 0.0
    %1261 = vmatprep.subr.mxu0 0.0
    %1262 = vmatpush1.xpose.msra.mxu0 0.0
    %1263 = vmatprep.subr.mxu0 0.0
    %1264 = vmatpush1.xpose.msra.mxu0 0.0
    %1265 = vmatprep.subr.mxu0 0.0
    %1266 = vmatpush1.xpose.msra.mxu0 0.0
    %1267 = vmatprep.subr.mxu0 0.0
    %1268 = vmatpush1.xpose.msra.mxu0 0.0
    %1269 = vmatprep.subr.mxu0 0.0
    %1270 = vmatpush1.xpose.msra.mxu0 0.0
    %1271 = vmatprep.subr.mxu0 0.0
    %1272 = vmatpush1.xpose.msra.mxu0 0.0
    %1273 = vmatprep.subr.mxu0 0.0
    %1274 = vmatpush1.xpose.msra.mxu0 0.0
    %1275 = vmatprep.subr.mxu0 0.0
    %1276 = vmatpush1.xpose.msra.mxu0 0.0
    %1277 = vmatprep.subr.mxu0 0.0
    %1278 = vmatpush1.xpose.msra.mxu0 0.0
    %1279 = vmatprep.subr.mxu0 0.0
    %1280 = vmatpush1.xpose.msra.mxu0 0.0
    %1281 = vmatprep.subr.mxu0 0.0
    %1282 = vmatpush1.xpose.msra.mxu0 0.0
    %1283 = vmatprep.subr.mxu0 0.0
    %1284 = vmatpush1.xpose.msra.mxu0 0.0
    %1285 = vmatprep.subr.mxu0 0.0
    %1286 = vmatpush1.xpose.msra.mxu0 0.0
    %1287 = vmatprep.subr.mxu0 0.0
    %1288 = vmatpush1.xpose.msra.mxu0 0.0
    %1289 = vmatprep.subr.mxu0 0.0
    %1290 = vmatpush1.xpose.msra.mxu0 0.0
    %1291 = vmatprep.mubr.f32.mxu0 0.0
    %1292 = vmatmul.mubr.f32.gmra.mrb[0].mxu0 %v1222
    %v1293 = vpop.f32.mrb[0].mxu0
    %v1294 = vadd.f32 %v1213, %v1293
    %v1295 = vpop.f32.mrb[0].mxu0
    %1296 = vdwg.mxu0
    %v1298 = vsel %vm1220, %v547, 0
    %v1301 = vsel %vm1220, %v843, 0
    %1303 = vmatprep.subr.mxu0 0.0
    %1304 = vmatpush1.xpose.msra.mxu0 %v1301
    %1305 = vmatprep.subr.mxu0 0.0
    %1306 = vmatpush1.xpose.msra.mxu0 0.0
    %1307 = vmatprep.subr.mxu0 0.0
    %1308 = vmatpush1.xpose.msra.mxu0 0.0
    %1309 = vmatprep.subr.mxu0 0.0
    %1310 = vmatpush1.xpose.msra.mxu0 0.0
    %1311 = vmatprep.subr.mxu0 0.0
    %1312 = vmatpush1.xpose.msra.mxu0 0.0
    %1313 = vmatprep.subr.mxu0 0.0
    %1314 = vmatpush1.xpose.msra.mxu0 0.0
    %1315 = vmatprep.subr.mxu0 0.0
    %1316 = vmatpush1.xpose.msra.mxu0 0.0
    %1317 = vmatprep.subr.mxu0 0.0
    %1318 = vmatpush1.xpose.msra.mxu0 0.0
    %1319 = vmatprep.subr.mxu0 0.0
    %1320 = vmatpush1.xpose.msra.mxu0 0.0
    %1321 = vmatprep.subr.mxu0 0.0
    %1322 = vmatpush1.xpose.msra.mxu0 0.0
    %1323 = vmatprep.subr.mxu0 0.0
    %1324 = vmatpush1.xpose.msra.mxu0 0.0
    %1325 = vmatprep.subr.mxu0 0.0
    %1326 = vmatpush1.xpose.msra.mxu0 0.0
    %1327 = vmatprep.subr.mxu0 0.0
    %1328 = vmatpush1.xpose.msra.mxu0 0.0
    %1329 = vmatprep.subr.mxu0 0.0
    %1330 = vmatpush1.xpose.msra.mxu0 0.0
    %1331 = vmatprep.subr.mxu0 0.0
    %1332 = vmatpush1.xpose.msra.mxu0 0.0
    %1333 = vmatprep.subr.mxu0 0.0
    %1334 = vmatpush1.xpose.msra.mxu0 0.0
    %1335 = vmatprep.subr.mxu0 0.0
    %1336 = vmatpush1.xpose.msra.mxu0 0.0
    %1337 = vmatprep.subr.mxu0 0.0
    %1338 = vmatpush1.xpose.msra.mxu0 0.0
    %1339 = vmatprep.subr.mxu0 0.0
    %1340 = vmatpush1.xpose.msra.mxu0 0.0
    %1341 = vmatprep.subr.mxu0 0.0
    %1342 = vmatpush1.xpose.msra.mxu0 0.0
    %1343 = vmatprep.subr.mxu0 0.0
    %1344 = vmatpush1.xpose.msra.mxu0 0.0
    %1345 = vmatprep.subr.mxu0 0.0
    %1346 = vmatpush1.xpose.msra.mxu0 0.0
    %1347 = vmatprep.subr.mxu0 0.0
    %1348 = vmatpush1.xpose.msra.mxu0 0.0
    %1349 = vmatprep.subr.mxu0 0.0
    %1350 = vmatpush1.xpose.msra.mxu0 0.0
    %1351 = vmatprep.subr.mxu0 0.0
    %1352 = vmatpush1.xpose.msra.mxu0 0.0
    %1353 = vmatprep.subr.mxu0 0.0
    %1354 = vmatpush1.xpose.msra.mxu0 0.0
    %1355 = vmatprep.subr.mxu0 0.0
    %1356 = vmatpush1.xpose.msra.mxu0 0.0
    %1357 = vmatprep.subr.mxu0 0.0
    %1358 = vmatpush1.xpose.msra.mxu0 0.0
    %1359 = vmatprep.subr.mxu0 0.0
    %1360 = vmatpush1.xpose.msra.mxu0 0.0
    %1361 = vmatprep.subr.mxu0 0.0
    %1362 = vmatpush1.xpose.msra.mxu0 0.0
    %1363 = vmatprep.subr.mxu0 0.0
    %1364 = vmatpush1.xpose.msra.mxu0 0.0
    %1365 = vmatprep.subr.mxu0 0.0
    %1366 = vmatpush1.xpose.msra.mxu0 0.0
    %1367 = vmatprep.mubr.f32.mxu0 0.0
    %1368 = vmatmul.mubr.f32.gmra.mrb[0].mxu0 %v1298
    %v1369 = vpop.f32.mrb[0].mxu0
    %v1370 = vadd.f32 %v1213, %v1369
    %v1371 = vpop.f32.mrb[0].mxu0
    %1372 = vdwg.mxu0
    %v1374 = vsel %vm1220, %v548, 0
    %v1377 = vsel %vm1220, %v844, 0
    %1379 = vmatprep.subr.mxu0 0.0
    %1380 = vmatpush1.xpose.msra.mxu0 %v1377
    %1381 = vmatprep.subr.mxu0 0.0
    %1382 = vmatpush1.xpose.msra.mxu0 0.0
    %1383 = vmatprep.subr.mxu0 0.0
    %1384 = vmatpush1.xpose.msra.mxu0 0.0
    %1385 = vmatprep.subr.mxu0 0.0
    %1386 = vmatpush1.xpose.msra.mxu0 0.0
    %1387 = vmatprep.subr.mxu0 0.0
    %1388 = vmatpush1.xpose.msra.mxu0 0.0
    %1389 = vmatprep.subr.mxu0 0.0
    %1390 = vmatpush1.xpose.msra.mxu0 0.0
    %1391 = vmatprep.subr.mxu0 0.0
    %1392 = vmatpush1.xpose.msra.mxu0 0.0
    %1393 = vmatprep.subr.mxu0 0.0
    %1394 = vmatpush1.xpose.msra.mxu0 0.0
    %1395 = vmatprep.subr.mxu0 0.0
    %1396 = vmatpush1.xpose.msra.mxu0 0.0
    %1397 = vmatprep.subr.mxu0 0.0
    %1398 = vmatpush1.xpose.msra.mxu0 0.0
    %1399 = vmatprep.subr.mxu0 0.0
    %1400 = vmatpush1.xpose.msra.mxu0 0.0
    %1401 = vmatprep.subr.mxu0 0.0
    %1402 = vmatpush1.xpose.msra.mxu0 0.0
    %1403 = vmatprep.subr.mxu0 0.0
    %1404 = vmatpush1.xpose.msra.mxu0 0.0
    %1405 = vmatprep.subr.mxu0 0.0
    %1406 = vmatpush1.xpose.msra.mxu0 0.0
    %1407 = vmatprep.subr.mxu0 0.0
    %1408 = vmatpush1.xpose.msra.mxu0 0.0
    %1409 = vmatprep.subr.mxu0 0.0
    %1410 = vmatpush1.xpose.msra.mxu0 0.0
    %1411 = vmatprep.subr.mxu0 0.0
    %1412 = vmatpush1.xpose.msra.mxu0 0.0
    %1413 = vmatprep.subr.mxu0 0.0
    %1414 = vmatpush1.xpose.msra.mxu0 0.0
    %1415 = vmatprep.subr.mxu0 0.0
    %1416 = vmatpush1.xpose.msra.mxu0 0.0
    %1417 = vmatprep.subr.mxu0 0.0
    %1418 = vmatpush1.xpose.msra.mxu0 0.0
    %1419 = vmatprep.subr.mxu0 0.0
    %1420 = vmatpush1.xpose.msra.mxu0 0.0
    %1421 = vmatprep.subr.mxu0 0.0
    %1422 = vmatpush1.xpose.msra.mxu0 0.0
    %1423 = vmatprep.subr.mxu0 0.0
    %1424 = vmatpush1.xpose.msra.mxu0 0.0
    %1425 = vmatprep.subr.mxu0 0.0
    %1426 = vmatpush1.xpose.msra.mxu0 0.0
    %1427 = vmatprep.subr.mxu0 0.0
    %1428 = vmatpush1.xpose.msra.mxu0 0.0
    %1429 = vmatprep.subr.mxu0 0.0
    %1430 = vmatpush1.xpose.msra.mxu0 0.0
    %1431 = vmatprep.subr.mxu0 0.0
    %1432 = vmatpush1.xpose.msra.mxu0 0.0
    %1433 = vmatprep.subr.mxu0 0.0
    %1434 = vmatpush1.xpose.msra.mxu0 0.0
    %1435 = vmatprep.subr.mxu0 0.0
    %1436 = vmatpush1.xpose.msra.mxu0 0.0
    %1437 = vmatprep.subr.mxu0 0.0
    %1438 = vmatpush1.xpose.msra.mxu0 0.0
    %1439 = vmatprep.subr.mxu0 0.0
    %1440 = vmatpush1.xpose.msra.mxu0 0.0
    %1441 = vmatprep.subr.mxu0 0.0
    %1442 = vmatpush1.xpose.msra.mxu0 0.0
    %1443 = vmatprep.mubr.f32.mxu0 0.0
    %1444 = vmatmul.mubr.f32.gmra.mrb[0].mxu0 %v1374
    %v1445 = vpop.f32.mrb[0].mxu0
    %v1446 = vadd.f32 %v1213, %v1445
    %v1447 = vpop.f32.mrb[0].mxu0
    %1448 = vdwg.mxu0
    %v1450 = vsel %vm1220, %v549, 0
    %v1453 = vsel %vm1220, %v845, 0
    %1455 = vmatprep.subr.mxu0 0.0
    %1456 = vmatpush1.xpose.msra.mxu0 %v1453
    %1457 = vmatprep.subr.mxu0 0.0
    %1458 = vmatpush1.xpose.msra.mxu0 0.0
    %1459 = vmatprep.subr.mxu0 0.0
    %1460 = vmatpush1.xpose.msra.mxu0 0.0
    %1461 = vmatprep.subr.mxu0 0.0
    %1462 = vmatpush1.xpose.msra.mxu0 0.0
    %1463 = vmatprep.subr.mxu0 0.0
    %1464 = vmatpush1.xpose.msra.mxu0 0.0
    %1465 = vmatprep.subr.mxu0 0.0
    %1466 = vmatpush1.xpose.msra.mxu0 0.0
    %1467 = vmatprep.subr.mxu0 0.0
    %1468 = vmatpush1.xpose.msra.mxu0 0.0
    %1469 = vmatprep.subr.mxu0 0.0
    %1470 = vmatpush1.xpose.msra.mxu0 0.0
    %1471 = vmatprep.subr.mxu0 0.0
    %1472 = vmatpush1.xpose.msra.mxu0 0.0
    %1473 = vmatprep.subr.mxu0 0.0
    %1474 = vmatpush1.xpose.msra.mxu0 0.0
    %1475 = vmatprep.subr.mxu0 0.0
    %1476 = vmatpush1.xpose.msra.mxu0 0.0
    %1477 = vmatprep.subr.mxu0 0.0
    %1478 = vmatpush1.xpose.msra.mxu0 0.0
    %1479 = vmatprep.subr.mxu0 0.0
    %1480 = vmatpush1.xpose.msra.mxu0 0.0
    %1481 = vmatprep.subr.mxu0 0.0
    %1482 = vmatpush1.xpose.msra.mxu0 0.0
    %1483 = vmatprep.subr.mxu0 0.0
    %1484 = vmatpush1.xpose.msra.mxu0 0.0
    %1485 = vmatprep.subr.mxu0 0.0
    %1486 = vmatpush1.xpose.msra.mxu0 0.0
    %1487 = vmatprep.subr.mxu0 0.0
    %1488 = vmatpush1.xpose.msra.mxu0 0.0
    %1489 = vmatprep.subr.mxu0 0.0
    %1490 = vmatpush1.xpose.msra.mxu0 0.0
    %1491 = vmatprep.subr.mxu0 0.0
    %1492 = vmatpush1.xpose.msra.mxu0 0.0
    %1493 = vmatprep.subr.mxu0 0.0
    %1494 = vmatpush1.xpose.msra.mxu0 0.0
    %1495 = vmatprep.subr.mxu0 0.0
    %1496 = vmatpush1.xpose.msra.mxu0 0.0
    %1497 = vmatprep.subr.mxu0 0.0
    %1498 = vmatpush1.xpose.msra.mxu0 0.0
    %1499 = vmatprep.subr.mxu0 0.0
    %1500 = vmatpush1.xpose.msra.mxu0 0.0
    %1501 = vmatprep.subr.mxu0 0.0
    %1502 = vmatpush1.xpose.msra.mxu0 0.0
    %1503 = vmatprep.subr.mxu0 0.0
    %1504 = vmatpush1.xpose.msra.mxu0 0.0
    %1505 = vmatprep.subr.mxu0 0.0
    %1506 = vmatpush1.xpose.msra.mxu0 0.0
    %1507 = vmatprep.subr.mxu0 0.0
    %1508 = vmatpush1.xpose.msra.mxu0 0.0
    %1509 = vmatprep.subr.mxu0 0.0
    %1510 = vmatpush1.xpose.msra.mxu0 0.0
    %1511 = vmatprep.subr.mxu0 0.0
    %1512 = vmatpush1.xpose.msra.mxu0 0.0
    %1513 = vmatprep.subr.mxu0 0.0
    %1514 = vmatpush1.xpose.msra.mxu0 0.0
    %1515 = vmatprep.subr.mxu0 0.0
    %1516 = vmatpush1.xpose.msra.mxu0 0.0
    %1517 = vmatprep.subr.mxu0 0.0
    %1518 = vmatpush1.xpose.msra.mxu0 0.0
    %1519 = vmatprep.mubr.f32.mxu0 0.0
    %1520 = vmatmul.mubr.f32.gmra.mrb[0].mxu0 %v1450
    %v1521 = vpop.f32.mrb[0].mxu0
    %v1522 = vadd.f32 %v1213, %v1521
    %v1523 = vpop.f32.mrb[0].mxu0
    %1524 = vdwg.mxu0
    %v1526 = vsel %vm1220, %v614, 0
    %v1529 = vsel %vm1220, %v910, 0
    %1531 = vmatprep.subr.mxu0 0.0
    %1532 = vmatpush1.xpose.msra.mxu0 %v1529
    %1533 = vmatprep.subr.mxu0 0.0
    %1534 = vmatpush1.xpose.msra.mxu0 0.0
    %1535 = vmatprep.subr.mxu0 0.0
    %1536 = vmatpush1.xpose.msra.mxu0 0.0
    %1537 = vmatprep.subr.mxu0 0.0
    %1538 = vmatpush1.xpose.msra.mxu0 0.0
    %1539 = vmatprep.subr.mxu0 0.0
    %1540 = vmatpush1.xpose.msra.mxu0 0.0
    %1541 = vmatprep.subr.mxu0 0.0
    %1542 = vmatpush1.xpose.msra.mxu0 0.0
    %1543 = vmatprep.subr.mxu0 0.0
    %1544 = vmatpush1.xpose.msra.mxu0 0.0
    %1545 = vmatprep.subr.mxu0 0.0
    %1546 = vmatpush1.xpose.msra.mxu0 0.0
    %1547 = vmatprep.subr.mxu0 0.0
    %1548 = vmatpush1.xpose.msra.mxu0 0.0
    %1549 = vmatprep.subr.mxu0 0.0
    %1550 = vmatpush1.xpose.msra.mxu0 0.0
    %1551 = vmatprep.subr.mxu0 0.0
    %1552 = vmatpush1.xpose.msra.mxu0 0.0
    %1553 = vmatprep.subr.mxu0 0.0
    %1554 = vmatpush1.xpose.msra.mxu0 0.0
    %1555 = vmatprep.subr.mxu0 0.0
    %1556 = vmatpush1.xpose.msra.mxu0 0.0
    %1557 = vmatprep.subr.mxu0 0.0
    %1558 = vmatpush1.xpose.msra.mxu0 0.0
    %1559 = vmatprep.subr.mxu0 0.0
    %1560 = vmatpush1.xpose.msra.mxu0 0.0
    %1561 = vmatprep.subr.mxu0 0.0
    %1562 = vmatpush1.xpose.msra.mxu0 0.0
    %1563 = vmatprep.subr.mxu0 0.0
    %1564 = vmatpush1.xpose.msra.mxu0 0.0
    %1565 = vmatprep.subr.mxu0 0.0
    %1566 = vmatpush1.xpose.msra.mxu0 0.0
    %1567 = vmatprep.subr.mxu0 0.0
    %1568 = vmatpush1.xpose.msra.mxu0 0.0
    %1569 = vmatprep.subr.mxu0 0.0
    %1570 = vmatpush1.xpose.msra.mxu0 0.0
    %1571 = vmatprep.subr.mxu0 0.0
    %1572 = vmatpush1.xpose.msra.mxu0 0.0
    %1573 = vmatprep.subr.mxu0 0.0
    %1574 = vmatpush1.xpose.msra.mxu0 0.0
    %1575 = vmatprep.subr.mxu0 0.0
    %1576 = vmatpush1.xpose.msra.mxu0 0.0
    %1577 = vmatprep.subr.mxu0 0.0
    %1578 = vmatpush1.xpose.msra.mxu0 0.0
    %1579 = vmatprep.subr.mxu0 0.0
    %1580 = vmatpush1.xpose.msra.mxu0 0.0
    %1581 = vmatprep.subr.mxu0 0.0
    %1582 = vmatpush1.xpose.msra.mxu0 0.0
    %1583 = vmatprep.subr.mxu0 0.0
    %1584 = vmatpush1.xpose.msra.mxu0 0.0
    %1585 = vmatprep.subr.mxu0 0.0
    %1586 = vmatpush1.xpose.msra.mxu0 0.0
    %1587 = vmatprep.subr.mxu0 0.0
    %1588 = vmatpush1.xpose.msra.mxu0 0.0
    %1589 = vmatprep.subr.mxu0 0.0
    %1590 = vmatpush1.xpose.msra.mxu0 0.0
    %1591 = vmatprep.subr.mxu0 0.0
    %1592 = vmatpush1.xpose.msra.mxu0 0.0
    %1593 = vmatprep.subr.mxu0 0.0
    %1594 = vmatpush1.xpose.msra.mxu0 0.0
    %1595 = vmatprep.mubr.f32.mxu0 0.0
    %1596 = vmatmul.mubr.f32.gmra.mrb[0].mxu0 %v1526
    %v1597 = vpop.f32.mrb[0].mxu0
    %v1598 = vadd.f32 %v1217, %v1597
    %v1599 = vpop.f32.mrb[0].mxu0
    %1600 = vdwg.mxu0
    %v1602 = vsel %vm1220, %v615, 0
    %v1605 = vsel %vm1220, %v911, 0
    %1607 = vmatprep.subr.mxu0 0.0
    %1608 = vmatpush1.xpose.msra.mxu0 %v1605
    %1609 = vmatprep.subr.mxu0 0.0
    %1610 = vmatpush1.xpose.msra.mxu0 0.0
    %1611 = vmatprep.subr.mxu0 0.0
    %1612 = vmatpush1.xpose.msra.mxu0 0.0
    %1613 = vmatprep.subr.mxu0 0.0
    %1614 = vmatpush1.xpose.msra.mxu0 0.0
    %1615 = vmatprep.subr.mxu0 0.0
    %1616 = vmatpush1.xpose.msra.mxu0 0.0
    %1617 = vmatprep.subr.mxu0 0.0
    %1618 = vmatpush1.xpose.msra.mxu0 0.0
    %1619 = vmatprep.subr.mxu0 0.0
    %1620 = vmatpush1.xpose.msra.mxu0 0.0
    %1621 = vmatprep.subr.mxu0 0.0
    %1622 = vmatpush1.xpose.msra.mxu0 0.0
    %1623 = vmatprep.subr.mxu0 0.0
    %1624 = vmatpush1.xpose.msra.mxu0 0.0
    %1625 = vmatprep.subr.mxu0 0.0
    %1626 = vmatpush1.xpose.msra.mxu0 0.0
    %1627 = vmatprep.subr.mxu0 0.0
    %1628 = vmatpush1.xpose.msra.mxu0 0.0
    %1629 = vmatprep.subr.mxu0 0.0
    %1630 = vmatpush1.xpose.msra.mxu0 0.0
    %1631 = vmatprep.subr.mxu0 0.0
    %1632 = vmatpush1.xpose.msra.mxu0 0.0
    %1633 = vmatprep.subr.mxu0 0.0
    %1634 = vmatpush1.xpose.msra.mxu0 0.0
    %1635 = vmatprep.subr.mxu0 0.0
    %1636 = vmatpush1.xpose.msra.mxu0 0.0
    %1637 = vmatprep.subr.mxu0 0.0
    %1638 = vmatpush1.xpose.msra.mxu0 0.0
    %1639 = vmatprep.subr.mxu0 0.0
    %1640 = vmatpush1.xpose.msra.mxu0 0.0
    %1641 = vmatprep.subr.mxu0 0.0
    %1642 = vmatpush1.xpose.msra.mxu0 0.0
    %1643 = vmatprep.subr.mxu0 0.0
    %1644 = vmatpush1.xpose.msra.mxu0 0.0
    %1645 = vmatprep.subr.mxu0 0.0
    %1646 = vmatpush1.xpose.msra.mxu0 0.0
    %1647 = vmatprep.subr.mxu0 0.0
    %1648 = vmatpush1.xpose.msra.mxu0 0.0
    %1649 = vmatprep.subr.mxu0 0.0
    %1650 = vmatpush1.xpose.msra.mxu0 0.0
    %1651 = vmatprep.subr.mxu0 0.0
    %1652 = vmatpush1.xpose.msra.mxu0 0.0
    %1653 = vmatprep.subr.mxu0 0.0
    %1654 = vmatpush1.xpose.msra.mxu0 0.0
    %1655 = vmatprep.subr.mxu0 0.0
    %1656 = vmatpush1.xpose.msra.mxu0 0.0
    %1657 = vmatprep.subr.mxu0 0.0
    %1658 = vmatpush1.xpose.msra.mxu0 0.0
    %1659 = vmatprep.subr.mxu0 0.0
    %1660 = vmatpush1.xpose.msra.mxu0 0.0
    %1661 = vmatprep.subr.mxu0 0.0
    %1662 = vmatpush1.xpose.msra.mxu0 0.0
    %1663 = vmatprep.subr.mxu0 0.0
    %1664 = vmatpush1.xpose.msra.mxu0 0.0
    %1665 = vmatprep.subr.mxu0 0.0
    %1666 = vmatpush1.xpose.msra.mxu0 0.0
    %1667 = vmatprep.subr.mxu0 0.0
    %1668 = vmatpush1.xpose.msra.mxu0 0.0
    %1669 = vmatprep.subr.mxu0 0.0
    %1670 = vmatpush1.xpose.msra.mxu0 0.0
    %1671 = vmatprep.mubr.f32.mxu0 0.0
    %1672 = vmatmul.mubr.f32.gmra.mrb[0].mxu0 %v1602
    %v1673 = vpop.f32.mrb[0].mxu0
    %v1674 = vadd.f32 %v1217, %v1673
    %v1675 = vpop.f32.mrb[0].mxu0
    %1676 = vdwg.mxu0
    %v1678 = vsel %vm1220, %v616, 0
    %v1681 = vsel %vm1220, %v912, 0
    %1683 = vmatprep.subr.mxu0 0.0
    %1684 = vmatpush1.xpose.msra.mxu0 %v1681
    %1685 = vmatprep.subr.mxu0 0.0
    %1686 = vmatpush1.xpose.msra.mxu0 0.0
    %1687 = vmatprep.subr.mxu0 0.0
    %1688 = vmatpush1.xpose.msra.mxu0 0.0
    %1689 = vmatprep.subr.mxu0 0.0
    %1690 = vmatpush1.xpose.msra.mxu0 0.0
    %1691 = vmatprep.subr.mxu0 0.0
    %1692 = vmatpush1.xpose.msra.mxu0 0.0
    %1693 = vmatprep.subr.mxu0 0.0
    %1694 = vmatpush1.xpose.msra.mxu0 0.0
    %1695 = vmatprep.subr.mxu0 0.0
    %1696 = vmatpush1.xpose.msra.mxu0 0.0
    %1697 = vmatprep.subr.mxu0 0.0
    %1698 = vmatpush1.xpose.msra.mxu0 0.0
    %1699 = vmatprep.subr.mxu0 0.0
    %1700 = vmatpush1.xpose.msra.mxu0 0.0
    %1701 = vmatprep.subr.mxu0 0.0
    %1702 = vmatpush1.xpose.msra.mxu0 0.0
    %1703 = vmatprep.subr.mxu0 0.0
    %1704 = vmatpush1.xpose.msra.mxu0 0.0
    %1705 = vmatprep.subr.mxu0 0.0
    %1706 = vmatpush1.xpose.msra.mxu0 0.0
    %1707 = vmatprep.subr.mxu0 0.0
    %1708 = vmatpush1.xpose.msra.mxu0 0.0
    %1709 = vmatprep.subr.mxu0 0.0
    %1710 = vmatpush1.xpose.msra.mxu0 0.0
    %1711 = vmatprep.subr.mxu0 0.0
    %1712 = vmatpush1.xpose.msra.mxu0 0.0
    %1713 = vmatprep.subr.mxu0 0.0
    %1714 = vmatpush1.xpose.msra.mxu0 0.0
    %1715 = vmatprep.subr.mxu0 0.0
    %1716 = vmatpush1.xpose.msra.mxu0 0.0
    %1717 = vmatprep.subr.mxu0 0.0
    %1718 = vmatpush1.xpose.msra.mxu0 0.0
    %1719 = vmatprep.subr.mxu0 0.0
    %1720 = vmatpush1.xpose.msra.mxu0 0.0
    %1721 = vmatprep.subr.mxu0 0.0
    %1722 = vmatpush1.xpose.msra.mxu0 0.0
    %1723 = vmatprep.subr.mxu0 0.0
    %1724 = vmatpush1.xpose.msra.mxu0 0.0
    %1725 = vmatprep.subr.mxu0 0.0
    %1726 = vmatpush1.xpose.msra.mxu0 0.0
    %1727 = vmatprep.subr.mxu0 0.0
    %1728 = vmatpush1.xpose.msra.mxu0 0.0
    %1729 = vmatprep.subr.mxu0 0.0
    %1730 = vmatpush1.xpose.msra.mxu0 0.0
    %1731 = vmatprep.subr.mxu0 0.0
    %1732 = vmatpush1.xpose.msra.mxu0 0.0
    %1733 = vmatprep.subr.mxu0 0.0
    %1734 = vmatpush1.xpose.msra.mxu0 0.0
    %1735 = vmatprep.subr.mxu0 0.0
    %1736 = vmatpush1.xpose.msra.mxu0 0.0
    %1737 = vmatprep.subr.mxu0 0.0
    %1738 = vmatpush1.xpose.msra.mxu0 0.0
    %1739 = vmatprep.subr.mxu0 0.0
    %1740 = vmatpush1.xpose.msra.mxu0 0.0
    %1741 = vmatprep.subr.mxu0 0.0
    %1742 = vmatpush1.xpose.msra.mxu0 0.0
    %1743 = vmatprep.subr.mxu0 0.0
    %1744 = vmatpush1.xpose.msra.mxu0 0.0
    %1745 = vmatprep.subr.mxu0 0.0
    %1746 = vmatpush1.xpose.msra.mxu0 0.0
    %1747 = vmatprep.mubr.f32.mxu0 0.0
    %1748 = vmatmul.mubr.f32.gmra.mrb[0].mxu0 %v1678
    %v1749 = vpop.f32.mrb[0].mxu0
    %v1750 = vadd.f32 %v1217, %v1749
    %v1751 = vpop.f32.mrb[0].mxu0
    %1752 = vdwg.mxu0
    %v1754 = vsel %vm1220, %v617, 0
    %v1757 = vsel %vm1220, %v913, 0
    %1759 = vmatprep.subr.mxu0 0.0
    %1760 = vmatpush1.xpose.msra.mxu0 %v1757
    %1761 = vmatprep.subr.mxu0 0.0
    %1762 = vmatpush1.xpose.msra.mxu0 0.0
    %1763 = vmatprep.subr.mxu0 0.0
    %1764 = vmatpush1.xpose.msra.mxu0 0.0
    %1765 = vmatprep.subr.mxu0 0.0
    %1766 = vmatpush1.xpose.msra.mxu0 0.0
    %1767 = vmatprep.subr.mxu0 0.0
    %1768 = vmatpush1.xpose.msra.mxu0 0.0
    %1769 = vmatprep.subr.mxu0 0.0
    %1770 = vmatpush1.xpose.msra.mxu0 0.0
    %1771 = vmatprep.subr.mxu0 0.0
    %1772 = vmatpush1.xpose.msra.mxu0 0.0
    %1773 = vmatprep.subr.mxu0 0.0
    %1774 = vmatpush1.xpose.msra.mxu0 0.0
    %1775 = vmatprep.subr.mxu0 0.0
    %1776 = vmatpush1.xpose.msra.mxu0 0.0
    %1777 = vmatprep.subr.mxu0 0.0
    %1778 = vmatpush1.xpose.msra.mxu0 0.0
    %1779 = vmatprep.subr.mxu0 0.0
    %1780 = vmatpush1.xpose.msra.mxu0 0.0
    %1781 = vmatprep.subr.mxu0 0.0
    %1782 = vmatpush1.xpose.msra.mxu0 0.0
    %1783 = vmatprep.subr.mxu0 0.0
    %1784 = vmatpush1.xpose.msra.mxu0 0.0
    %1785 = vmatprep.subr.mxu0 0.0
    %1786 = vmatpush1.xpose.msra.mxu0 0.0
    %1787 = vmatprep.subr.mxu0 0.0
    %1788 = vmatpush1.xpose.msra.mxu0 0.0
    %1789 = vmatprep.subr.mxu0 0.0
    %1790 = vmatpush1.xpose.msra.mxu0 0.0
    %1791 = vmatprep.subr.mxu0 0.0
    %1792 = vmatpush1.xpose.msra.mxu0 0.0
    %1793 = vmatprep.subr.mxu0 0.0
    %1794 = vmatpush1.xpose.msra.mxu0 0.0
    %1795 = vmatprep.subr.mxu0 0.0
    %1796 = vmatpush1.xpose.msra.mxu0 0.0
    %1797 = vmatprep.subr.mxu0 0.0
    %1798 = vmatpush1.xpose.msra.mxu0 0.0
    %1799 = vmatprep.subr.mxu0 0.0
    %1800 = vmatpush1.xpose.msra.mxu0 0.0
    %1801 = vmatprep.subr.mxu0 0.0
    %1802 = vmatpush1.xpose.msra.mxu0 0.0
    %1803 = vmatprep.subr.mxu0 0.0
    %1804 = vmatpush1.xpose.msra.mxu0 0.0
    %1805 = vmatprep.subr.mxu0 0.0
    %1806 = vmatpush1.xpose.msra.mxu0 0.0
    %1807 = vmatprep.subr.mxu0 0.0
    %1808 = vmatpush1.xpose.msra.mxu0 0.0
    %1809 = vmatprep.subr.mxu0 0.0
    %1810 = vmatpush1.xpose.msra.mxu0 0.0
    %1811 = vmatprep.subr.mxu0 0.0
    %1812 = vmatpush1.xpose.msra.mxu0 0.0
    %1813 = vmatprep.subr.mxu0 0.0
    %1814 = vmatpush1.xpose.msra.mxu0 0.0
    %1815 = vmatprep.subr.mxu0 0.0
    %1816 = vmatpush1.xpose.msra.mxu0 0.0
    %1817 = vmatprep.subr.mxu0 0.0
    %1818 = vmatpush1.xpose.msra.mxu0 0.0
    %1819 = vmatprep.subr.mxu0 0.0
    %1820 = vmatpush1.xpose.msra.mxu0 0.0
    %1821 = vmatprep.subr.mxu0 0.0
    %1822 = vmatpush1.xpose.msra.mxu0 0.0
    %1823 = vmatprep.mubr.f32.mxu0 0.0
    %1824 = vmatmul.mubr.f32.gmra.mrb[0].mxu0 %v1754
    %v1825 = vpop.f32.mrb[0].mxu0
    %v1826 = vadd.f32 %v1217, %v1825
    %v1827 = vpop.f32.mrb[0].mxu0
    %1828 = vdwg.mxu0
    %v1829 = vsel %vm1220, %v1294, -inf
    %1830 = vmax.xlane.f32.xlu0 %v1829
    %v1831 = vpop.xlane.xlu0 %1830
    %v1832 = vsel %vm1220, %v1370, -inf
    %1833 = vmax.xlane.f32.xlu0 %v1832
    %v1834 = vpop.xlane.xlu0 %1833
    %v1835 = vsel %vm1220, %v1446, -inf
    %1836 = vmax.xlane.f32.xlu0 %v1835
    %v1837 = vpop.xlane.xlu0 %1836
    %v1838 = vsel %vm1220, %v1522, -inf
    %1839 = vmax.xlane.f32.xlu0 %v1838
    %v1840 = vpop.xlane.xlu0 %1839
    %v1841 = vsel %vm1220, %v1598, -inf
    %1842 = vmax.xlane.f32.xlu0 %v1841
    %v1843 = vpop.xlane.xlu0 %1842
    %v1844 = vsel %vm1220, %v1674, -inf
    %1845 = vmax.xlane.f32.xlu0 %v1844
    %v1846 = vpop.xlane.xlu0 %1845
    %v1847 = vsel %vm1220, %v1750, -inf
    %1848 = vmax.xlane.f32.xlu0 %v1847
    %v1849 = vpop.xlane.xlu0 %1848
    %v1850 = vsel %vm1220, %v1826, -inf
    %1851 = vmax.xlane.f32.xlu0 %v1850
    %v1852 = vpop.xlane.xlu0 %1851
    %v1853 = vsub.f32 %v1294, %v1831
    %v1854 = vsub.f32 %v1370, %v1834
    %v1855 = vsub.f32 %v1446, %v1837
    %v1856 = vsub.f32 %v1522, %v1840
    %v1857 = vsub.f32 %v1598, %v1843
    %v1858 = vsub.f32 %v1674, %v1846
    %v1859 = vsub.f32 %v1750, %v1849
    %v1860 = vsub.f32 %v1826, %v1852
    %v1861 = vmul.f32 %v1853, 1.442695
    %v1862 = vpow.pop %v1861
    %v1863 = vmul.f32 %v1854, 1.442695
    %v1864 = vpow.pop %v1863
    %v1865 = vmul.f32 %v1855, 1.442695
    %v1866 = vpow.pop %v1865
    %v1867 = vmul.f32 %v1856, 1.442695
    %v1868 = vpow.pop %v1867
    %v1869 = vmul.f32 %v1857, 1.442695
    %v1870 = vpow.pop %v1869
    %v1871 = vmul.f32 %v1858, 1.442695
    %v1872 = vpow.pop %v1871
    %v1873 = vmul.f32 %v1859, 1.442695
    %v1874 = vpow.pop %v1873
    %v1875 = vmul.f32 %v1860, 1.442695
    %v1876 = vpow.pop %v1875
    %v1877 = vsel %vm1220, %v1862, 0.0
    %1878 = vadd.xlane.f32.xlu0 %v1877
    %v1879 = vpop.xlane.xlu0 %1878
    %v1880 = vsel %vm1220, %v1864, 0.0
    %1881 = vadd.xlane.f32.xlu0 %v1880
    %v1882 = vpop.xlane.xlu0 %1881
    %v1883 = vsel %vm1220, %v1866, 0.0
    %1884 = vadd.xlane.f32.xlu0 %v1883
    %v1885 = vpop.xlane.xlu0 %1884
    %v1886 = vsel %vm1220, %v1868, 0.0
    %1887 = vadd.xlane.f32.xlu0 %v1886
    %v1888 = vpop.xlane.xlu0 %1887
    %v1889 = vsel %vm1220, %v1870, 0.0
    %1890 = vadd.xlane.f32.xlu0 %v1889
    %v1891 = vpop.xlane.xlu0 %1890
    %v1892 = vsel %vm1220, %v1872, 0.0
    %1893 = vadd.xlane.f32.xlu0 %v1892
    %v1894 = vpop.xlane.xlu0 %1893
    %v1895 = vsel %vm1220, %v1874, 0.0
    %1896 = vadd.xlane.f32.xlu0 %v1895
    %v1897 = vpop.xlane.xlu0 %1896
    %v1898 = vsel %vm1220, %v1876, 0.0
    %1899 = vadd.xlane.f32.xlu0 %v1898
    %v1900 = vpop.xlane.xlu0 %1899
    %v1901 = vrcp.pop %v1879
    %v1902 = vrcp.pop %v1882
    %v1903 = vrcp.pop %v1885
    %v1904 = vrcp.pop %v1888
    %v1905 = vrcp.pop %v1891
    %v1906 = vrcp.pop %v1894
    %v1907 = vrcp.pop %v1897
    %v1908 = vrcp.pop %v1900
    %v1909 = vmul.f32 %v1862, %v1901
    %v1910 = vmul.f32 %v1864, %v1902
    %v1911 = vmul.f32 %v1866, %v1903
    %v1912 = vmul.f32 %v1868, %v1904
    %v1913 = vmul.f32 %v1870, %v1905
    %v1914 = vmul.f32 %v1872, %v1906
    %v1915 = vmul.f32 %v1874, %v1907
    %v1916 = vmul.f32 %v1876, %v1908
    %v1918 = vsel %vm1220, %v1909, 0
    %1920 = vmatprep.subr.mxu0 0.0
    %1921 = vmatpush1.msra.mxu0 %v1138
    %1922 = vmatprep.subr.mxu0 0.0
    %1923 = vmatpush1.msra.mxu0 0.0
    %1924 = vmatprep.subr.mxu0 0.0
    %1925 = vmatpush1.msra.mxu0 0.0
    %1926 = vmatprep.subr.mxu0 0.0
    %1927 = vmatpush1.msra.mxu0 0.0
    %1928 = vmatprep.subr.mxu0 0.0
    %1929 = vmatpush1.msra.mxu0 0.0
    %1930 = vmatprep.subr.mxu0 0.0
    %1931 = vmatpush1.msra.mxu0 0.0
    %1932 = vmatprep.subr.mxu0 0.0
    %1933 = vmatpush1.msra.mxu0 0.0
    %1934 = vmatprep.subr.mxu0 0.0
    %1935 = vmatpush1.msra.mxu0 0.0
    %1936 = vmatprep.subr.mxu0 0.0
    %1937 = vmatpush1.msra.mxu0 0.0
    %1938 = vmatprep.subr.mxu0 0.0
    %1939 = vmatpush1.msra.mxu0 0.0
    %1940 = vmatprep.subr.mxu0 0.0
    %1941 = vmatpush1.msra.mxu0 0.0
    %1942 = vmatprep.subr.mxu0 0.0
    %1943 = vmatpush1.msra.mxu0 0.0
    %1944 = vmatprep.subr.mxu0 0.0
    %1945 = vmatpush1.msra.mxu0 0.0
    %1946 = vmatprep.subr.mxu0 0.0
    %1947 = vmatpush1.msra.mxu0 0.0
    %1948 = vmatprep.subr.mxu0 0.0
    %1949 = vmatpush1.msra.mxu0 0.0
    %1950 = vmatprep.subr.mxu0 0.0
    %1951 = vmatpush1.msra.mxu0 0.0
    %1952 = vmatprep.subr.mxu0 0.0
    %1953 = vmatpush1.msra.mxu0 0.0
    %1954 = vmatprep.subr.mxu0 0.0
    %1955 = vmatpush1.msra.mxu0 0.0
    %1956 = vmatprep.subr.mxu0 0.0
    %1957 = vmatpush1.msra.mxu0 0.0
    %1958 = vmatprep.subr.mxu0 0.0
    %1959 = vmatpush1.msra.mxu0 0.0
    %1960 = vmatprep.subr.mxu0 0.0
    %1961 = vmatpush1.msra.mxu0 0.0
    %1962 = vmatprep.subr.mxu0 0.0
    %1963 = vmatpush1.msra.mxu0 0.0
    %1964 = vmatprep.subr.mxu0 0.0
    %1965 = vmatpush1.msra.mxu0 0.0
    %1966 = vmatprep.subr.mxu0 0.0
    %1967 = vmatpush1.msra.mxu0 0.0
    %1968 = vmatprep.subr.mxu0 0.0
    %1969 = vmatpush1.msra.mxu0 0.0
    %1970 = vmatprep.subr.mxu0 0.0
    %1971 = vmatpush1.msra.mxu0 0.0
    %1972 = vmatprep.subr.mxu0 0.0
    %1973 = vmatpush1.msra.mxu0 0.0
    %1974 = vmatprep.subr.mxu0 0.0
    %1975 = vmatpush1.msra.mxu0 0.0
    %1976 = vmatprep.subr.mxu0 0.0
    %1977 = vmatpush1.msra.mxu0 0.0
    %1978 = vmatprep.subr.mxu0 0.0
    %1979 = vmatpush1.msra.mxu0 0.0
    %1980 = vmatprep.subr.mxu0 0.0
    %1981 = vmatpush1.msra.mxu0 0.0
    %1982 = vmatprep.subr.mxu0 0.0
    %1983 = vmatpush1.msra.mxu0 0.0
    %1984 = vmatprep.mubr.f32.mxu0 0.0
    %1985 = vmatmul.mubr.f32.gmra.mrb[0].mxu0 %v1918
    %v1986 = vpop.f32.mrb[0].mxu0
    %v1987 = vadd.f32 0.0, %v1986
    %v1988 = vpop.f32.mrb[0].mxu0
    %1989 = vdwg.mxu0
    %v1991 = vsel %vm1220, %v1910, 0
    %1993 = vmatprep.subr.mxu0 0.0
    %1994 = vmatpush1.msra.mxu0 %v1139
    %1995 = vmatprep.subr.mxu0 0.0
    %1996 = vmatpush1.msra.mxu0 0.0
    %1997 = vmatprep.subr.mxu0 0.0
    %1998 = vmatpush1.msra.mxu0 0.0
    %1999 = vmatprep.subr.mxu0 0.0
    %2000 = vmatpush1.msra.mxu0 0.0
    %2001 = vmatprep.subr.mxu0 0.0
    %2002 = vmatpush1.msra.mxu0 0.0
    %2003 = vmatprep.subr.mxu0 0.0
    %2004 = vmatpush1.msra.mxu0 0.0
    %2005 = vmatprep.subr.mxu0 0.0
    %2006 = vmatpush1.msra.mxu0 0.0
    %2007 = vmatprep.subr.mxu0 0.0
    %2008 = vmatpush1.msra.mxu0 0.0
    %2009 = vmatprep.subr.mxu0 0.0
    %2010 = vmatpush1.msra.mxu0 0.0
    %2011 = vmatprep.subr.mxu0 0.0
    %2012 = vmatpush1.msra.mxu0 0.0
    %2013 = vmatprep.subr.mxu0 0.0
    %2014 = vmatpush1.msra.mxu0 0.0
    %2015 = vmatprep.subr.mxu0 0.0
    %2016 = vmatpush1.msra.mxu0 0.0
    %2017 = vmatprep.subr.mxu0 0.0
    %2018 = vmatpush1.msra.mxu0 0.0
    %2019 = vmatprep.subr.mxu0 0.0
    %2020 = vmatpush1.msra.mxu0 0.0
    %2021 = vmatprep.subr.mxu0 0.0
    %2022 = vmatpush1.msra.mxu0 0.0
    %2023 = vmatprep.subr.mxu0 0.0
    %2024 = vmatpush1.msra.mxu0 0.0
    %2025 = vmatprep.subr.mxu0 0.0
    %2026 = vmatpush1.msra.mxu0 0.0
    %2027 = vmatprep.subr.mxu0 0.0
    %2028 = vmatpush1.msra.mxu0 0.0
    %2029 = vmatprep.subr.mxu0 0.0
    %2030 = vmatpush1.msra.mxu0 0.0
    %2031 = vmatprep.subr.mxu0 0.0
    %2032 = vmatpush1.msra.mxu0 0.0
    %2033 = vmatprep.subr.mxu0 0.0
    %2034 = vmatpush1.msra.mxu0 0.0
    %2035 = vmatprep.subr.mxu0 0.0
    %2036 = vmatpush1.msra.mxu0 0.0
    %2037 = vmatprep.subr.mxu0 0.0
    %2038 = vmatpush1.msra.mxu0 0.0
    %2039 = vmatprep.subr.mxu0 0.0
    %2040 = vmatpush1.msra.mxu0 0.0
    %2041 = vmatprep.subr.mxu0 0.0
    %2042 = vmatpush1.msra.mxu0 0.0
    %2043 = vmatprep.subr.mxu0 0.0
    %2044 = vmatpush1.msra.mxu0 0.0
    %2045 = vmatprep.subr.mxu0 0.0
    %2046 = vmatpush1.msra.mxu0 0.0
    %2047 = vmatprep.subr.mxu0 0.0
    %2048 = vmatpush1.msra.mxu0 0.0
    %2049 = vmatprep.subr.mxu0 0.0
    %2050 = vmatpush1.msra.mxu0 0.0
    %2051 = vmatprep.subr.mxu0 0.0
    %2052 = vmatpush1.msra.mxu0 0.0
    %2053 = vmatprep.subr.mxu0 0.0
    %2054 = vmatpush1.msra.mxu0 0.0
    %2055 = vmatprep.subr.mxu0 0.0
    %2056 = vmatpush1.msra.mxu0 0.0
    %2057 = vmatprep.mubr.f32.mxu0 0.0
    %2058 = vmatmul.mubr.f32.gmra.mrb[0].mxu0 %v1991
    %v2059 = vpop.f32.mrb[0].mxu0
    %v2060 = vadd.f32 0.0, %v2059
    %v2061 = vpop.f32.mrb[0].mxu0
    %2062 = vdwg.mxu0
    %v2064 = vsel %vm1220, %v1911, 0
    %2066 = vmatprep.subr.mxu0 0.0
    %2067 = vmatpush1.msra.mxu0 %v1140
    %2068 = vmatprep.subr.mxu0 0.0
    %2069 = vmatpush1.msra.mxu0 0.0
    %2070 = vmatprep.subr.mxu0 0.0
    %2071 = vmatpush1.msra.mxu0 0.0
    %2072 = vmatprep.subr.mxu0 0.0
    %2073 = vmatpush1.msra.mxu0 0.0
    %2074 = vmatprep.subr.mxu0 0.0
    %2075 = vmatpush1.msra.mxu0 0.0
    %2076 = vmatprep.subr.mxu0 0.0
    %2077 = vmatpush1.msra.mxu0 0.0
    %2078 = vmatprep.subr.mxu0 0.0
    %2079 = vmatpush1.msra.mxu0 0.0
    %2080 = vmatprep.subr.mxu0 0.0
    %2081 = vmatpush1.msra.mxu0 0.0
    %2082 = vmatprep.subr.mxu0 0.0
    %2083 = vmatpush1.msra.mxu0 0.0
    %2084 = vmatprep.subr.mxu0 0.0
    %2085 = vmatpush1.msra.mxu0 0.0
    %2086 = vmatprep.subr.mxu0 0.0
    %2087 = vmatpush1.msra.mxu0 0.0
    %2088 = vmatprep.subr.mxu0 0.0
    %2089 = vmatpush1.msra.mxu0 0.0
    %2090 = vmatprep.subr.mxu0 0.0
    %2091 = vmatpush1.msra.mxu0 0.0
    %2092 = vmatprep.subr.mxu0 0.0
    %2093 = vmatpush1.msra.mxu0 0.0
    %2094 = vmatprep.subr.mxu0 0.0
    %2095 = vmatpush1.msra.mxu0 0.0
    %2096 = vmatprep.subr.mxu0 0.0
    %2097 = vmatpush1.msra.mxu0 0.0
    %2098 = vmatprep.subr.mxu0 0.0
    %2099 = vmatpush1.msra.mxu0 0.0
    %2100 = vmatprep.subr.mxu0 0.0
    %2101 = vmatpush1.msra.mxu0 0.0
    %2102 = vmatprep.subr.mxu0 0.0
    %2103 = vmatpush1.msra.mxu0 0.0
    %2104 = vmatprep.subr.mxu0 0.0
    %2105 = vmatpush1.msra.mxu0 0.0
    %2106 = vmatprep.subr.mxu0 0.0
    %2107 = vmatpush1.msra.mxu0 0.0
    %2108 = vmatprep.subr.mxu0 0.0
    %2109 = vmatpush1.msra.mxu0 0.0
    %2110 = vmatprep.subr.mxu0 0.0
    %2111 = vmatpush1.msra.mxu0 0.0
    %2112 = vmatprep.subr.mxu0 0.0
    %2113 = vmatpush1.msra.mxu0 0.0
    %2114 = vmatprep.subr.mxu0 0.0
    %2115 = vmatpush1.msra.mxu0 0.0
    %2116 = vmatprep.subr.mxu0 0.0
    %2117 = vmatpush1.msra.mxu0 0.0
    %2118 = vmatprep.subr.mxu0 0.0
    %2119 = vmatpush1.msra.mxu0 0.0
    %2120 = vmatprep.subr.mxu0 0.0
    %2121 = vmatpush1.msra.mxu0 0.0
    %2122 = vmatprep.subr.mxu0 0.0
    %2123 = vmatpush1.msra.mxu0 0.0
    %2124 = vmatprep.subr.mxu0 0.0
    %2125 = vmatpush1.msra.mxu0 0.0
    %2126 = vmatprep.subr.mxu0 0.0
    %2127 = vmatpush1.msra.mxu0 0.0
    %2128 = vmatprep.subr.mxu0 0.0
    %2129 = vmatpush1.msra.mxu0 0.0
    %2130 = vmatprep.mubr.f32.mxu0 0.0
    %2131 = vmatmul.mubr.f32.gmra.mrb[0].mxu0 %v2064
    %v2132 = vpop.f32.mrb[0].mxu0
    %v2133 = vadd.f32 0.0, %v2132
    %v2134 = vpop.f32.mrb[0].mxu0
    %2135 = vdwg.mxu0
    %v2137 = vsel %vm1220, %v1912, 0
    %2139 = vmatprep.subr.mxu0 0.0
    %2140 = vmatpush1.msra.mxu0 %v1141
    %2141 = vmatprep.subr.mxu0 0.0
    %2142 = vmatpush1.msra.mxu0 0.0
    %2143 = vmatprep.subr.mxu0 0.0
    %2144 = vmatpush1.msra.mxu0 0.0
    %2145 = vmatprep.subr.mxu0 0.0
    %2146 = vmatpush1.msra.mxu0 0.0
    %2147 = vmatprep.subr.mxu0 0.0
    %2148 = vmatpush1.msra.mxu0 0.0
    %2149 = vmatprep.subr.mxu0 0.0
    %2150 = vmatpush1.msra.mxu0 0.0
    %2151 = vmatprep.subr.mxu0 0.0
    %2152 = vmatpush1.msra.mxu0 0.0
    %2153 = vmatprep.subr.mxu0 0.0
    %2154 = vmatpush1.msra.mxu0 0.0
    %2155 = vmatprep.subr.mxu0 0.0
    %2156 = vmatpush1.msra.mxu0 0.0
    %2157 = vmatprep.subr.mxu0 0.0
    %2158 = vmatpush1.msra.mxu0 0.0
    %2159 = vmatprep.subr.mxu0 0.0
    %2160 = vmatpush1.msra.mxu0 0.0
    %2161 = vmatprep.subr.mxu0 0.0
    %2162 = vmatpush1.msra.mxu0 0.0
    %2163 = vmatprep.subr.mxu0 0.0
    %2164 = vmatpush1.msra.mxu0 0.0
    %2165 = vmatprep.subr.mxu0 0.0
    %2166 = vmatpush1.msra.mxu0 0.0
    %2167 = vmatprep.subr.mxu0 0.0
    %2168 = vmatpush1.msra.mxu0 0.0
    %2169 = vmatprep.subr.mxu0 0.0
    %2170 = vmatpush1.msra.mxu0 0.0
    %2171 = vmatprep.subr.mxu0 0.0
    %2172 = vmatpush1.msra.mxu0 0.0
    %2173 = vmatprep.subr.mxu0 0.0
    %2174 = vmatpush1.msra.mxu0 0.0
    %2175 = vmatprep.subr.mxu0 0.0
    %2176 = vmatpush1.msra.mxu0 0.0
    %2177 = vmatprep.subr.mxu0 0.0
    %2178 = vmatpush1.msra.mxu0 0.0
    %2179 = vmatprep.subr.mxu0 0.0
    %2180 = vmatpush1.msra.mxu0 0.0
    %2181 = vmatprep.subr.mxu0 0.0
    %2182 = vmatpush1.msra.mxu0 0.0
    %2183 = vmatprep.subr.mxu0 0.0
    %2184 = vmatpush1.msra.mxu0 0.0
    %2185 = vmatprep.subr.mxu0 0.0
    %2186 = vmatpush1.msra.mxu0 0.0
    %2187 = vmatprep.subr.mxu0 0.0
    %2188 = vmatpush1.msra.mxu0 0.0
    %2189 = vmatprep.subr.mxu0 0.0
    %2190 = vmatpush1.msra.mxu0 0.0
    %2191 = vmatprep.subr.mxu0 0.0
    %2192 = vmatpush1.msra.mxu0 0.0
    %2193 = vmatprep.subr.mxu0 0.0
    %2194 = vmatpush1.msra.mxu0 0.0
    %2195 = vmatprep.subr.mxu0 0.0
    %2196 = vmatpush1.msra.mxu0 0.0
    %2197 = vmatprep.subr.mxu0 0.0
    %2198 = vmatpush1.msra.mxu0 0.0
    %2199 = vmatprep.subr.mxu0 0.0
    %2200 = vmatpush1.msra.mxu0 0.0
    %2201 = vmatprep.subr.mxu0 0.0
    %2202 = vmatpush1.msra.mxu0 0.0
    %2203 = vmatprep.mubr.f32.mxu0 0.0
    %2204 = vmatmul.mubr.f32.gmra.mrb[0].mxu0 %v2137
    %v2205 = vpop.f32.mrb[0].mxu0
    %v2206 = vadd.f32 0.0, %v2205
    %v2207 = vpop.f32.mrb[0].mxu0
    %2208 = vdwg.mxu0
    %v2210 = vsel %vm1220, %v1913, 0
    %2212 = vmatprep.subr.mxu0 0.0
    %2213 = vmatpush1.msra.mxu0 %v1206
    %2214 = vmatprep.subr.mxu0 0.0
    %2215 = vmatpush1.msra.mxu0 0.0
    %2216 = vmatprep.subr.mxu0 0.0
    %2217 = vmatpush1.msra.mxu0 0.0
    %2218 = vmatprep.subr.mxu0 0.0
    %2219 = vmatpush1.msra.mxu0 0.0
    %2220 = vmatprep.subr.mxu0 0.0
    %2221 = vmatpush1.msra.mxu0 0.0
    %2222 = vmatprep.subr.mxu0 0.0
    %2223 = vmatpush1.msra.mxu0 0.0
    %2224 = vmatprep.subr.mxu0 0.0
    %2225 = vmatpush1.msra.mxu0 0.0
    %2226 = vmatprep.subr.mxu0 0.0
    %2227 = vmatpush1.msra.mxu0 0.0
    %2228 = vmatprep.subr.mxu0 0.0
    %2229 = vmatpush1.msra.mxu0 0.0
    %2230 = vmatprep.subr.mxu0 0.0
    %2231 = vmatpush1.msra.mxu0 0.0
    %2232 = vmatprep.subr.mxu0 0.0
    %2233 = vmatpush1.msra.mxu0 0.0
    %2234 = vmatprep.subr.mxu0 0.0
    %2235 = vmatpush1.msra.mxu0 0.0
    %2236 = vmatprep.subr.mxu0 0.0
    %2237 = vmatpush1.msra.mxu0 0.0
    %2238 = vmatprep.subr.mxu0 0.0
    %2239 = vmatpush1.msra.mxu0 0.0
    %2240 = vmatprep.subr.mxu0 0.0
    %2241 = vmatpush1.msra.mxu0 0.0
    %2242 = vmatprep.subr.mxu0 0.0
    %2243 = vmatpush1.msra.mxu0 0.0
    %2244 = vmatprep.subr.mxu0 0.0
    %2245 = vmatpush1.msra.mxu0 0.0
    %2246 = vmatprep.subr.mxu0 0.0
    %2247 = vmatpush1.msra.mxu0 0.0
    %2248 = vmatprep.subr.mxu0 0.0
    %2249 = vmatpush1.msra.mxu0 0.0
    %2250 = vmatprep.subr.mxu0 0.0
    %2251 = vmatpush1.msra.mxu0 0.0
    %2252 = vmatprep.subr.mxu0 0.0
    %2253 = vmatpush1.msra.mxu0 0.0
    %2254 = vmatprep.subr.mxu0 0.0
    %2255 = vmatpush1.msra.mxu0 0.0
    %2256 = vmatprep.subr.mxu0 0.0
    %2257 = vmatpush1.msra.mxu0 0.0
    %2258 = vmatprep.subr.mxu0 0.0
    %2259 = vmatpush1.msra.mxu0 0.0
    %2260 = vmatprep.subr.mxu0 0.0
    %2261 = vmatpush1.msra.mxu0 0.0
    %2262 = vmatprep.subr.mxu0 0.0
    %2263 = vmatpush1.msra.mxu0 0.0
    %2264 = vmatprep.subr.mxu0 0.0
    %2265 = vmatpush1.msra.mxu0 0.0
    %2266 = vmatprep.subr.mxu0 0.0
    %2267 = vmatpush1.msra.mxu0 0.0
    %2268 = vmatprep.subr.mxu0 0.0
    %2269 = vmatpush1.msra.mxu0 0.0
    %2270 = vmatprep.subr.mxu0 0.0
    %2271 = vmatpush1.msra.mxu0 0.0
    %2272 = vmatprep.subr.mxu0 0.0
    %2273 = vmatpush1.msra.mxu0 0.0
    %2274 = vmatprep.subr.mxu0 0.0
    %2275 = vmatpush1.msra.mxu0 0.0
    %2276 = vmatprep.mubr.f32.mxu0 0.0
    %2277 = vmatmul.mubr.f32.gmra.mrb[0].mxu0 %v2210
    %v2278 = vpop.f32.mrb[0].mxu0
    %v2279 = vadd.f32 0.0, %v2278
    %v2280 = vpop.f32.mrb[0].mxu0
    %2281 = vdwg.mxu0
    %v2283 = vsel %vm1220, %v1914, 0
    %2285 = vmatprep.subr.mxu0 0.0
    %2286 = vmatpush1.msra.mxu0 %v1207
    %2287 = vmatprep.subr.mxu0 0.0
    %2288 = vmatpush1.msra.mxu0 0.0
    %2289 = vmatprep.subr.mxu0 0.0
    %2290 = vmatpush1.msra.mxu0 0.0
    %2291 = vmatprep.subr.mxu0 0.0
    %2292 = vmatpush1.msra.mxu0 0.0
    %2293 = vmatprep.subr.mxu0 0.0
    %2294 = vmatpush1.msra.mxu0 0.0
    %2295 = vmatprep.subr.mxu0 0.0
    %2296 = vmatpush1.msra.mxu0 0.0
    %2297 = vmatprep.subr.mxu0 0.0
    %2298 = vmatpush1.msra.mxu0 0.0
    %2299 = vmatprep.subr.mxu0 0.0
    %2300 = vmatpush1.msra.mxu0 0.0
    %2301 = vmatprep.subr.mxu0 0.0
    %2302 = vmatpush1.msra.mxu0 0.0
    %2303 = vmatprep.subr.mxu0 0.0
    %2304 = vmatpush1.msra.mxu0 0.0
    %2305 = vmatprep.subr.mxu0 0.0
    %2306 = vmatpush1.msra.mxu0 0.0
    %2307 = vmatprep.subr.mxu0 0.0
    %2308 = vmatpush1.msra.mxu0 0.0
    %2309 = vmatprep.subr.mxu0 0.0
    %2310 = vmatpush1.msra.mxu0 0.0
    %2311 = vmatprep.subr.mxu0 0.0
    %2312 = vmatpush1.msra.mxu0 0.0
    %2313 = vmatprep.subr.mxu0 0.0
    %2314 = vmatpush1.msra.mxu0 0.0
    %2315 = vmatprep.subr.mxu0 0.0
    %2316 = vmatpush1.msra.mxu0 0.0
    %2317 = vmatprep.subr.mxu0 0.0
    %2318 = vmatpush1.msra.mxu0 0.0
    %2319 = vmatprep.subr.mxu0 0.0
    %2320 = vmatpush1.msra.mxu0 0.0
    %2321 = vmatprep.subr.mxu0 0.0
    %2322 = vmatpush1.msra.mxu0 0.0
    %2323 = vmatprep.subr.mxu0 0.0
    %2324 = vmatpush1.msra.mxu0 0.0
    %2325 = vmatprep.subr.mxu0 0.0
    %2326 = vmatpush1.msra.mxu0 0.0
    %2327 = vmatprep.subr.mxu0 0.0
    %2328 = vmatpush1.msra.mxu0 0.0
    %2329 = vmatprep.subr.mxu0 0.0
    %2330 = vmatpush1.msra.mxu0 0.0
    %2331 = vmatprep.subr.mxu0 0.0
    %2332 = vmatpush1.msra.mxu0 0.0
    %2333 = vmatprep.subr.mxu0 0.0
    %2334 = vmatpush1.msra.mxu0 0.0
    %2335 = vmatprep.subr.mxu0 0.0
    %2336 = vmatpush1.msra.mxu0 0.0
    %2337 = vmatprep.subr.mxu0 0.0
    %2338 = vmatpush1.msra.mxu0 0.0
    %2339 = vmatprep.subr.mxu0 0.0
    %2340 = vmatpush1.msra.mxu0 0.0
    %2341 = vmatprep.subr.mxu0 0.0
    %2342 = vmatpush1.msra.mxu0 0.0
    %2343 = vmatprep.subr.mxu0 0.0
    %2344 = vmatpush1.msra.mxu0 0.0
    %2345 = vmatprep.subr.mxu0 0.0
    %2346 = vmatpush1.msra.mxu0 0.0
    %2347 = vmatprep.subr.mxu0 0.0
    %2348 = vmatpush1.msra.mxu0 0.0
    %2349 = vmatprep.mubr.f32.mxu0 0.0
    %2350 = vmatmul.mubr.f32.gmra.mrb[0].mxu0 %v2283
    %v2351 = vpop.f32.mrb[0].mxu0
    %v2352 = vadd.f32 0.0, %v2351
    %v2353 = vpop.f32.mrb[0].mxu0
    %2354 = vdwg.mxu0
    %v2356 = vsel %vm1220, %v1915, 0
    %2358 = vmatprep.subr.mxu0 0.0
    %2359 = vmatpush1.msra.mxu0 %v1208
    %2360 = vmatprep.subr.mxu0 0.0
    %2361 = vmatpush1.msra.mxu0 0.0
    %2362 = vmatprep.subr.mxu0 0.0
    %2363 = vmatpush1.msra.mxu0 0.0
    %2364 = vmatprep.subr.mxu0 0.0
    %2365 = vmatpush1.msra.mxu0 0.0
    %2366 = vmatprep.subr.mxu0 0.0
    %2367 = vmatpush1.msra.mxu0 0.0
    %2368 = vmatprep.subr.mxu0 0.0
    %2369 = vmatpush1.msra.mxu0 0.0
    %2370 = vmatprep.subr.mxu0 0.0
    %2371 = vmatpush1.msra.mxu0 0.0
    %2372 = vmatprep.subr.mxu0 0.0
    %2373 = vmatpush1.msra.mxu0 0.0
    %2374 = vmatprep.subr.mxu0 0.0
    %2375 = vmatpush1.msra.mxu0 0.0
    %2376 = vmatprep.subr.mxu0 0.0
    %2377 = vmatpush1.msra.mxu0 0.0
    %2378 = vmatprep.subr.mxu0 0.0
    %2379 = vmatpush1.msra.mxu0 0.0
    %2380 = vmatprep.subr.mxu0 0.0
    %2381 = vmatpush1.msra.mxu0 0.0
    %2382 = vmatprep.subr.mxu0 0.0
    %2383 = vmatpush1.msra.mxu0 0.0
    %2384 = vmatprep.subr.mxu0 0.0
    %2385 = vmatpush1.msra.mxu0 0.0
    %2386 = vmatprep.subr.mxu0 0.0
    %2387 = vmatpush1.msra.mxu0 0.0
    %2388 = vmatprep.subr.mxu0 0.0
    %2389 = vmatpush1.msra.mxu0 0.0
    %2390 = vmatprep.subr.mxu0 0.0
    %2391 = vmatpush1.msra.mxu0 0.0
    %2392 = vmatprep.subr.mxu0 0.0
    %2393 = vmatpush1.msra.mxu0 0.0
    %2394 = vmatprep.subr.mxu0 0.0
    %2395 = vmatpush1.msra.mxu0 0.0
    %2396 = vmatprep.subr.mxu0 0.0
    %2397 = vmatpush1.msra.mxu0 0.0
    %2398 = vmatprep.subr.mxu0 0.0
    %2399 = vmatpush1.msra.mxu0 0.0
    %2400 = vmatprep.subr.mxu0 0.0
    %2401 = vmatpush1.msra.mxu0 0.0
    %2402 = vmatprep.subr.mxu0 0.0
    %2403 = vmatpush1.msra.mxu0 0.0
    %2404 = vmatprep.subr.mxu0 0.0
    %2405 = vmatpush1.msra.mxu0 0.0
    %2406 = vmatprep.subr.mxu0 0.0
    %2407 = vmatpush1.msra.mxu0 0.0
    %2408 = vmatprep.subr.mxu0 0.0
    %2409 = vmatpush1.msra.mxu0 0.0
    %2410 = vmatprep.subr.mxu0 0.0
    %2411 = vmatpush1.msra.mxu0 0.0
    %2412 = vmatprep.subr.mxu0 0.0
    %2413 = vmatpush1.msra.mxu0 0.0
    %2414 = vmatprep.subr.mxu0 0.0
    %2415 = vmatpush1.msra.mxu0 0.0
    %2416 = vmatprep.subr.mxu0 0.0
    %2417 = vmatpush1.msra.mxu0 0.0
    %2418 = vmatprep.subr.mxu0 0.0
    %2419 = vmatpush1.msra.mxu0 0.0
    %2420 = vmatprep.subr.mxu0 0.0
    %2421 = vmatpush1.msra.mxu0 0.0
    %2422 = vmatprep.mubr.f32.mxu0 0.0
    %2423 = vmatmul.mubr.f32.gmra.mrb[0].mxu0 %v2356
    %v2424 = vpop.f32.mrb[0].mxu0
    %v2425 = vadd.f32 0.0, %v2424
    %v2426 = vpop.f32.mrb[0].mxu0
    %2427 = vdwg.mxu0
    %v2429 = vsel %vm1220, %v1916, 0
    %2431 = vmatprep.subr.mxu0 0.0
    %2432 = vmatpush1.msra.mxu0 %v1209
    %2433 = vmatprep.subr.mxu0 0.0
    %2434 = vmatpush1.msra.mxu0 0.0
    %2435 = vmatprep.subr.mxu0 0.0
    %2436 = vmatpush1.msra.mxu0 0.0
    %2437 = vmatprep.subr.mxu0 0.0
    %2438 = vmatpush1.msra.mxu0 0.0
    %2439 = vmatprep.subr.mxu0 0.0
    %2440 = vmatpush1.msra.mxu0 0.0
    %2441 = vmatprep.subr.mxu0 0.0
    %2442 = vmatpush1.msra.mxu0 0.0
    %2443 = vmatprep.subr.mxu0 0.0
    %2444 = vmatpush1.msra.mxu0 0.0
    %2445 = vmatprep.subr.mxu0 0.0
    %2446 = vmatpush1.msra.mxu0 0.0
    %2447 = vmatprep.subr.mxu0 0.0
    %2448 = vmatpush1.msra.mxu0 0.0
    %2449 = vmatprep.subr.mxu0 0.0
    %2450 = vmatpush1.msra.mxu0 0.0
    %2451 = vmatprep.subr.mxu0 0.0
    %2452 = vmatpush1.msra.mxu0 0.0
    %2453 = vmatprep.subr.mxu0 0.0
    %2454 = vmatpush1.msra.mxu0 0.0
    %2455 = vmatprep.subr.mxu0 0.0
    %2456 = vmatpush1.msra.mxu0 0.0
    %2457 = vmatprep.subr.mxu0 0.0
    %2458 = vmatpush1.msra.mxu0 0.0
    %2459 = vmatprep.subr.mxu0 0.0
    %2460 = vmatpush1.msra.mxu0 0.0
    %2461 = vmatprep.subr.mxu0 0.0
    %2462 = vmatpush1.msra.mxu0 0.0
    %2463 = vmatprep.subr.mxu0 0.0
    %2464 = vmatpush1.msra.mxu0 0.0
    %2465 = vmatprep.subr.mxu0 0.0
    %2466 = vmatpush1.msra.mxu0 0.0
    %2467 = vmatprep.subr.mxu0 0.0
    %2468 = vmatpush1.msra.mxu0 0.0
    %2469 = vmatprep.subr.mxu0 0.0
    %2470 = vmatpush1.msra.mxu0 0.0
    %2471 = vmatprep.subr.mxu0 0.0
    %2472 = vmatpush1.msra.mxu0 0.0
    %2473 = vmatprep.subr.mxu0 0.0
    %2474 = vmatpush1.msra.mxu0 0.0
    %2475 = vmatprep.subr.mxu0 0.0
    %2476 = vmatpush1.msra.mxu0 0.0
    %2477 = vmatprep.subr.mxu0 0.0
    %2478 = vmatpush1.msra.mxu0 0.0
    %2479 = vmatprep.subr.mxu0 0.0
    %2480 = vmatpush1.msra.mxu0 0.0
    %2481 = vmatprep.subr.mxu0 0.0
    %2482 = vmatpush1.msra.mxu0 0.0
    %2483 = vmatprep.subr.mxu0 0.0
    %2484 = vmatpush1.msra.mxu0 0.0
    %2485 = vmatprep.subr.mxu0 0.0
    %2486 = vmatpush1.msra.mxu0 0.0
    %2487 = vmatprep.subr.mxu0 0.0
    %2488 = vmatpush1.msra.mxu0 0.0
    %2489 = vmatprep.subr.mxu0 0.0
    %2490 = vmatpush1.msra.mxu0 0.0
    %2491 = vmatprep.subr.mxu0 0.0
    %2492 = vmatpush1.msra.mxu0 0.0
    %2493 = vmatprep.subr.mxu0 0.0
    %2494 = vmatpush1.msra.mxu0 0.0
    %2495 = vmatprep.mubr.f32.mxu0 0.0
    %2496 = vmatmul.mubr.f32.gmra.mrb[0].mxu0 %v2429
    %v2497 = vpop.f32.mrb[0].mxu0
    %v2498 = vadd.f32 0.0, %v2497
    %v2499 = vpop.f32.mrb[0].mxu0
    %2500 = vdwg.mxu0
    %v2501 = vcombine.low %v1987, %v2133
    %v2502 = vcombine.high %v1987, %v2133
    %v2504 = vunpack.c.l.s4 1983009808
    %v2505 = vunpack.c.0.s8 %v2504
    %v2506 = vlaneseq
    %v2507 = vshrl.u32 %v2506, 7
    %v2508 = vsub.s32 %v2505, %v2507
    %v2509 = vrot.slane %v2501, %v2508
    %v2511 = vunpack.c.l.s4 1983009808
    %v2512 = vunpack.c.0.s8 %v2511
    %v2513 = vlaneseq
    %v2514 = vshrl.u32 %v2513, 7
    %v2515 = vsub.s32 %v2512, %v2514
    %v2516 = vrot.slane %v2502, %v2515
    %v2517 = vcombine.low %v2060, %v2206
    %v2518 = vcombine.high %v2060, %v2206
    %v2520 = vunpack.c.l.s4 1983009808
    %v2521 = vunpack.c.0.s8 %v2520
    %v2522 = vlaneseq
    %v2523 = vshrl.u32 %v2522, 7
    %v2524 = vsub.s32 %v2521, %v2523
    %v2525 = vrot.slane %v2517, %v2524
    %v2527 = vunpack.c.l.s4 1983009808
    %v2528 = vunpack.c.0.s8 %v2527
    %v2529 = vlaneseq
    %v2530 = vshrl.u32 %v2529, 7
    %v2531 = vsub.s32 %v2528, %v2530
    %v2532 = vrot.slane %v2518, %v2531
    %v2533 = vcombine.low %v2509, %v2525
    %v2534 = vcombine.high %v2509, %v2525
    %v2536 = vunpack.c.l.s4 1934713408
    %v2537 = vunpack.c.0.s8 %v2536
    %v2538 = vlaneseq
    %v2539 = vshrl.u32 %v2538, 7
    %v2540 = vsub.s32 %v2537, %v2539
    %v2541 = vrot.slane %v2533, %v2540
    %v2543 = vunpack.c.l.s4 1934713408
    %v2544 = vunpack.c.0.s8 %v2543
    %v2545 = vlaneseq
    %v2546 = vshrl.u32 %v2545, 7
    %v2547 = vsub.s32 %v2544, %v2546
    %v2548 = vrot.slane %v2534, %v2547
    %v2549 = vcombine.low %v2516, %v2532
    %v2550 = vcombine.high %v2516, %v2532
    %v2552 = vunpack.c.l.s4 1934713408
    %v2553 = vunpack.c.0.s8 %v2552
    %v2554 = vlaneseq
    %v2555 = vshrl.u32 %v2554, 7
    %v2556 = vsub.s32 %v2553, %v2555
    %v2557 = vrot.slane %v2549, %v2556
    %v2559 = vunpack.c.l.s4 1934713408
    %v2560 = vunpack.c.0.s8 %v2559
    %v2561 = vlaneseq
    %v2562 = vshrl.u32 %v2561, 7
    %v2563 = vsub.s32 %v2560, %v2562
    %v2564 = vrot.slane %v2550, %v2563
    %v2565 = vcombine.high %v2541, 0.0
    %v2566 = vcombine.high %v2548, 0.0
    %v2567 = vcombine.high %v2557, 0.0
    %v2568 = vcombine.high %v2564, 0.0
    %v2569 = vcombine.low %v2279, %v2425
    %v2570 = vcombine.high %v2279, %v2425
    %v2572 = vunpack.c.l.s4 1983009808
    %v2573 = vunpack.c.0.s8 %v2572
    %v2574 = vlaneseq
    %v2575 = vshrl.u32 %v2574, 7
    %v2576 = vsub.s32 %v2573, %v2575
    %v2577 = vrot.slane %v2569, %v2576
    %v2579 = vunpack.c.l.s4 1983009808
    %v2580 = vunpack.c.0.s8 %v2579
    %v2581 = vlaneseq
    %v2582 = vshrl.u32 %v2581, 7
    %v2583 = vsub.s32 %v2580, %v2582
    %v2584 = vrot.slane %v2570, %v2583
    %v2585 = vcombine.low %v2352, %v2498
    %v2586 = vcombine.high %v2352, %v2498
    %v2588 = vunpack.c.l.s4 1983009808
    %v2589 = vunpack.c.0.s8 %v2588
    %v2590 = vlaneseq
    %v2591 = vshrl.u32 %v2590, 7
    %v2592 = vsub.s32 %v2589, %v2591
    %v2593 = vrot.slane %v2585, %v2592
    %v2595 = vunpack.c.l.s4 1983009808
    %v2596 = vunpack.c.0.s8 %v2595
    %v2597 = vlaneseq
    %v2598 = vshrl.u32 %v2597, 7
    %v2599 = vsub.s32 %v2596, %v2598
    %v2600 = vrot.slane %v2586, %v2599
    %v2601 = vcombine.low %v2577, %v2593
    %v2602 = vcombine.high %v2577, %v2593
    %v2604 = vunpack.c.l.s4 1934713408
    %v2605 = vunpack.c.0.s8 %v2604
    %v2606 = vlaneseq
    %v2607 = vshrl.u32 %v2606, 7
    %v2608 = vsub.s32 %v2605, %v2607
    %v2609 = vrot.slane %v2601, %v2608
    %v2611 = vunpack.c.l.s4 1934713408
    %v2612 = vunpack.c.0.s8 %v2611
    %v2613 = vlaneseq
    %v2614 = vshrl.u32 %v2613, 7
    %v2615 = vsub.s32 %v2612, %v2614
    %v2616 = vrot.slane %v2602, %v2615
    %v2617 = vcombine.low %v2584, %v2600
    %v2618 = vcombine.high %v2584, %v2600
    %v2620 = vunpack.c.l.s4 1934713408
    %v2621 = vunpack.c.0.s8 %v2620
    %v2622 = vlaneseq
    %v2623 = vshrl.u32 %v2622, 7
    %v2624 = vsub.s32 %v2621, %v2623
    %v2625 = vrot.slane %v2617, %v2624
    %v2627 = vunpack.c.l.s4 1934713408
    %v2628 = vunpack.c.0.s8 %v2627
    %v2629 = vlaneseq
    %v2630 = vshrl.u32 %v2629, 7
    %v2631 = vsub.s32 %v2628, %v2630
    %v2632 = vrot.slane %v2618, %v2631
    %v2633 = vcombine.high %v2609, 0.0
    %v2634 = vcombine.high %v2616, 0.0
    %v2635 = vcombine.high %v2625, 0.0
    %v2636 = vcombine.high %v2632, 0.0
    %v2637 = vcombine.low %v2541, %v2548
    %v2639 = vunpack.c.l.s4 1983009808
    %v2640 = vunpack.c.0.s8 %v2639
    %v2641 = vlaneseq
    %v2642 = vshrl.u32 %v2641, 7
    %v2643 = vsub.s32 %v2640, %v2642
    %v2644 = vrot.slane %v2637, %v2643
    %v2645 = vcombine.low %v2565, %v2566
    %v2647 = vunpack.c.l.s4 1983009808
    %v2648 = vunpack.c.0.s8 %v2647
    %v2649 = vlaneseq
    %v2650 = vshrl.u32 %v2649, 7
    %v2651 = vsub.s32 %v2648, %v2650
    %v2652 = vrot.slane %v2645, %v2651
    %v2653 = vcombine.low %v2557, %v2564
    %v2655 = vunpack.c.l.s4 1983009808
    %v2656 = vunpack.c.0.s8 %v2655
    %v2657 = vlaneseq
    %v2658 = vshrl.u32 %v2657, 7
    %v2659 = vsub.s32 %v2656, %v2658
    %v2660 = vrot.slane %v2653, %v2659
    %v2661 = vcombine.low %v2567, %v2568
    %v2663 = vunpack.c.l.s4 1983009808
    %v2664 = vunpack.c.0.s8 %v2663
    %v2665 = vlaneseq
    %v2666 = vshrl.u32 %v2665, 7
    %v2667 = vsub.s32 %v2664, %v2666
    %v2668 = vrot.slane %v2661, %v2667
    %v2669 = vcombine.low %v2644, %v2652
    %v2670 = vcombine.high %v2644, %v2652
    %v2672 = vunpack.c.l.s4 1934713408
    %v2673 = vunpack.c.0.s8 %v2672
    %v2674 = vlaneseq
    %v2675 = vshrl.u32 %v2674, 7
    %v2676 = vsub.s32 %v2673, %v2675
    %v2677 = vrot.slane %v2669, %v2676
    %v2679 = vunpack.c.l.s4 1934713408
    %v2680 = vunpack.c.0.s8 %v2679
    %v2681 = vlaneseq
    %v2682 = vshrl.u32 %v2681, 7
    %v2683 = vsub.s32 %v2680, %v2682
    %v2684 = vrot.slane %v2670, %v2683
    %v2685 = vcombine.low %v2660, %v2668
    %v2686 = vcombine.high %v2660, %v2668
    %v2688 = vunpack.c.l.s4 1934713408
    %v2689 = vunpack.c.0.s8 %v2688
    %v2690 = vlaneseq
    %v2691 = vshrl.u32 %v2690, 7
    %v2692 = vsub.s32 %v2689, %v2691
    %v2693 = vrot.slane %v2685, %v2692
    %v2695 = vunpack.c.l.s4 1934713408
    %v2696 = vunpack.c.0.s8 %v2695
    %v2697 = vlaneseq
    %v2698 = vshrl.u32 %v2697, 7
    %v2699 = vsub.s32 %v2696, %v2698
    %v2700 = vrot.slane %v2686, %v2699
    %v2701 = vcombine.low %v2677, %v2693
    %v2702 = vcombine.high %v2677, %v2693
    %v2703 = vcombine.low %v2684, %v2700
    %v2704 = vcombine.high %v2684, %v2700
    %v2705 = vcombine.low %v2609, %v2616
    %v2707 = vunpack.c.l.s4 1983009808
    %v2708 = vunpack.c.0.s8 %v2707
    %v2709 = vlaneseq
    %v2710 = vshrl.u32 %v2709, 7
    %v2711 = vsub.s32 %v2708, %v2710
    %v2712 = vrot.slane %v2705, %v2711
    %v2713 = vcombine.low %v2633, %v2634
    %v2715 = vunpack.c.l.s4 1983009808
    %v2716 = vunpack.c.0.s8 %v2715
    %v2717 = vlaneseq
    %v2718 = vshrl.u32 %v2717, 7
    %v2719 = vsub.s32 %v2716, %v2718
    %v2720 = vrot.slane %v2713, %v2719
    %v2721 = vcombine.low %v2625, %v2632
    %v2723 = vunpack.c.l.s4 1983009808
    %v2724 = vunpack.c.0.s8 %v2723
    %v2725 = vlaneseq
    %v2726 = vshrl.u32 %v2725, 7
    %v2727 = vsub.s32 %v2724, %v2726
    %v2728 = vrot.slane %v2721, %v2727
    %v2729 = vcombine.low %v2635, %v2636
    %v2731 = vunpack.c.l.s4 1983009808
    %v2732 = vunpack.c.0.s8 %v2731
    %v2733 = vlaneseq
    %v2734 = vshrl.u32 %v2733, 7
    %v2735 = vsub.s32 %v2732, %v2734
    %v2736 = vrot.slane %v2729, %v2735
    %v2737 = vcombine.low %v2712, %v2720
    %v2738 = vcombine.high %v2712, %v2720
    %v2740 = vunpack.c.l.s4 1934713408
    %v2741 = vunpack.c.0.s8 %v2740
    %v2742 = vlaneseq
    %v2743 = vshrl.u32 %v2742, 7
    %v2744 = vsub.s32 %v2741, %v2743
    %v2745 = vrot.slane %v2737, %v2744
    %v2747 = vunpack.c.l.s4 1934713408
    %v2748 = vunpack.c.0.s8 %v2747
    %v2749 = vlaneseq
    %v2750 = vshrl.u32 %v2749, 7
    %v2751 = vsub.s32 %v2748, %v2750
    %v2752 = vrot.slane %v2738, %v2751
    %v2753 = vcombine.low %v2728, %v2736
    %v2754 = vcombine.high %v2728, %v2736
    %v2756 = vunpack.c.l.s4 1934713408
    %v2757 = vunpack.c.0.s8 %v2756
    %v2758 = vlaneseq
    %v2759 = vshrl.u32 %v2758, 7
    %v2760 = vsub.s32 %v2757, %v2759
    %v2761 = vrot.slane %v2753, %v2760
    %v2763 = vunpack.c.l.s4 1934713408
    %v2764 = vunpack.c.0.s8 %v2763
    %v2765 = vlaneseq
    %v2766 = vshrl.u32 %v2765, 7
    %v2767 = vsub.s32 %v2764, %v2766
    %v2768 = vrot.slane %v2754, %v2767
    %v2769 = vcombine.low %v2745, %v2761
    %v2770 = vcombine.high %v2745, %v2761
    %v2771 = vcombine.low %v2752, %v2768
    %v2772 = vcombine.high %v2752, %v2768
    %2775 = vrot.lane.b32.xlu0 %v2702, 8
    %v2776 = vpop.permute.xlu0 %2775
    %2777 = vrot.lane.b32.xlu0 %v2770, 8
    %v2778 = vpop.permute.xlu0 %2777
    %2783 = vrot.lane.b32.xlu0 %v2703, 16
    %v2784 = vpop.permute.xlu0 %2783
    %2785 = vrot.lane.b32.xlu0 %v2771, 16
    %v2786 = vpop.permute.xlu0 %2785
    %2791 = vrot.lane.b32.xlu0 %v2704, 24
    %v2792 = vpop.permute.xlu0 %2791
    %2793 = vrot.lane.b32.xlu0 %v2772, 24
    %v2794 = vpop.permute.xlu0 %2793
    %v2797 = vsel %vm1220, %v2701, %v2776
    %v2798 = vsel %vm1220, %v2769, %v2778
    %vm2799 = vcmask 130048
    %v2800 = vsel %vm2799, %v2797, %v2784
    %v2801 = vsel %vm2799, %v2798, %v2786
    %vm2802 = vcmask 195584
    %v2803 = vsel %vm2802, %v2800, %v2792
    %v2804 = vsel %vm2802, %v2801, %v2794
    %2809 = vrot.lane.b32.xlu0 %v210, 32
    %v2810 = vpop.permute.xlu0 %2809
    %2811 = vrot.lane.b32.xlu0 %v211, 32
    %v2812 = vpop.permute.xlu0 %2811
    %2813 = vrot.lane.b32.xlu0 %v212, 32
    %v2814 = vpop.permute.xlu0 %2813
    %2815 = vrot.lane.b32.xlu0 %v213, 32
    %v2816 = vpop.permute.xlu0 %2815
    %2821 = vrot.lane.b32.xlu0 %v243, 32
    %v2822 = vpop.permute.xlu0 %2821
    %v2825 = vsel %vm143, %v2803, 0
    %v2828 = vsel %vm143, %v2804, 0
    %2830 = vmatprep.subr.mxu0 0.0
    %2831 = vmatpush1.msra.mxu0 %v2810
    %2832 = vmatprep.subr.mxu0 0.0
    %2833 = vmatpush1.msra.mxu0 %v2812
    %2834 = vmatprep.subr.mxu0 0.0
    %2835 = vmatpush1.msra.mxu0 %v2814
    %2836 = vmatprep.subr.mxu0 0.0
    %2837 = vmatpush1.msra.mxu0 %v2816
    %2838 = vmatprep.subr.mxu0 0.0
    %2839 = vmatpush1.msra.mxu0 0.0
    %2840 = vmatprep.subr.mxu0 0.0
    %2841 = vmatpush1.msra.mxu0 0.0
    %2842 = vmatprep.subr.mxu0 0.0
    %2843 = vmatpush1.msra.mxu0 0.0
    %2844 = vmatprep.subr.mxu0 0.0
    %2845 = vmatpush1.msra.mxu0 0.0
    %2846 = vmatprep.subr.mxu0 0.0
    %2847 = vmatpush1.msra.mxu0 0.0
    %2848 = vmatprep.subr.mxu0 0.0
    %2849 = vmatpush1.msra.mxu0 0.0
    %2850 = vmatprep.subr.mxu0 0.0
    %2851 = vmatpush1.msra.mxu0 0.0
    %2852 = vmatprep.subr.mxu0 0.0
    %2853 = vmatpush1.msra.mxu0 0.0
    %2854 = vmatprep.subr.mxu0 0.0
    %2855 = vmatpush1.msra.mxu0 0.0
    %2856 = vmatprep.subr.mxu0 0.0
    %2857 = vmatpush1.msra.mxu0 0.0
    %2858 = vmatprep.subr.mxu0 0.0
    %2859 = vmatpush1.msra.mxu0 0.0
    %2860 = vmatprep.subr.mxu0 0.0
    %2861 = vmatpush1.msra.mxu0 0.0
    %2862 = vmatprep.subr.mxu0 0.0
    %2863 = vmatpush1.msra.mxu0 0.0
    %2864 = vmatprep.subr.mxu0 0.0
    %2865 = vmatpush1.msra.mxu0 0.0
    %2866 = vmatprep.subr.mxu0 0.0
    %2867 = vmatpush1.msra.mxu0 0.0
    %2868 = vmatprep.subr.mxu0 0.0
    %2869 = vmatpush1.msra.mxu0 0.0
    %2870 = vmatprep.subr.mxu0 0.0
    %2871 = vmatpush1.msra.mxu0 0.0
    %2872 = vmatprep.subr.mxu0 0.0
    %2873 = vmatpush1.msra.mxu0 0.0
    %2874 = vmatprep.subr.mxu0 0.0
    %2875 = vmatpush1.msra.mxu0 0.0
    %2876 = vmatprep.subr.mxu0 0.0
    %2877 = vmatpush1.msra.mxu0 0.0
    %2878 = vmatprep.subr.mxu0 0.0
    %2879 = vmatpush1.msra.mxu0 0.0
    %2880 = vmatprep.subr.mxu0 0.0
    %2881 = vmatpush1.msra.mxu0 0.0
    %2882 = vmatprep.subr.mxu0 0.0
    %2883 = vmatpush1.msra.mxu0 0.0
    %2884 = vmatprep.subr.mxu0 0.0
    %2885 = vmatpush1.msra.mxu0 0.0
    %2886 = vmatprep.subr.mxu0 0.0
    %2887 = vmatpush1.msra.mxu0 0.0
    %2888 = vmatprep.subr.mxu0 0.0
    %2889 = vmatpush1.msra.mxu0 0.0
    %2890 = vmatprep.subr.mxu0 0.0
    %2891 = vmatpush1.msra.mxu0 0.0
    %2892 = vmatprep.subr.mxu0 0.0
    %2893 = vmatpush1.msra.mxu0 0.0
    %2894 = vmatprep.mubr.f32.mxu0 0.0
    %2895 = vmatmul.mubr.f32.gmra.mrb[0].mxu0 %v2825
    %v2896 = vpop.f32.mrb[0].mxu0
    %v2897 = vadd.f32 %v2822, %v2896
    %v2898 = vpop.f32.mrb[0].mxu0
    %2899 = vmatprep.mubr.f32.mxu0 0.0
    %2900 = vmatmul.mubr.f32.gmra.mrb[0].mxu0 %v2828
    %v2901 = vpop.f32.mrb[0].mxu0
    %v2902 = vadd.f32 %v2822, %v2901
    %v2903 = vpop.f32.mrb[0].mxu0
    %2904 = vdwg.mxu0
    %v2905 = vadd.f32 %v181, %v2897
    %v2906 = vadd.f32 %v182, %v2902
    %v2907 = vsel %vm143, %v2905, 0.0
    %2908 = vadd.xlane.f32.xlu0 %v2907
    %v2909 = vpop.xlane.xlu0 %2908
    %v2910 = vsel %vm143, %v2906, 0.0
    %2911 = vadd.xlane.f32.xlu0 %v2910
    %v2912 = vpop.xlane.xlu0 %2911
    %v2913 = vmul.f32 %v2909, %v150
    %v2914 = vmul.f32 %v2912, %v150
    %v2915 = vsub.f32 %v2905, %v2913
    %v2916 = vsub.f32 %v2906, %v2914
    %v2917 = vmul.f32 %v2915, %v2915
    %v2918 = vmul.f32 %v2916, %v2916
    %v2919 = vsel %vm143, %v2917, 0.0
    %2920 = vadd.xlane.f32.xlu0 %v2919
    %v2921 = vpop.xlane.xlu0 %2920
    %v2922 = vsel %vm143, %v2918, 0.0
    %2923 = vadd.xlane.f32.xlu0 %v2922
    %v2924 = vpop.xlane.xlu0 %2923
    %v2925 = vmul.f32 %v2921, %v150
    %v2926 = vmul.f32 %v2924, %v150
    %v2927 = vadd.f32 %v2925, 1e-12
    %v2928 = vadd.f32 %v2926, 1e-12
    %v2929 = vrsqrt.pop %v2927
    %v2930 = vrsqrt.pop %v2928
    %v2931 = vmul.f32 %v2915, %v2929
    %v2932 = vmul.f32 %v2916, %v2930
    %v2934 = vlaneseq
    %v2935 = vshrl.u32 %v2934, 7
    %v2936 = vsub.s32 0, %v2935
    %v2937 = vrot.slane %v235, %v2936
    %v2939 = vmul.f32 %v2931, %v2937
    %v2940 = vmul.f32 %v2932, %v2937
    %2941 = vrot.lane.b32.xlu0 %v2937, 96
    %v2942 = vpop.permute.xlu0 %2941
    %v2944 = vadd.f32 %v2939, %v2942
    %v2945 = vadd.f32 %v2940, %v2942
    %v2947 = vlaneseq
    %v2948 = vshrl.u32 %v2947, 7
    %v2949 = vsub.s32 0, %v2948
    %v2950 = vrot.slane %v236, %v2949
    %v2951 = vlaneseq
    %v2952 = vshrl.u32 %v2951, 7
    %v2953 = vsub.s32 1, %v2952
    %v2954 = vrot.slane %v236, %v2953
    %2955 = vrot.lane.b32.xlu0 %v2950, 64
    %v2956 = vpop.permute.xlu0 %2955
    %2957 = vrot.lane.b32.xlu0 %v2954, 64
    %v2958 = vpop.permute.xlu0 %2957
    %v2959 = vsel %vm55, %v2956, %v2958
    %v2962 = vsel %vm143, %v2944, 0
    %v2965 = vsel %vm143, %v2945, 0
    %2967 = vmatprep.subr.mxu0 0.0
    %2968 = vmatpush1.msra.mxu0 %v214
    %2969 = vmatprep.subr.mxu0 0.0
    %2970 = vmatpush1.msra.mxu0 %v215
    %2971 = vmatprep.subr.mxu0 0.0
    %2972 = vmatpush1.msra.mxu0 %v216
    %2973 = vmatprep.subr.mxu0 0.0
    %2974 = vmatpush1.msra.mxu0 %v217
    %2975 = vmatprep.subr.mxu0 0.0
    %2976 = vmatpush1.msra.mxu0 0.0
    %2977 = vmatprep.subr.mxu0 0.0
    %2978 = vmatpush1.msra.mxu0 0.0
    %2979 = vmatprep.subr.mxu0 0.0
    %2980 = vmatpush1.msra.mxu0 0.0
    %2981 = vmatprep.subr.mxu0 0.0
    %2982 = vmatpush1.msra.mxu0 0.0
    %2983 = vmatprep.subr.mxu0 0.0
    %2984 = vmatpush1.msra.mxu0 0.0
    %2985 = vmatprep.subr.mxu0 0.0
    %2986 = vmatpush1.msra.mxu0 0.0
    %2987 = vmatprep.subr.mxu0 0.0
    %2988 = vmatpush1.msra.mxu0 0.0
    %2989 = vmatprep.subr.mxu0 0.0
    %2990 = vmatpush1.msra.mxu0 0.0
    %2991 = vmatprep.subr.mxu0 0.0
    %2992 = vmatpush1.msra.mxu0 0.0
    %2993 = vmatprep.subr.mxu0 0.0
    %2994 = vmatpush1.msra.mxu0 0.0
    %2995 = vmatprep.subr.mxu0 0.0
    %2996 = vmatpush1.msra.mxu0 0.0
    %2997 = vmatprep.subr.mxu0 0.0
    %2998 = vmatpush1.msra.mxu0 0.0
    %2999 = vmatprep.subr.mxu0 0.0
    %3000 = vmatpush1.msra.mxu0 0.0
    %3001 = vmatprep.subr.mxu0 0.0
    %3002 = vmatpush1.msra.mxu0 0.0
    %3003 = vmatprep.subr.mxu0 0.0
    %3004 = vmatpush1.msra.mxu0 0.0
    %3005 = vmatprep.subr.mxu0 0.0
    %3006 = vmatpush1.msra.mxu0 0.0
    %3007 = vmatprep.subr.mxu0 0.0
    %3008 = vmatpush1.msra.mxu0 0.0
    %3009 = vmatprep.subr.mxu0 0.0
    %3010 = vmatpush1.msra.mxu0 0.0
    %3011 = vmatprep.subr.mxu0 0.0
    %3012 = vmatpush1.msra.mxu0 0.0
    %3013 = vmatprep.subr.mxu0 0.0
    %3014 = vmatpush1.msra.mxu0 0.0
    %3015 = vmatprep.subr.mxu0 0.0
    %3016 = vmatpush1.msra.mxu0 0.0
    %3017 = vmatprep.subr.mxu0 0.0
    %3018 = vmatpush1.msra.mxu0 0.0
    %3019 = vmatprep.subr.mxu0 0.0
    %3020 = vmatpush1.msra.mxu0 0.0
    %3021 = vmatprep.subr.mxu0 0.0
    %3022 = vmatpush1.msra.mxu0 0.0
    %3023 = vmatprep.subr.mxu0 0.0
    %3024 = vmatpush1.msra.mxu0 0.0
    %3025 = vmatprep.subr.mxu0 0.0
    %3026 = vmatpush1.msra.mxu0 0.0
    %3027 = vmatprep.subr.mxu0 0.0
    %3028 = vmatpush1.msra.mxu0 0.0
    %3029 = vmatprep.subr.mxu0 0.0
    %3030 = vmatpush1.msra.mxu0 0.0
    %3031 = vmatprep.mubr.f32.mxu0 0.0
    %3032 = vmatmul.mubr.f32.gmra.mrb[0].mxu0 %v2962
    %v3033 = vpop.f32.mrb[0].mxu0
    %v3034 = vadd.f32 %v2959, %v3033
    %v3035 = vpop.f32.mrb[0].mxu0
    %3036 = vmatprep.mubr.f32.mxu0 0.0
    %3037 = vmatmul.mubr.f32.gmra.mrb[0].mxu0 %v2965
    %v3038 = vpop.f32.mrb[0].mxu0
    %v3039 = vadd.f32 %v2959, %v3038
    %v3040 = vpop.f32.mrb[0].mxu0
    %3041 = vdwg.mxu0
    %v3042 = vmul.f32 %v3034, 0.5
    %v3043 = vmul.f32 %v3039, 0.5
    %v3044 = vmul.f32 %v3034, 0.044715
    %v3045 = vmul.f32 %v3039, 0.044715
    %v3046 = vmul.f32 %v3044, %v3034
    %v3047 = vmul.f32 %v3045, %v3039
    %v3048 = vmul.f32 %v3046, %v3034
    %v3049 = vmul.f32 %v3047, %v3039
    %v3050 = vadd.f32 %v3034, %v3048
    %v3051 = vadd.f32 %v3039, %v3049
    %v3052 = vmul.f32 %v3050, 0.7978846
    %v3053 = vmul.f32 %v3051, 0.7978846
    %v3054 = vtanh.pop %v3052
    %v3055 = vtanh.pop %v3053
    %v3056 = vadd.f32 %v3054, 1.0
    %v3057 = vadd.f32 %v3055, 1.0
    %v3058 = vmul.f32 %v3042, %v3056
    %v3059 = vmul.f32 %v3043, %v3057
    %v3061 = vlaneseq
    %v3062 = vshrl.u32 %v3061, 7
    %v3063 = vsub.s32 0, %v3062
    %v3064 = vrot.slane %v237, %v3063
    %3065 = vrot.lane.b32.xlu0 %v3064, 64
    %v3066 = vpop.permute.xlu0 %3065
    %3068 = vmatprep.subr.mxu0 0.0
    %3069 = vmatpush1.msra.mxu0 %v218
    %3070 = vmatprep.subr.mxu0 0.0
    %3071 = vmatpush1.msra.mxu0 %v219
    %3072 = vmatprep.subr.mxu0 0.0
    %3073 = vmatpush1.msra.mxu0 %v220
    %3074 = vmatprep.subr.mxu0 0.0
    %3075 = vmatpush1.msra.mxu0 %v221
    %3076 = vmatprep.subr.mxu0 0.0
    %3077 = vmatpush1.msra.mxu0 %v222
    %3078 = vmatprep.subr.mxu0 0.0
    %3079 = vmatpush1.msra.mxu0 %v223
    %3080 = vmatprep.subr.mxu0 0.0
    %3081 = vmatpush1.msra.mxu0 %v224
    %3082 = vmatprep.subr.mxu0 0.0
    %3083 = vmatpush1.msra.mxu0 %v225
    %3084 = vmatprep.subr.mxu0 0.0
    %3085 = vmatpush1.msra.mxu0 %v226
    %3086 = vmatprep.subr.mxu0 0.0
    %3087 = vmatpush1.msra.mxu0 %v227
    %3088 = vmatprep.subr.mxu0 0.0
    %3089 = vmatpush1.msra.mxu0 %v228
    %3090 = vmatprep.subr.mxu0 0.0
    %3091 = vmatpush1.msra.mxu0 %v229
    %3092 = vmatprep.subr.mxu0 0.0
    %3093 = vmatpush1.msra.mxu0 %v230
    %3094 = vmatprep.subr.mxu0 0.0
    %3095 = vmatpush1.msra.mxu0 %v231
    %3096 = vmatprep.subr.mxu0 0.0
    %3097 = vmatpush1.msra.mxu0 %v232
    %3098 = vmatprep.subr.mxu0 0.0
    %3099 = vmatpush1.msra.mxu0 %v233
    %3100 = vmatprep.subr.mxu0 0.0
    %3101 = vmatpush1.msra.mxu0 0.0
    %3102 = vmatprep.subr.mxu0 0.0
    %3103 = vmatpush1.msra.mxu0 0.0
    %3104 = vmatprep.subr.mxu0 0.0
    %3105 = vmatpush1.msra.mxu0 0.0
    %3106 = vmatprep.subr.mxu0 0.0
    %3107 = vmatpush1.msra.mxu0 0.0
    %3108 = vmatprep.subr.mxu0 0.0
    %3109 = vmatpush1.msra.mxu0 0.0
    %3110 = vmatprep.subr.mxu0 0.0
    %3111 = vmatpush1.msra.mxu0 0.0
    %3112 = vmatprep.subr.mxu0 0.0
    %3113 = vmatpush1.msra.mxu0 0.0
    %3114 = vmatprep.subr.mxu0 0.0
    %3115 = vmatpush1.msra.mxu0 0.0
    %3116 = vmatprep.subr.mxu0 0.0
    %3117 = vmatpush1.msra.mxu0 0.0
    %3118 = vmatprep.subr.mxu0 0.0
    %3119 = vmatpush1.msra.mxu0 0.0
    %3120 = vmatprep.subr.mxu0 0.0
    %3121 = vmatpush1.msra.mxu0 0.0
    %3122 = vmatprep.subr.mxu0 0.0
    %3123 = vmatpush1.msra.mxu0 0.0
    %3124 = vmatprep.subr.mxu0 0.0
    %3125 = vmatpush1.msra.mxu0 0.0
    %3126 = vmatprep.subr.mxu0 0.0
    %3127 = vmatpush1.msra.mxu0 0.0
    %3128 = vmatprep.subr.mxu0 0.0
    %3129 = vmatpush1.msra.mxu0 0.0
    %3130 = vmatprep.subr.mxu0 0.0
    %3131 = vmatpush1.msra.mxu0 0.0
    %3132 = vmatprep.mubr.f32.mxu0 0.0
    %3133 = vmatmul.mubr.f32.gmra.mrb[0].mxu0 %v3058
    %v3134 = vpop.f32.mrb[0].mxu0
    %v3135 = vadd.f32 %v3066, %v3134
    %v3136 = vpop.f32.mrb[0].mxu0
    %3137 = vmatprep.mubr.f32.mxu0 0.0
    %3138 = vmatmul.mubr.f32.gmra.mrb[0].mxu0 %v3059
    %v3139 = vpop.f32.mrb[0].mxu0
    %v3140 = vadd.f32 %v3066, %v3139
    %v3141 = vpop.f32.mrb[0].mxu0
    %3142 = vdwg.mxu0
    %v3143 = vadd.f32 %v2944, %v3135
    %v3144 = vadd.f32 %v2945, %v3140
    %v3145 = vsel %vm143, %v3143, 0.0
    %3146 = vadd.xlane.f32.xlu0 %v3145
    %v3147 = vpop.xlane.xlu0 %3146
    %v3148 = vsel %vm143, %v3144, 0.0
    %3149 = vadd.xlane.f32.xlu0 %v3148
    %v3150 = vpop.xlane.xlu0 %3149
    %v3151 = vmul.f32 %v3147, %v150
    %v3152 = vmul.f32 %v3150, %v150
    %v3153 = vsub.f32 %v3143, %v3151
    %v3154 = vsub.f32 %v3144, %v3152
    %v3155 = vmul.f32 %v3153, %v3153
    %v3156 = vmul.f32 %v3154, %v3154
    %v3157 = vsel %vm143, %v3155, 0.0
    %3158 = vadd.xlane.f32.xlu0 %v3157
    %v3159 = vpop.xlane.xlu0 %3158
    %v3160 = vsel %vm143, %v3156, 0.0
    %3161 = vadd.xlane.f32.xlu0 %v3160
    %v3162 = vpop.xlane.xlu0 %3161
    %v3163 = vmul.f32 %v3159, %v150
    %v3164 = vmul.f32 %v3162, %v150
    %v3165 = vadd.f32 %v3163, 1e-12
    %v3166 = vadd.f32 %v3164, 1e-12
    %v3167 = vrsqrt.pop %v3165
    %v3168 = vrsqrt.pop %v3166
    %v3169 = vmul.f32 %v3153, %v3167
    %v3170 = vmul.f32 %v3154, %v3168
    %3171 = vrot.lane.b32.xlu0 %v3064, 32
    %v3172 = vpop.permute.xlu0 %3171
    %v3174 = vmul.f32 %v3169, %v3172
    %v3175 = vmul.f32 %v3170, %v3172
    %v3177 = vlaneseq
    %v3178 = vshrl.u32 %v3177, 7
    %v3179 = vsub.s32 0, %v3178
    %v3180 = vrot.slane %v238, %v3179
    %v3182 = vadd.f32 %v3174, %v3180
    %v3183 = vadd.f32 %v3175, %v3180
    %s3184 = scalar_lea.vmem %s2, 64
    %v3185 = vld [vmem:[%s3184] sm:$0xff]
    %v3186 = vld [vmem:[%s3184 + $0x10] sm:$0xff]
    %v3187 = vld [vmem:[%s3184 + $0x20] sm:$0xff]
    %v3188 = vld [vmem:[%s3184 + $0x30] sm:$0xff]
    %v3189 = vld [vmem:[%s3184 + $0x8] sm:$0xff]
    %v3190 = vld [vmem:[%s3184 + $0x18] sm:$0xff]
    %v3191 = vld [vmem:[%s3184 + $0x28] sm:$0xff]
    %v3192 = vld [vmem:[%s3184 + $0x38] sm:$0xff]
    %s3193 = scalar_lea.vmem %s3, 128
    %v3194 = vld [vmem:[%s3193] sm:$0xff]
    %v3195 = vld [vmem:[%s3193 + $0x8] sm:$0xff]
    %v3196 = vld [vmem:[%s3193 + $0x10] sm:$0xff]
    %v3197 = vld [vmem:[%s3193 + $0x18] sm:$0xff]
    %v3198 = vld [vmem:[%s3193 + $0x20] sm:$0xff]
    %v3199 = vld [vmem:[%s3193 + $0x28] sm:$0xff]
    %v3200 = vld [vmem:[%s3193 + $0x30] sm:$0xff]
    %v3201 = vld [vmem:[%s3193 + $0x38] sm:$0xff]
    %v3202 = vld [vmem:[%s3193 + $0x40] sm:$0xff]
    %v3203 = vld [vmem:[%s3193 + $0x48] sm:$0xff]
    %v3204 = vld [vmem:[%s3193 + $0x50] sm:$0xff]
    %v3205 = vld [vmem:[%s3193 + $0x58] sm:$0xff]
    %v3206 = vld [vmem:[%s3193 + $0x60] sm:$0xff]
    %v3207 = vld [vmem:[%s3193 + $0x68] sm:$0xff]
    %v3208 = vld [vmem:[%s3193 + $0x70] sm:$0xff]
    %v3209 = vld [vmem:[%s3193 + $0x78] sm:$0xff]
    %s3210 = scalar_lea.vmem %s4, 4
    %v3211 = vld [vmem:[%s3210] sm:$0x1]
    %v3212 = vld [vmem:[%s3210 + $0x1] sm:$0x1]
    %v3213 = vld [vmem:[%s3210 + $0x1] sm:$0x3]
    %v3214 = vld [vmem:[%s3210 + $0x2] sm:$0x1]
    %v3215 = vld [vmem:[%s3210 + $0x3] sm:$0x1]
    %v3217 = vlaneseq
    %v3218 = vshrl.u32 %v3217, 7
    %v3219 = vsub.s32 0, %v3218
    %v3220 = vrot.slane %v3211, %v3219
    %v3223 = vsel %vm143, %v3182, 0
    %v3226 = vsel %vm143, %v3183, 0
    %3228 = vmatprep.subr.mxu0 0.0
    %3229 = vmatpush1.msra.mxu0 %v3185
    %3230 = vmatprep.subr.mxu0 0.0
    %3231 = vmatpush1.msra.mxu0 %v3186
    %3232 = vmatprep.subr.mxu0 0.0
    %3233 = vmatpush1.msra.mxu0 %v3187
    %3234 = vmatprep.subr.mxu0 0.0
    %3235 = vmatpush1.msra.mxu0 %v3188
    %3236 = vmatprep.subr.mxu0 0.0
    %3237 = vmatpush1.msra.mxu0 0.0
    %3238 = vmatprep.subr.mxu0 0.0
    %3239 = vmatpush1.msra.mxu0 0.0
    %3240 = vmatprep.subr.mxu0 0.0
    %3241 = vmatpush1.msra.mxu0 0.0
    %3242 = vmatprep.subr.mxu0 0.0
    %3243 = vmatpush1.msra.mxu0 0.0
    %3244 = vmatprep.subr.mxu0 0.0
    %3245 = vmatpush1.msra.mxu0 0.0
    %3246 = vmatprep.subr.mxu0 0.0
    %3247 = vmatpush1.msra.mxu0 0.0
    %3248 = vmatprep.subr.mxu0 0.0
    %3249 = vmatpush1.msra.mxu0 0.0
    %3250 = vmatprep.subr.mxu0 0.0
    %3251 = vmatpush1.msra.mxu0 0.0
    %3252 = vmatprep.subr.mxu0 0.0
    %3253 = vmatpush1.msra.mxu0 0.0
    %3254 = vmatprep.subr.mxu0 0.0
    %3255 = vmatpush1.msra.mxu0 0.0
    %3256 = vmatprep.subr.mxu0 0.0
    %3257 = vmatpush1.msra.mxu0 0.0
    %3258 = vmatprep.subr.mxu0 0.0
    %3259 = vmatpush1.msra.mxu0 0.0
    %3260 = vmatprep.subr.mxu0 0.0
    %3261 = vmatpush1.msra.mxu0 0.0
    %3262 = vmatprep.subr.mxu0 0.0
    %3263 = vmatpush1.msra.mxu0 0.0
    %3264 = vmatprep.subr.mxu0 0.0
    %3265 = vmatpush1.msra.mxu0 0.0
    %3266 = vmatprep.subr.mxu0 0.0
    %3267 = vmatpush1.msra.mxu0 0.0
    %3268 = vmatprep.subr.mxu0 0.0
    %3269 = vmatpush1.msra.mxu0 0.0
    %3270 = vmatprep.subr.mxu0 0.0
    %3271 = vmatpush1.msra.mxu0 0.0
    %3272 = vmatprep.subr.mxu0 0.0
    %3273 = vmatpush1.msra.mxu0 0.0
    %3274 = vmatprep.subr.mxu0 0.0
    %3275 = vmatpush1.msra.mxu0 0.0
    %3276 = vmatprep.subr.mxu0 0.0
    %3277 = vmatpush1.msra.mxu0 0.0
    %3278 = vmatprep.subr.mxu0 0.0
    %3279 = vmatpush1.msra.mxu0 0.0
    %3280 = vmatprep.subr.mxu0 0.0
    %3281 = vmatpush1.msra.mxu0 0.0
    %3282 = vmatprep.subr.mxu0 0.0
    %3283 = vmatpush1.msra.mxu0 0.0
    %3284 = vmatprep.subr.mxu0 0.0
    %3285 = vmatpush1.msra.mxu0 0.0
    %3286 = vmatprep.subr.mxu0 0.0
    %3287 = vmatpush1.msra.mxu0 0.0
    %3288 = vmatprep.subr.mxu0 0.0
    %3289 = vmatpush1.msra.mxu0 0.0
    %3290 = vmatprep.subr.mxu0 0.0
    %3291 = vmatpush1.msra.mxu0 0.0
    %3292 = vmatprep.mubr.f32.mxu0 0.0
    %3293 = vmatmul.mubr.f32.gmra.mrb[0].mxu0 %v3223
    %v3294 = vpop.f32.mrb[0].mxu0
    %v3295 = vadd.f32 %v3220, %v3294
    %v3296 = vpop.f32.mrb[0].mxu0
    %3297 = vmatprep.mubr.f32.mxu0 0.0
    %3298 = vmatmul.mubr.f32.gmra.mrb[0].mxu0 %v3226
    %v3299 = vpop.f32.mrb[0].mxu0
    %v3300 = vadd.f32 %v3220, %v3299
    %v3301 = vpop.f32.mrb[0].mxu0
    %3302 = vdwg.mxu0
    %3305 = vrot.lane.b32.xlu0 %v3295, 120
    %v3306 = vpop.permute.xlu0 %3305
    %3307 = vrot.lane.b32.xlu0 %v3300, 120
    %v3308 = vpop.permute.xlu0 %3307
    %3311 = vrot.lane.b32.xlu0 %v3295, 112
    %v3312 = vpop.permute.xlu0 %3311
    %3313 = vrot.lane.b32.xlu0 %v3300, 112
    %v3314 = vpop.permute.xlu0 %3313
    %3317 = vrot.lane.b32.xlu0 %v3295, 104
    %v3318 = vpop.permute.xlu0 %3317
    %3319 = vrot.lane.b32.xlu0 %v3300, 104
    %v3320 = vpop.permute.xlu0 %3319
    %v3323 = vcombine.low %v3295, %v3312
    %v3324 = vcombine.high %v3295, %v3312
    %v3326 = vunpack.c.l.s4 1983009808
    %v3327 = vunpack.c.0.s8 %v3326
    %v3328 = vlaneseq
    %v3329 = vshrl.u32 %v3328, 7
    %v3330 = vsub.s32 %v3327, %v3329
    %v3331 = vrot.slane %v3323, %v3330
    %v3333 = vunpack.c.l.s4 1983009808
    %v3334 = vunpack.c.0.s8 %v3333
    %v3335 = vlaneseq
    %v3336 = vshrl.u32 %v3335, 7
    %v3337 = vsub.s32 %v3334, %v3336
    %v3338 = vrot.slane %v3324, %v3337
    %v3339 = vcombine.low %v3306, %v3318
    %v3340 = vcombine.high %v3306, %v3318
    %v3342 = vunpack.c.l.s4 1983009808
    %v3343 = vunpack.c.0.s8 %v3342
    %v3344 = vlaneseq
    %v3345 = vshrl.u32 %v3344, 7
    %v3346 = vsub.s32 %v3343, %v3345
    %v3347 = vrot.slane %v3339, %v3346
    %v3349 = vunpack.c.l.s4 1983009808
    %v3350 = vunpack.c.0.s8 %v3349
    %v3351 = vlaneseq
    %v3352 = vshrl.u32 %v3351, 7
    %v3353 = vsub.s32 %v3350, %v3352
    %v3354 = vrot.slane %v3340, %v3353
    %v3355 = vcombine.low %v3331, %v3347
    %v3356 = vcombine.high %v3331, %v3347
    %v3358 = vunpack.c.l.s4 1934713408
    %v3359 = vunpack.c.0.s8 %v3358
    %v3360 = vlaneseq
    %v3361 = vshrl.u32 %v3360, 7
    %v3362 = vsub.s32 %v3359, %v3361
    %v3363 = vrot.slane %v3355, %v3362
    %v3365 = vunpack.c.l.s4 1934713408
    %v3366 = vunpack.c.0.s8 %v3365
    %v3367 = vlaneseq
    %v3368 = vshrl.u32 %v3367, 7
    %v3369 = vsub.s32 %v3366, %v3368
    %v3370 = vrot.slane %v3356, %v3369
    %v3371 = vcombine.low %v3338, %v3354
    %v3372 = vcombine.high %v3338, %v3354
    %v3374 = vunpack.c.l.s4 1934713408
    %v3375 = vunpack.c.0.s8 %v3374
    %v3376 = vlaneseq
    %v3377 = vshrl.u32 %v3376, 7
    %v3378 = vsub.s32 %v3375, %v3377
    %v3379 = vrot.slane %v3371, %v3378
    %v3381 = vunpack.c.l.s4 1934713408
    %v3382 = vunpack.c.0.s8 %v3381
    %v3383 = vlaneseq
    %v3384 = vshrl.u32 %v3383, 7
    %v3385 = vsub.s32 %v3382, %v3384
    %v3386 = vrot.slane %v3372, %v3385
    %v3387 = vcombine.high %v3363, 0.0
    %v3388 = vcombine.high %v3370, 0.0
    %v3389 = vcombine.high %v3379, 0.0
    %v3390 = vcombine.high %v3386, 0.0
    %v3391 = vcombine.low %v3300, %v3314
    %v3392 = vcombine.high %v3300, %v3314
    %v3394 = vunpack.c.l.s4 1983009808
    %v3395 = vunpack.c.0.s8 %v3394
    %v3396 = vlaneseq
    %v3397 = vshrl.u32 %v3396, 7
    %v3398 = vsub.s32 %v3395, %v3397
    %v3399 = vrot.slane %v3391, %v3398
    %v3401 = vunpack.c.l.s4 1983009808
    %v3402 = vunpack.c.0.s8 %v3401
    %v3403 = vlaneseq
    %v3404 = vshrl.u32 %v3403, 7
    %v3405 = vsub.s32 %v3402, %v3404
    %v3406 = vrot.slane %v3392, %v3405
    %v3407 = vcombine.low %v3308, %v3320
    %v3408 = vcombine.high %v3308, %v3320
    %v3410 = vunpack.c.l.s4 1983009808
    %v3411 = vunpack.c.0.s8 %v3410
    %v3412 = vlaneseq
    %v3413 = vshrl.u32 %v3412, 7
    %v3414 = vsub.s32 %v3411, %v3413
    %v3415 = vrot.slane %v3407, %v3414
    %v3417 = vunpack.c.l.s4 1983009808
    %v3418 = vunpack.c.0.s8 %v3417
    %v3419 = vlaneseq
    %v3420 = vshrl.u32 %v3419, 7
    %v3421 = vsub.s32 %v3418, %v3420
    %v3422 = vrot.slane %v3408, %v3421
    %v3423 = vcombine.low %v3399, %v3415
    %v3424 = vcombine.high %v3399, %v3415
    %v3426 = vunpack.c.l.s4 1934713408
    %v3427 = vunpack.c.0.s8 %v3426
    %v3428 = vlaneseq
    %v3429 = vshrl.u32 %v3428, 7
    %v3430 = vsub.s32 %v3427, %v3429
    %v3431 = vrot.slane %v3423, %v3430
    %v3433 = vunpack.c.l.s4 1934713408
    %v3434 = vunpack.c.0.s8 %v3433
    %v3435 = vlaneseq
    %v3436 = vshrl.u32 %v3435, 7
    %v3437 = vsub.s32 %v3434, %v3436
    %v3438 = vrot.slane %v3424, %v3437
    %v3439 = vcombine.low %v3406, %v3422
    %v3440 = vcombine.high %v3406, %v3422
    %v3442 = vunpack.c.l.s4 1934713408
    %v3443 = vunpack.c.0.s8 %v3442
    %v3444 = vlaneseq
    %v3445 = vshrl.u32 %v3444, 7
    %v3446 = vsub.s32 %v3443, %v3445
    %v3447 = vrot.slane %v3439, %v3446
    %v3449 = vunpack.c.l.s4 1934713408
    %v3450 = vunpack.c.0.s8 %v3449
    %v3451 = vlaneseq
    %v3452 = vshrl.u32 %v3451, 7
    %v3453 = vsub.s32 %v3450, %v3452
    %v3454 = vrot.slane %v3440, %v3453
    %v3455 = vcombine.high %v3431, 0.0
    %v3456 = vcombine.high %v3438, 0.0
    %v3457 = vcombine.high %v3447, 0.0
    %v3458 = vcombine.high %v3454, 0.0
    %v3459 = vcombine.low %v3363, %v3370
    %v3461 = vunpack.c.l.s4 1983009808
    %v3462 = vunpack.c.0.s8 %v3461
    %v3463 = vlaneseq
    %v3464 = vshrl.u32 %v3463, 7
    %v3465 = vsub.s32 %v3462, %v3464
    %v3466 = vrot.slane %v3459, %v3465
    %v3467 = vcombine.low %v3387, %v3388
    %v3469 = vunpack.c.l.s4 1983009808
    %v3470 = vunpack.c.0.s8 %v3469
    %v3471 = vlaneseq
    %v3472 = vshrl.u32 %v3471, 7
    %v3473 = vsub.s32 %v3470, %v3472
    %v3474 = vrot.slane %v3467, %v3473
    %v3475 = vcombine.low %v3379, %v3386
    %v3477 = vunpack.c.l.s4 1983009808
    %v3478 = vunpack.c.0.s8 %v3477
    %v3479 = vlaneseq
    %v3480 = vshrl.u32 %v3479, 7
    %v3481 = vsub.s32 %v3478, %v3480
    %v3482 = vrot.slane %v3475, %v3481
    %v3483 = vcombine.low %v3389, %v3390
    %v3485 = vunpack.c.l.s4 1983009808
    %v3486 = vunpack.c.0.s8 %v3485
    %v3487 = vlaneseq
    %v3488 = vshrl.u32 %v3487, 7
    %v3489 = vsub.s32 %v3486, %v3488
    %v3490 = vrot.slane %v3483, %v3489
    %v3491 = vcombine.low %v3466, %v3474
    %v3492 = vcombine.high %v3466, %v3474
    %v3494 = vunpack.c.l.s4 1934713408
    %v3495 = vunpack.c.0.s8 %v3494
    %v3496 = vlaneseq
    %v3497 = vshrl.u32 %v3496, 7
    %v3498 = vsub.s32 %v3495, %v3497
    %v3499 = vrot.slane %v3491, %v3498
    %v3501 = vunpack.c.l.s4 1934713408
    %v3502 = vunpack.c.0.s8 %v3501
    %v3503 = vlaneseq
    %v3504 = vshrl.u32 %v3503, 7
    %v3505 = vsub.s32 %v3502, %v3504
    %v3506 = vrot.slane %v3492, %v3505
    %v3507 = vcombine.low %v3482, %v3490
    %v3508 = vcombine.high %v3482, %v3490
    %v3510 = vunpack.c.l.s4 1934713408
    %v3511 = vunpack.c.0.s8 %v3510
    %v3512 = vlaneseq
    %v3513 = vshrl.u32 %v3512, 7
    %v3514 = vsub.s32 %v3511, %v3513
    %v3515 = vrot.slane %v3507, %v3514
    %v3517 = vunpack.c.l.s4 1934713408
    %v3518 = vunpack.c.0.s8 %v3517
    %v3519 = vlaneseq
    %v3520 = vshrl.u32 %v3519, 7
    %v3521 = vsub.s32 %v3518, %v3520
    %v3522 = vrot.slane %v3508, %v3521
    %v3523 = vcombine.low %v3499, %v3515
    %v3524 = vcombine.high %v3499, %v3515
    %v3525 = vcombine.low %v3506, %v3522
    %v3526 = vcombine.high %v3506, %v3522
    %v3527 = vcombine.low %v3431, %v3438
    %v3529 = vunpack.c.l.s4 1983009808
    %v3530 = vunpack.c.0.s8 %v3529
    %v3531 = vlaneseq
    %v3532 = vshrl.u32 %v3531, 7
    %v3533 = vsub.s32 %v3530, %v3532
    %v3534 = vrot.slane %v3527, %v3533
    %v3535 = vcombine.low %v3455, %v3456
    %v3537 = vunpack.c.l.s4 1983009808
    %v3538 = vunpack.c.0.s8 %v3537
    %v3539 = vlaneseq
    %v3540 = vshrl.u32 %v3539, 7
    %v3541 = vsub.s32 %v3538, %v3540
    %v3542 = vrot.slane %v3535, %v3541
    %v3543 = vcombine.low %v3447, %v3454
    %v3545 = vunpack.c.l.s4 1983009808
    %v3546 = vunpack.c.0.s8 %v3545
    %v3547 = vlaneseq
    %v3548 = vshrl.u32 %v3547, 7
    %v3549 = vsub.s32 %v3546, %v3548
    %v3550 = vrot.slane %v3543, %v3549
    %v3551 = vcombine.low %v3457, %v3458
    %v3553 = vunpack.c.l.s4 1983009808
    %v3554 = vunpack.c.0.s8 %v3553
    %v3555 = vlaneseq
    %v3556 = vshrl.u32 %v3555, 7
    %v3557 = vsub.s32 %v3554, %v3556
    %v3558 = vrot.slane %v3551, %v3557
    %v3559 = vcombine.low %v3534, %v3542
    %v3560 = vcombine.high %v3534, %v3542
    %v3562 = vunpack.c.l.s4 1934713408
    %v3563 = vunpack.c.0.s8 %v3562
    %v3564 = vlaneseq
    %v3565 = vshrl.u32 %v3564, 7
    %v3566 = vsub.s32 %v3563, %v3565
    %v3567 = vrot.slane %v3559, %v3566
    %v3569 = vunpack.c.l.s4 1934713408
    %v3570 = vunpack.c.0.s8 %v3569
    %v3571 = vlaneseq
    %v3572 = vshrl.u32 %v3571, 7
    %v3573 = vsub.s32 %v3570, %v3572
    %v3574 = vrot.slane %v3560, %v3573
    %v3575 = vcombine.low %v3550, %v3558
    %v3576 = vcombine.high %v3550, %v3558
    %v3578 = vunpack.c.l.s4 1934713408
    %v3579 = vunpack.c.0.s8 %v3578
    %v3580 = vlaneseq
    %v3581 = vshrl.u32 %v3580, 7
    %v3582 = vsub.s32 %v3579, %v3581
    %v3583 = vrot.slane %v3575, %v3582
    %v3585 = vunpack.c.l.s4 1934713408
    %v3586 = vunpack.c.0.s8 %v3585
    %v3587 = vlaneseq
    %v3588 = vshrl.u32 %v3587, 7
    %v3589 = vsub.s32 %v3586, %v3588
    %v3590 = vrot.slane %v3576, %v3589
    %v3591 = vcombine.low %v3567, %v3583
    %v3592 = vcombine.high %v3567, %v3583
    %v3593 = vcombine.low %v3574, %v3590
    %v3594 = vcombine.high %v3574, %v3590
    %3595 = vrot.lane.b32.xlu0 %v3295, 96
    %v3596 = vpop.permute.xlu0 %3595
    %3597 = vrot.lane.b32.xlu0 %v3300, 96
    %v3598 = vpop.permute.xlu0 %3597
    %3599 = vrot.lane.b32.xlu0 %v3306, 96
    %v3600 = vpop.permute.xlu0 %3599
    %3601 = vrot.lane.b32.xlu0 %v3308, 96
    %v3602 = vpop.permute.xlu0 %3601
    %3603 = vrot.lane.b32.xlu0 %v3312, 96
    %v3604 = vpop.permute.xlu0 %3603
    %3605 = vrot.lane.b32.xlu0 %v3314, 96
    %v3606 = vpop.permute.xlu0 %3605
    %3607 = vrot.lane.b32.xlu0 %v3318, 96
    %v3608 = vpop.permute.xlu0 %3607
    %3609 = vrot.lane.b32.xlu0 %v3320, 96
    %v3610 = vpop.permute.xlu0 %3609
    %v3619 = vcombine.low %v3596, %v3604
    %v3620 = vcombine.high %v3596, %v3604
    %v3622 = vunpack.c.l.s4 1983009808
    %v3623 = vunpack.c.0.s8 %v3622
    %v3624 = vlaneseq
    %v3625 = vshrl.u32 %v3624, 7
    %v3626 = vsub.s32 %v3623, %v3625
    %v3627 = vrot.slane %v3619, %v3626
    %v3629 = vunpack.c.l.s4 1983009808
    %v3630 = vunpack.c.0.s8 %v3629
    %v3631 = vlaneseq
    %v3632 = vshrl.u32 %v3631, 7
    %v3633 = vsub.s32 %v3630, %v3632
    %v3634 = vrot.slane %v3620, %v3633
    %v3635 = vcombine.low %v3600, %v3608
    %v3636 = vcombine.high %v3600, %v3608
    %v3638 = vunpack.c.l.s4 1983009808
    %v3639 = vunpack.c.0.s8 %v3638
    %v3640 = vlaneseq
    %v3641 = vshrl.u32 %v3640, 7
    %v3642 = vsub.s32 %v3639, %v3641
    %v3643 = vrot.slane %v3635, %v3642
    %v3645 = vunpack.c.l.s4 1983009808
    %v3646 = vunpack.c.0.s8 %v3645
    %v3647 = vlaneseq
    %v3648 = vshrl.u32 %v3647, 7
    %v3649 = vsub.s32 %v3646, %v3648
    %v3650 = vrot.slane %v3636, %v3649
    %v3651 = vcombine.low %v3627, %v3643
    %v3652 = vcombine.high %v3627, %v3643
    %v3654 = vunpack.c.l.s4 1934713408
    %v3655 = vunpack.c.0.s8 %v3654
    %v3656 = vlaneseq
    %v3657 = vshrl.u32 %v3656, 7
    %v3658 = vsub.s32 %v3655, %v3657
    %v3659 = vrot.slane %v3651, %v3658
    %v3661 = vunpack.c.l.s4 1934713408
    %v3662 = vunpack.c.0.s8 %v3661
    %v3663 = vlaneseq
    %v3664 = vshrl.u32 %v3663, 7
    %v3665 = vsub.s32 %v3662, %v3664
    %v3666 = vrot.slane %v3652, %v3665
    %v3667 = vcombine.low %v3634, %v3650
    %v3668 = vcombine.high %v3634, %v3650
    %v3670 = vunpack.c.l.s4 1934713408
    %v3671 = vunpack.c.0.s8 %v3670
    %v3672 = vlaneseq
    %v3673 = vshrl.u32 %v3672, 7
    %v3674 = vsub.s32 %v3671, %v3673
    %v3675 = vrot.slane %v3667, %v3674
    %v3677 = vunpack.c.l.s4 1934713408
    %v3678 = vunpack.c.0.s8 %v3677
    %v3679 = vlaneseq
    %v3680 = vshrl.u32 %v3679, 7
    %v3681 = vsub.s32 %v3678, %v3680
    %v3682 = vrot.slane %v3668, %v3681
    %v3683 = vcombine.high %v3659, 0.0
    %v3684 = vcombine.high %v3666, 0.0
    %v3685 = vcombine.high %v3675, 0.0
    %v3686 = vcombine.high %v3682, 0.0
    %v3687 = vcombine.low %v3598, %v3606
    %v3688 = vcombine.high %v3598, %v3606
    %v3690 = vunpack.c.l.s4 1983009808
    %v3691 = vunpack.c.0.s8 %v3690
    %v3692 = vlaneseq
    %v3693 = vshrl.u32 %v3692, 7
    %v3694 = vsub.s32 %v3691, %v3693
    %v3695 = vrot.slane %v3687, %v3694
    %v3697 = vunpack.c.l.s4 1983009808
    %v3698 = vunpack.c.0.s8 %v3697
    %v3699 = vlaneseq
    %v3700 = vshrl.u32 %v3699, 7
    %v3701 = vsub.s32 %v3698, %v3700
    %v3702 = vrot.slane %v3688, %v3701
    %v3703 = vcombine.low %v3602, %v3610
    %v3704 = vcombine.high %v3602, %v3610
    %v3706 = vunpack.c.l.s4 1983009808
    %v3707 = vunpack.c.0.s8 %v3706
    %v3708 = vlaneseq
    %v3709 = vshrl.u32 %v3708, 7
    %v3710 = vsub.s32 %v3707, %v3709
    %v3711 = vrot.slane %v3703, %v3710
    %v3713 = vunpack.c.l.s4 1983009808
    %v3714 = vunpack.c.0.s8 %v3713
    %v3715 = vlaneseq
    %v3716 = vshrl.u32 %v3715, 7
    %v3717 = vsub.s32 %v3714, %v3716
    %v3718 = vrot.slane %v3704, %v3717
    %v3719 = vcombine.low %v3695, %v3711
    %v3720 = vcombine.high %v3695, %v3711
    %v3722 = vunpack.c.l.s4 1934713408
    %v3723 = vunpack.c.0.s8 %v3722
    %v3724 = vlaneseq
    %v3725 = vshrl.u32 %v3724, 7
    %v3726 = vsub.s32 %v3723, %v3725
    %v3727 = vrot.slane %v3719, %v3726
    %v3729 = vunpack.c.l.s4 1934713408
    %v3730 = vunpack.c.0.s8 %v3729
    %v3731 = vlaneseq
    %v3732 = vshrl.u32 %v3731, 7
    %v3733 = vsub.s32 %v3730, %v3732
    %v3734 = vrot.slane %v3720, %v3733
    %v3735 = vcombine.low %v3702, %v3718
    %v3736 = vcombine.high %v3702, %v3718
    %v3738 = vunpack.c.l.s4 1934713408
    %v3739 = vunpack.c.0.s8 %v3738
    %v3740 = vlaneseq
    %v3741 = vshrl.u32 %v3740, 7
    %v3742 = vsub.s32 %v3739, %v3741
    %v3743 = vrot.slane %v3735, %v3742
    %v3745 = vunpack.c.l.s4 1934713408
    %v3746 = vunpack.c.0.s8 %v3745
    %v3747 = vlaneseq
    %v3748 = vshrl.u32 %v3747, 7
    %v3749 = vsub.s32 %v3746, %v3748
    %v3750 = vrot.slane %v3736, %v3749
    %v3751 = vcombine.high %v3727, 0.0
    %v3752 = vcombine.high %v3734, 0.0
    %v3753 = vcombine.high %v3743, 0.0
    %v3754 = vcombine.high %v3750, 0.0
    %v3755 = vcombine.low %v3659, %v3666
    %v3757 = vunpack.c.l.s4 1983009808
    %v3758 = vunpack.c.0.s8 %v3757
    %v3759 = vlaneseq
    %v3760 = vshrl.u32 %v3759, 7
    %v3761 = vsub.s32 %v3758, %v3760
    %v3762 = vrot.slane %v3755, %v3761
    %v3763 = vcombine.low %v3683, %v3684
    %v3765 = vunpack.c.l.s4 1983009808
    %v3766 = vunpack.c.0.s8 %v3765
    %v3767 = vlaneseq
    %v3768 = vshrl.u32 %v3767, 7
    %v3769 = vsub.s32 %v3766, %v3768
    %v3770 = vrot.slane %v3763, %v3769
    %v3771 = vcombine.low %v3675, %v3682
    %v3773 = vunpack.c.l.s4 1983009808
    %v3774 = vunpack.c.0.s8 %v3773
    %v3775 = vlaneseq
    %v3776 = vshrl.u32 %v3775, 7
    %v3777 = vsub.s32 %v3774, %v3776
    %v3778 = vrot.slane %v3771, %v3777
    %v3779 = vcombine.low %v3685, %v3686
    %v3781 = vunpack.c.l.s4 1983009808
    %v3782 = vunpack.c.0.s8 %v3781
    %v3783 = vlaneseq
    %v3784 = vshrl.u32 %v3783, 7
    %v3785 = vsub.s32 %v3782, %v3784
    %v3786 = vrot.slane %v3779, %v3785
    %v3787 = vcombine.low %v3762, %v3770
    %v3788 = vcombine.high %v3762, %v3770
    %v3790 = vunpack.c.l.s4 1934713408
    %v3791 = vunpack.c.0.s8 %v3790
    %v3792 = vlaneseq
    %v3793 = vshrl.u32 %v3792, 7
    %v3794 = vsub.s32 %v3791, %v3793
    %v3795 = vrot.slane %v3787, %v3794
    %v3797 = vunpack.c.l.s4 1934713408
    %v3798 = vunpack.c.0.s8 %v3797
    %v3799 = vlaneseq
    %v3800 = vshrl.u32 %v3799, 7
    %v3801 = vsub.s32 %v3798, %v3800
    %v3802 = vrot.slane %v3788, %v3801
    %v3803 = vcombine.low %v3778, %v3786
    %v3804 = vcombine.high %v3778, %v3786
    %v3806 = vunpack.c.l.s4 1934713408
    %v3807 = vunpack.c.0.s8 %v3806
    %v3808 = vlaneseq
    %v3809 = vshrl.u32 %v3808, 7
    %v3810 = vsub.s32 %v3807, %v3809
    %v3811 = vrot.slane %v3803, %v3810
    %v3813 = vunpack.c.l.s4 1934713408
    %v3814 = vunpack.c.0.s8 %v3813
    %v3815 = vlaneseq
    %v3816 = vshrl.u32 %v3815, 7
    %v3817 = vsub.s32 %v3814, %v3816
    %v3818 = vrot.slane %v3804, %v3817
    %v3819 = vcombine.low %v3795, %v3811
    %v3820 = vcombine.high %v3795, %v3811
    %v3821 = vcombine.low %v3802, %v3818
    %v3822 = vcombine.high %v3802, %v3818
    %v3823 = vcombine.low %v3727, %v3734
    %v3825 = vunpack.c.l.s4 1983009808
    %v3826 = vunpack.c.0.s8 %v3825
    %v3827 = vlaneseq
    %v3828 = vshrl.u32 %v3827, 7
    %v3829 = vsub.s32 %v3826, %v3828
    %v3830 = vrot.slane %v3823, %v3829
    %v3831 = vcombine.low %v3751, %v3752
    %v3833 = vunpack.c.l.s4 1983009808
    %v3834 = vunpack.c.0.s8 %v3833
    %v3835 = vlaneseq
    %v3836 = vshrl.u32 %v3835, 7
    %v3837 = vsub.s32 %v3834, %v3836
    %v3838 = vrot.slane %v3831, %v3837
    %v3839 = vcombine.low %v3743, %v3750
    %v3841 = vunpack.c.l.s4 1983009808
    %v3842 = vunpack.c.0.s8 %v3841
    %v3843 = vlaneseq
    %v3844 = vshrl.u32 %v3843, 7
    %v3845 = vsub.s32 %v3842, %v3844
    %v3846 = vrot.slane %v3839, %v3845
    %v3847 = vcombine.low %v3753, %v3754
    %v3849 = vunpack.c.l.s4 1983009808
    %v3850 = vunpack.c.0.s8 %v3849
    %v3851 = vlaneseq
    %v3852 = vshrl.u32 %v3851, 7
    %v3853 = vsub.s32 %v3850, %v3852
    %v3854 = vrot.slane %v3847, %v3853
    %v3855 = vcombine.low %v3830, %v3838
    %v3856 = vcombine.high %v3830, %v3838
    %v3858 = vunpack.c.l.s4 1934713408
    %v3859 = vunpack.c.0.s8 %v3858
    %v3860 = vlaneseq
    %v3861 = vshrl.u32 %v3860, 7
    %v3862 = vsub.s32 %v3859, %v3861
    %v3863 = vrot.slane %v3855, %v3862
    %v3865 = vunpack.c.l.s4 1934713408
    %v3866 = vunpack.c.0.s8 %v3865
    %v3867 = vlaneseq
    %v3868 = vshrl.u32 %v3867, 7
    %v3869 = vsub.s32 %v3866, %v3868
    %v3870 = vrot.slane %v3856, %v3869
    %v3871 = vcombine.low %v3846, %v3854
    %v3872 = vcombine.high %v3846, %v3854
    %v3874 = vunpack.c.l.s4 1934713408
    %v3875 = vunpack.c.0.s8 %v3874
    %v3876 = vlaneseq
    %v3877 = vshrl.u32 %v3876, 7
    %v3878 = vsub.s32 %v3875, %v3877
    %v3879 = vrot.slane %v3871, %v3878
    %v3881 = vunpack.c.l.s4 1934713408
    %v3882 = vunpack.c.0.s8 %v3881
    %v3883 = vlaneseq
    %v3884 = vshrl.u32 %v3883, 7
    %v3885 = vsub.s32 %v3882, %v3884
    %v3886 = vrot.slane %v3872, %v3885
    %v3887 = vcombine.low %v3863, %v3879
    %v3888 = vcombine.high %v3863, %v3879
    %v3889 = vcombine.low %v3870, %v3886
    %v3890 = vcombine.high %v3870, %v3886
    %3891 = vrot.lane.b32.xlu0 %v3295, 64
    %v3892 = vpop.permute.xlu0 %3891
    %3893 = vrot.lane.b32.xlu0 %v3300, 64
    %v3894 = vpop.permute.xlu0 %3893
    %3895 = vrot.lane.b32.xlu0 %v3306, 64
    %v3896 = vpop.permute.xlu0 %3895
    %3897 = vrot.lane.b32.xlu0 %v3308, 64
    %v3898 = vpop.permute.xlu0 %3897
    %3899 = vrot.lane.b32.xlu0 %v3312, 64
    %v3900 = vpop.permute.xlu0 %3899
    %3901 = vrot.lane.b32.xlu0 %v3314, 64
    %v3902 = vpop.permute.xlu0 %3901
    %3903 = vrot.lane.b32.xlu0 %v3318, 64
    %v3904 = vpop.permute.xlu0 %3903
    %3905 = vrot.lane.b32.xlu0 %v3320, 64
    %v3906 = vpop.permute.xlu0 %3905
    %v3915 = vcombine.low %v3892, %v3900
    %v3916 = vcombine.high %v3892, %v3900
    %v3918 = vunpack.c.l.s4 1983009808
    %v3919 = vunpack.c.0.s8 %v3918
    %v3920 = vlaneseq
    %v3921 = vshrl.u32 %v3920, 7
    %v3922 = vsub.s32 %v3919, %v3921
    %v3923 = vrot.slane %v3915, %v3922
    %v3925 = vunpack.c.l.s4 1983009808
    %v3926 = vunpack.c.0.s8 %v3925
    %v3927 = vlaneseq
    %v3928 = vshrl.u32 %v3927, 7
    %v3929 = vsub.s32 %v3926, %v3928
    %v3930 = vrot.slane %v3916, %v3929
    %v3931 = vcombine.low %v3896, %v3904
    %v3932 = vcombine.high %v3896, %v3904
    %v3934 = vunpack.c.l.s4 1983009808
    %v3935 = vunpack.c.0.s8 %v3934
    %v3936 = vlaneseq
    %v3937 = vshrl.u32 %v3936, 7
    %v3938 = vsub.s32 %v3935, %v3937
    %v3939 = vrot.slane %v3931, %v3938
    %v3941 = vunpack.c.l.s4 1983009808
    %v3942 = vunpack.c.0.s8 %v3941
    %v3943 = vlaneseq
    %v3944 = vshrl.u32 %v3943, 7
    %v3945 = vsub.s32 %v3942, %v3944
    %v3946 = vrot.slane %v3932, %v3945
    %v3947 = vcombine.low %v3923, %v3939
    %v3948 = vcombine.high %v3923, %v3939
    %v3950 = vunpack.c.l.s4 1934713408
    %v3951 = vunpack.c.0.s8 %v3950
    %v3952 = vlaneseq
    %v3953 = vshrl.u32 %v3952, 7
    %v3954 = vsub.s32 %v3951, %v3953
    %v3955 = vrot.slane %v3947, %v3954
    %v3957 = vunpack.c.l.s4 1934713408
    %v3958 = vunpack.c.0.s8 %v3957
    %v3959 = vlaneseq
    %v3960 = vshrl.u32 %v3959, 7
    %v3961 = vsub.s32 %v3958, %v3960
    %v3962 = vrot.slane %v3948, %v3961
    %v3963 = vcombine.low %v3930, %v3946
    %v3964 = vcombine.high %v3930, %v3946
    %v3966 = vunpack.c.l.s4 1934713408
    %v3967 = vunpack.c.0.s8 %v3966
    %v3968 = vlaneseq
    %v3969 = vshrl.u32 %v3968, 7
    %v3970 = vsub.s32 %v3967, %v3969
    %v3971 = vrot.slane %v3963, %v3970
    %v3973 = vunpack.c.l.s4 1934713408
    %v3974 = vunpack.c.0.s8 %v3973
    %v3975 = vlaneseq
    %v3976 = vshrl.u32 %v3975, 7
    %v3977 = vsub.s32 %v3974, %v3976
    %v3978 = vrot.slane %v3964, %v3977
    %v3979 = vcombine.high %v3955, 0.0
    %v3980 = vcombine.high %v3962, 0.0
    %v3981 = vcombine.high %v3971, 0.0
    %v3982 = vcombine.high %v3978, 0.0
    %v3983 = vcombine.low %v3894, %v3902
    %v3984 = vcombine.high %v3894, %v3902
    %v3986 = vunpack.c.l.s4 1983009808
    %v3987 = vunpack.c.0.s8 %v3986
    %v3988 = vlaneseq
    %v3989 = vshrl.u32 %v3988, 7
    %v3990 = vsub.s32 %v3987, %v3989
    %v3991 = vrot.slane %v3983, %v3990
    %v3993 = vunpack.c.l.s4 1983009808
    %v3994 = vunpack.c.0.s8 %v3993
    %v3995 = vlaneseq
    %v3996 = vshrl.u32 %v3995, 7
    %v3997 = vsub.s32 %v3994, %v3996
    %v3998 = vrot.slane %v3984, %v3997
    %v3999 = vcombine.low %v3898, %v3906
    %v4000 = vcombine.high %v3898, %v3906
    %v4002 = vunpack.c.l.s4 1983009808
    %v4003 = vunpack.c.0.s8 %v4002
    %v4004 = vlaneseq
    %v4005 = vshrl.u32 %v4004, 7
    %v4006 = vsub.s32 %v4003, %v4005
    %v4007 = vrot.slane %v3999, %v4006
    %v4009 = vunpack.c.l.s4 1983009808
    %v4010 = vunpack.c.0.s8 %v4009
    %v4011 = vlaneseq
    %v4012 = vshrl.u32 %v4011, 7
    %v4013 = vsub.s32 %v4010, %v4012
    %v4014 = vrot.slane %v4000, %v4013
    %v4015 = vcombine.low %v3991, %v4007
    %v4016 = vcombine.high %v3991, %v4007
    %v4018 = vunpack.c.l.s4 1934713408
    %v4019 = vunpack.c.0.s8 %v4018
    %v4020 = vlaneseq
    %v4021 = vshrl.u32 %v4020, 7
    %v4022 = vsub.s32 %v4019, %v4021
    %v4023 = vrot.slane %v4015, %v4022
    %v4025 = vunpack.c.l.s4 1934713408
    %v4026 = vunpack.c.0.s8 %v4025
    %v4027 = vlaneseq
    %v4028 = vshrl.u32 %v4027, 7
    %v4029 = vsub.s32 %v4026, %v4028
    %v4030 = vrot.slane %v4016, %v4029
    %v4031 = vcombine.low %v3998, %v4014
    %v4032 = vcombine.high %v3998, %v4014
    %v4034 = vunpack.c.l.s4 1934713408
    %v4035 = vunpack.c.0.s8 %v4034
    %v4036 = vlaneseq
    %v4037 = vshrl.u32 %v4036, 7
    %v4038 = vsub.s32 %v4035, %v4037
    %v4039 = vrot.slane %v4031, %v4038
    %v4041 = vunpack.c.l.s4 1934713408
    %v4042 = vunpack.c.0.s8 %v4041
    %v4043 = vlaneseq
    %v4044 = vshrl.u32 %v4043, 7
    %v4045 = vsub.s32 %v4042, %v4044
    %v4046 = vrot.slane %v4032, %v4045
    %v4047 = vcombine.high %v4023, 0.0
    %v4048 = vcombine.high %v4030, 0.0
    %v4049 = vcombine.high %v4039, 0.0
    %v4050 = vcombine.high %v4046, 0.0
    %v4051 = vcombine.low %v3955, %v3962
    %v4053 = vunpack.c.l.s4 1983009808
    %v4054 = vunpack.c.0.s8 %v4053
    %v4055 = vlaneseq
    %v4056 = vshrl.u32 %v4055, 7
    %v4057 = vsub.s32 %v4054, %v4056
    %v4058 = vrot.slane %v4051, %v4057
    %v4059 = vcombine.low %v3979, %v3980
    %v4061 = vunpack.c.l.s4 1983009808
    %v4062 = vunpack.c.0.s8 %v4061
    %v4063 = vlaneseq
    %v4064 = vshrl.u32 %v4063, 7
    %v4065 = vsub.s32 %v4062, %v4064
    %v4066 = vrot.slane %v4059, %v4065
    %v4067 = vcombine.low %v3971, %v3978
    %v4069 = vunpack.c.l.s4 1983009808
    %v4070 = vunpack.c.0.s8 %v4069
    %v4071 = vlaneseq
    %v4072 = vshrl.u32 %v4071, 7
    %v4073 = vsub.s32 %v4070, %v4072
    %v4074 = vrot.slane %v4067, %v4073
    %v4075 = vcombine.low %v3981, %v3982
    %v4077 = vunpack.c.l.s4 1983009808
    %v4078 = vunpack.c.0.s8 %v4077
    %v4079 = vlaneseq
    %v4080 = vshrl.u32 %v4079, 7
    %v4081 = vsub.s32 %v4078, %v4080
    %v4082 = vrot.slane %v4075, %v4081
    %v4083 = vcombine.low %v4058, %v4066
    %v4084 = vcombine.high %v4058, %v4066
    %v4086 = vunpack.c.l.s4 1934713408
    %v4087 = vunpack.c.0.s8 %v4086
    %v4088 = vlaneseq
    %v4089 = vshrl.u32 %v4088, 7
    %v4090 = vsub.s32 %v4087, %v4089
    %v4091 = vrot.slane %v4083, %v4090
    %v4093 = vunpack.c.l.s4 1934713408
    %v4094 = vunpack.c.0.s8 %v4093
    %v4095 = vlaneseq
    %v4096 = vshrl.u32 %v4095, 7
    %v4097 = vsub.s32 %v4094, %v4096
    %v4098 = vrot.slane %v4084, %v4097
    %v4099 = vcombine.low %v4074, %v4082
    %v4100 = vcombine.high %v4074, %v4082
    %v4102 = vunpack.c.l.s4 1934713408
    %v4103 = vunpack.c.0.s8 %v4102
    %v4104 = vlaneseq
    %v4105 = vshrl.u32 %v4104, 7
    %v4106 = vsub.s32 %v4103, %v4105
    %v4107 = vrot.slane %v4099, %v4106
    %v4109 = vunpack.c.l.s4 1934713408
    %v4110 = vunpack.c.0.s8 %v4109
    %v4111 = vlaneseq
    %v4112 = vshrl.u32 %v4111, 7
    %v4113 = vsub.s32 %v4110, %v4112
    %v4114 = vrot.slane %v4100, %v4113
    %v4115 = vcombine.low %v4091, %v4107
    %v4116 = vcombine.high %v4091, %v4107
    %v4117 = vcombine.low %v4098, %v4114
    %v4118 = vcombine.high %v4098, %v4114
    %v4119 = vcombine.low %v4023, %v4030
    %v4121 = vunpack.c.l.s4 1983009808
    %v4122 = vunpack.c.0.s8 %v4121
    %v4123 = vlaneseq
    %v4124 = vshrl.u32 %v4123, 7
    %v4125 = vsub.s32 %v4122, %v4124
    %v4126 = vrot.slane %v4119, %v4125
    %v4127 = vcombine.low %v4047, %v4048
    %v4129 = vunpack.c.l.s4 1983009808
    %v4130 = vunpack.c.0.s8 %v4129
    %v4131 = vlaneseq
    %v4132 = vshrl.u32 %v4131, 7
    %v4133 = vsub.s32 %v4130, %v4132
    %v4134 = vrot.slane %v4127, %v4133
    %v4135 = vcombine.low %v4039, %v4046
    %v4137 = vunpack.c.l.s4 1983009808
    %v4138 = vunpack.c.0.s8 %v4137
    %v4139 = vlaneseq
    %v4140 = vshrl.u32 %v4139, 7
    %v4141 = vsub.s32 %v4138, %v4140
    %v4142 = vrot.slane %v4135, %v4141
    %v4143 = vcombine.low %v4049, %v4050
    %v4145 = vunpack.c.l.s4 1983009808
    %v4146 = vunpack.c.0.s8 %v4145
    %v4147 = vlaneseq
    %v4148 = vshrl.u32 %v4147, 7
    %v4149 = vsub.s32 %v4146, %v4148
    %v4150 = vrot.slane %v4143, %v4149
    %v4151 = vcombine.low %v4126, %v4134
    %v4152 = vcombine.high %v4126, %v4134
    %v4154 = vunpack.c.l.s4 1934713408
    %v4155 = vunpack.c.0.s8 %v4154
    %v4156 = vlaneseq
    %v4157 = vshrl.u32 %v4156, 7
    %v4158 = vsub.s32 %v4155, %v4157
    %v4159 = vrot.slane %v4151, %v4158
    %v4161 = vunpack.c.l.s4 1934713408
    %v4162 = vunpack.c.0.s8 %v4161
    %v4163 = vlaneseq
    %v4164 = vshrl.u32 %v4163, 7
    %v4165 = vsub.s32 %v4162, %v4164
    %v4166 = vrot.slane %v4152, %v4165
    %v4167 = vcombine.low %v4142, %v4150
    %v4168 = vcombine.high %v4142, %v4150
    %v4170 = vunpack.c.l.s4 1934713408
    %v4171 = vunpack.c.0.s8 %v4170
    %v4172 = vlaneseq
    %v4173 = vshrl.u32 %v4172, 7
    %v4174 = vsub.s32 %v4171, %v4173
    %v4175 = vrot.slane %v4167, %v4174
    %v4177 = vunpack.c.l.s4 1934713408
    %v4178 = vunpack.c.0.s8 %v4177
    %v4179 = vlaneseq
    %v4180 = vshrl.u32 %v4179, 7
    %v4181 = vsub.s32 %v4178, %v4180
    %v4182 = vrot.slane %v4168, %v4181
    %v4183 = vcombine.low %v4159, %v4175
    %v4184 = vcombine.high %v4159, %v4175
    %v4185 = vcombine.low %v4166, %v4182
    %v4186 = vcombine.high %v4166, %v4182
    %v4188 = vsel %vm1220, %v3523, 0
    %v4191 = vsel %vm1220, %v3819, 0
    %4193 = vmatprep.subr.mxu0 0.0
    %4194 = vmatpush1.xpose.msra.mxu0 %v4191
    %4195 = vmatprep.subr.mxu0 0.0
    %4196 = vmatpush1.xpose.msra.mxu0 0.0
    %4197 = vmatprep.subr.mxu0 0.0
    %4198 = vmatpush1.xpose.msra.mxu0 0.0
    %4199 = vmatprep.subr.mxu0 0.0
    %4200 = vmatpush1.xpose.msra.mxu0 0.0
    %4201 = vmatprep.subr.mxu0 0.0
    %4202 = vmatpush1.xpose.msra.mxu0 0.0
    %4203 = vmatprep.subr.mxu0 0.0
    %4204 = vmatpush1.xpose.msra.mxu0 0.0
    %4205 = vmatprep.subr.mxu0 0.0
    %4206 = vmatpush1.xpose.msra.mxu0 0.0
    %4207 = vmatprep.subr.mxu0 0.0
    %4208 = vmatpush1.xpose.msra.mxu0 0.0
    %4209 = vmatprep.subr.mxu0 0.0
    %4210 = vmatpush1.xpose.msra.mxu0 0.0
    %4211 = vmatprep.subr.mxu0 0.0
    %4212 = vmatpush1.xpose.msra.mxu0 0.0
    %4213 = vmatprep.subr.mxu0 0.0
    %4214 = vmatpush1.xpose.msra.mxu0 0.0
    %4215 = vmatprep.subr.mxu0 0.0
    %4216 = vmatpush1.xpose.msra.mxu0 0.0
    %4217 = vmatprep.subr.mxu0 0.0
    %4218 = vmatpush1.xpose.msra.mxu0 0.0
    %4219 = vmatprep.subr.mxu0 0.0
    %4220 = vmatpush1.xpose.msra.mxu0 0.0
    %4221 = vmatprep.subr.mxu0 0.0
    %4222 = vmatpush1.xpose.msra.mxu0 0.0
    %4223 = vmatprep.subr.mxu0 0.0
    %4224 = vmatpush1.xpose.msra.mxu0 0.0
    %4225 = vmatprep.subr.mxu0 0.0
    %4226 = vmatpush1.xpose.msra.mxu0 0.0
    %4227 = vmatprep.subr.mxu0 0.0
    %4228 = vmatpush1.xpose.msra.mxu0 0.0
    %4229 = vmatprep.subr.mxu0 0.0
    %4230 = vmatpush1.xpose.msra.mxu0 0.0
    %4231 = vmatprep.subr.mxu0 0.0
    %4232 = vmatpush1.xpose.msra.mxu0 0.0
    %4233 = vmatprep.subr.mxu0 0.0
    %4234 = vmatpush1.xpose.msra.mxu0 0.0
    %4235 = vmatprep.subr.mxu0 0.0
    %4236 = vmatpush1.xpose.msra.mxu0 0.0
    %4237 = vmatprep.subr.mxu0 0.0
    %4238 = vmatpush1.xpose.msra.mxu0 0.0
    %4239 = vmatprep.subr.mxu0 0.0
    %4240 = vmatpush1.xpose.msra.mxu0 0.0
    %4241 = vmatprep.subr.mxu0 0.0
    %4242 = vmatpush1.xpose.msra.mxu0 0.0
    %4243 = vmatprep.subr.mxu0 0.0
    %4244 = vmatpush1.xpose.msra.mxu0 0.0
    %4245 = vmatprep.subr.mxu0 0.0
    %4246 = vmatpush1.xpose.msra.mxu0 0.0
    %4247 = vmatprep.subr.mxu0 0.0
    %4248 = vmatpush1.xpose.msra.mxu0 0.0
    %4249 = vmatprep.subr.mxu0 0.0
    %4250 = vmatpush1.xpose.msra.mxu0 0.0
    %4251 = vmatprep.subr.mxu0 0.0
    %4252 = vmatpush1.xpose.msra.mxu0 0.0
    %4253 = vmatprep.subr.mxu0 0.0
    %4254 = vmatpush1.xpose.msra.mxu0 0.0
    %4255 = vmatprep.subr.mxu0 0.0
    %4256 = vmatpush1.xpose.msra.mxu0 0.0
    %4257 = vmatprep.mubr.f32.mxu0 0.0
    %4258 = vmatmul.mubr.f32.gmra.mrb[0].mxu0 %v4188
    %v4259 = vpop.f32.mrb[0].mxu0
    %v4260 = vadd.f32 %v1213, %v4259
    %v4261 = vpop.f32.mrb[0].mxu0
    %4262 = vdwg.mxu0
    %v4264 = vsel %vm1220, %v3524, 0
    %v4267 = vsel %vm1220, %v3820, 0
    %4269 = vmatprep.subr.mxu0 0.0
    %4270 = vmatpush1.xpose.msra.mxu0 %v4267
    %4271 = vmatprep.subr.mxu0 0.0
    %4272 = vmatpush1.xpose.msra.mxu0 0.0
    %4273 = vmatprep.subr.mxu0 0.0
    %4274 = vmatpush1.xpose.msra.mxu0 0.0
    %4275 = vmatprep.subr.mxu0 0.0
    %4276 = vmatpush1.xpose.msra.mxu0 0.0
    %4277 = vmatprep.subr.mxu0 0.0
    %4278 = vmatpush1.xpose.msra.mxu0 0.0
    %4279 = vmatprep.subr.mxu0 0.0
    %4280 = vmatpush1.xpose.msra.mxu0 0.0
    %4281 = vmatprep.subr.mxu0 0.0
    %4282 = vmatpush1.xpose.msra.mxu0 0.0
    %4283 = vmatprep.subr.mxu0 0.0
    %4284 = vmatpush1.xpose.msra.mxu0 0.0
    %4285 = vmatprep.subr.mxu0 0.0
    %4286 = vmatpush1.xpose.msra.mxu0 0.0
    %4287 = vmatprep.subr.mxu0 0.0
    %4288 = vmatpush1.xpose.msra.mxu0 0.0
    %4289 = vmatprep.subr.mxu0 0.0
    %4290 = vmatpush1.xpose.msra.mxu0 0.0
    %4291 = vmatprep.subr.mxu0 0.0
    %4292 = vmatpush1.xpose.msra.mxu0 0.0
    %4293 = vmatprep.subr.mxu0 0.0
    %4294 = vmatpush1.xpose.msra.mxu0 0.0
    %4295 = vmatprep.subr.mxu0 0.0
    %4296 = vmatpush1.xpose.msra.mxu0 0.0
    %4297 = vmatprep.subr.mxu0 0.0
    %4298 = vmatpush1.xpose.msra.mxu0 0.0
    %4299 = vmatprep.subr.mxu0 0.0
    %4300 = vmatpush1.xpose.msra.mxu0 0.0
    %4301 = vmatprep.subr.mxu0 0.0
    %4302 = vmatpush1.xpose.msra.mxu0 0.0
    %4303 = vmatprep.subr.mxu0 0.0
    %4304 = vmatpush1.xpose.msra.mxu0 0.0
    %4305 = vmatprep.subr.mxu0 0.0
    %4306 = vmatpush1.xpose.msra.mxu0 0.0
    %4307 = vmatprep.subr.mxu0 0.0
    %4308 = vmatpush1.xpose.msra.mxu0 0.0
    %4309 = vmatprep.subr.mxu0 0.0
    %4310 = vmatpush1.xpose.msra.mxu0 0.0
    %4311 = vmatprep.subr.mxu0 0.0
    %4312 = vmatpush1.xpose.msra.mxu0 0.0
    %4313 = vmatprep.subr.mxu0 0.0
    %4314 = vmatpush1.xpose.msra.mxu0 0.0
    %4315 = vmatprep.subr.mxu0 0.0
    %4316 = vmatpush1.xpose.msra.mxu0 0.0
    %4317 = vmatprep.subr.mxu0 0.0
    %4318 = vmatpush1.xpose.msra.mxu0 0.0
    %4319 = vmatprep.subr.mxu0 0.0
    %4320 = vmatpush1.xpose.msra.mxu0 0.0
    %4321 = vmatprep.subr.mxu0 0.0
    %4322 = vmatpush1.xpose.msra.mxu0 0.0
    %4323 = vmatprep.subr.mxu0 0.0
    %4324 = vmatpush1.xpose.msra.mxu0 0.0
    %4325 = vmatprep.subr.mxu0 0.0
    %4326 = vmatpush1.xpose.msra.mxu0 0.0
    %4327 = vmatprep.subr.mxu0 0.0
    %4328 = vmatpush1.xpose.msra.mxu0 0.0
    %4329 = vmatprep.subr.mxu0 0.0
    %4330 = vmatpush1.xpose.msra.mxu0 0.0
    %4331 = vmatprep.subr.mxu0 0.0
    %4332 = vmatpush1.xpose.msra.mxu0 0.0
    %4333 = vmatprep.mubr.f32.mxu0 0.0
    %4334 = vmatmul.mubr.f32.gmra.mrb[0].mxu0 %v4264
    %v4335 = vpop.f32.mrb[0].mxu0
    %v4336 = vadd.f32 %v1213, %v4335
    %v4337 = vpop.f32.mrb[0].mxu0
    %4338 = vdwg.mxu0
    %v4340 = vsel %vm1220, %v3525, 0
    %v4343 = vsel %vm1220, %v3821, 0
    %4345 = vmatprep.subr.mxu0 0.0
    %4346 = vmatpush1.xpose.msra.mxu0 %v4343
    %4347 = vmatprep.subr.mxu0 0.0
    %4348 = vmatpush1.xpose.msra.mxu0 0.0
    %4349 = vmatprep.subr.mxu0 0.0
    %4350 = vmatpush1.xpose.msra.mxu0 0.0
    %4351 = vmatprep.subr.mxu0 0.0
    %4352 = vmatpush1.xpose.msra.mxu0 0.0
    %4353 = vmatprep.subr.mxu0 0.0
    %4354 = vmatpush1.xpose.msra.mxu0 0.0
    %4355 = vmatprep.subr.mxu0 0.0
    %4356 = vmatpush1.xpose.msra.mxu0 0.0
    %4357 = vmatprep.subr.mxu0 0.0
    %4358 = vmatpush1.xpose.msra.mxu0 0.0
    %4359 = vmatprep.subr.mxu0 0.0
    %4360 = vmatpush1.xpose.msra.mxu0 0.0
    %4361 = vmatprep.subr.mxu0 0.0
    %4362 = vmatpush1.xpose.msra.mxu0 0.0
    %4363 = vmatprep.subr.mxu0 0.0
    %4364 = vmatpush1.xpose.msra.mxu0 0.0
    %4365 = vmatprep.subr.mxu0 0.0
    %4366 = vmatpush1.xpose.msra.mxu0 0.0
    %4367 = vmatprep.subr.mxu0 0.0
    %4368 = vmatpush1.xpose.msra.mxu0 0.0
    %4369 = vmatprep.subr.mxu0 0.0
    %4370 = vmatpush1.xpose.msra.mxu0 0.0
    %4371 = vmatprep.subr.mxu0 0.0
    %4372 = vmatpush1.xpose.msra.mxu0 0.0
    %4373 = vmatprep.subr.mxu0 0.0
    %4374 = vmatpush1.xpose.msra.mxu0 0.0
    %4375 = vmatprep.subr.mxu0 0.0
    %4376 = vmatpush1.xpose.msra.mxu0 0.0
    %4377 = vmatprep.subr.mxu0 0.0
    %4378 = vmatpush1.xpose.msra.mxu0 0.0
    %4379 = vmatprep.subr.mxu0 0.0
    %4380 = vmatpush1.xpose.msra.mxu0 0.0
    %4381 = vmatprep.subr.mxu0 0.0
    %4382 = vmatpush1.xpose.msra.mxu0 0.0
    %4383 = vmatprep.subr.mxu0 0.0
    %4384 = vmatpush1.xpose.msra.mxu0 0.0
    %4385 = vmatprep.subr.mxu0 0.0
    %4386 = vmatpush1.xpose.msra.mxu0 0.0
    %4387 = vmatprep.subr.mxu0 0.0
    %4388 = vmatpush1.xpose.msra.mxu0 0.0
    %4389 = vmatprep.subr.mxu0 0.0
    %4390 = vmatpush1.xpose.msra.mxu0 0.0
    %4391 = vmatprep.subr.mxu0 0.0
    %4392 = vmatpush1.xpose.msra.mxu0 0.0
    %4393 = vmatprep.subr.mxu0 0.0
    %4394 = vmatpush1.xpose.msra.mxu0 0.0
    %4395 = vmatprep.subr.mxu0 0.0
    %4396 = vmatpush1.xpose.msra.mxu0 0.0
    %4397 = vmatprep.subr.mxu0 0.0
    %4398 = vmatpush1.xpose.msra.mxu0 0.0
    %4399 = vmatprep.subr.mxu0 0.0
    %4400 = vmatpush1.xpose.msra.mxu0 0.0
    %4401 = vmatprep.subr.mxu0 0.0
    %4402 = vmatpush1.xpose.msra.mxu0 0.0
    %4403 = vmatprep.subr.mxu0 0.0
    %4404 = vmatpush1.xpose.msra.mxu0 0.0
    %4405 = vmatprep.subr.mxu0 0.0
    %4406 = vmatpush1.xpose.msra.mxu0 0.0
    %4407 = vmatprep.subr.mxu0 0.0
    %4408 = vmatpush1.xpose.msra.mxu0 0.0
    %4409 = vmatprep.mubr.f32.mxu0 0.0
    %4410 = vmatmul.mubr.f32.gmra.mrb[0].mxu0 %v4340
    %v4411 = vpop.f32.mrb[0].mxu0
    %v4412 = vadd.f32 %v1213, %v4411
    %v4413 = vpop.f32.mrb[0].mxu0
    %4414 = vdwg.mxu0
    %v4416 = vsel %vm1220, %v3526, 0
    %v4419 = vsel %vm1220, %v3822, 0
    %4421 = vmatprep.subr.mxu0 0.0
    %4422 = vmatpush1.xpose.msra.mxu0 %v4419
    %4423 = vmatprep.subr.mxu0 0.0
    %4424 = vmatpush1.xpose.msra.mxu0 0.0
    %4425 = vmatprep.subr.mxu0 0.0
    %4426 = vmatpush1.xpose.msra.mxu0 0.0
    %4427 = vmatprep.subr.mxu0 0.0
    %4428 = vmatpush1.xpose.msra.mxu0 0.0
    %4429 = vmatprep.subr.mxu0 0.0
    %4430 = vmatpush1.xpose.msra.mxu0 0.0
    %4431 = vmatprep.subr.mxu0 0.0
    %4432 = vmatpush1.xpose.msra.mxu0 0.0
    %4433 = vmatprep.subr.mxu0 0.0
    %4434 = vmatpush1.xpose.msra.mxu0 0.0
    %4435 = vmatprep.subr.mxu0 0.0
    %4436 = vmatpush1.xpose.msra.mxu0 0.0
    %4437 = vmatprep.subr.mxu0 0.0
    %4438 = vmatpush1.xpose.msra.mxu0 0.0
    %4439 = vmatprep.subr.mxu0 0.0
    %4440 = vmatpush1.xpose.msra.mxu0 0.0
    %4441 = vmatprep.subr.mxu0 0.0
    %4442 = vmatpush1.xpose.msra.mxu0 0.0
    %4443 = vmatprep.subr.mxu0 0.0
    %4444 = vmatpush1.xpose.msra.mxu0 0.0
    %4445 = vmatprep.subr.mxu0 0.0
    %4446 = vmatpush1.xpose.msra.mxu0 0.0
    %4447 = vmatprep.subr.mxu0 0.0
    %4448 = vmatpush1.xpose.msra.mxu0 0.0
    %4449 = vmatprep.subr.mxu0 0.0
    %4450 = vmatpush1.xpose.msra.mxu0 0.0
    %4451 = vmatprep.subr.mxu0 0.0
    %4452 = vmatpush1.xpose.msra.mxu0 0.0
    %4453 = vmatprep.subr.mxu0 0.0
    %4454 = vmatpush1.xpose.msra.mxu0 0.0
    %4455 = vmatprep.subr.mxu0 0.0
    %4456 = vmatpush1.xpose.msra.mxu0 0.0
    %4457 = vmatprep.subr.mxu0 0.0
    %4458 = vmatpush1.xpose.msra.mxu0 0.0
    %4459 = vmatprep.subr.mxu0 0.0
    %4460 = vmatpush1.xpose.msra.mxu0 0.0
    %4461 = vmatprep.subr.mxu0 0.0
    %4462 = vmatpush1.xpose.msra.mxu0 0.0
    %4463 = vmatprep.subr.mxu0 0.0
    %4464 = vmatpush1.xpose.msra.mxu0 0.0
    %4465 = vmatprep.subr.mxu0 0.0
    %4466 = vmatpush1.xpose.msra.mxu0 0.0
    %4467 = vmatprep.subr.mxu0 0.0
    %4468 = vmatpush1.xpose.msra.mxu0 0.0
    %4469 = vmatprep.subr.mxu0 0.0
    %4470 = vmatpush1.xpose.msra.mxu0 0.0
    %4471 = vmatprep.subr.mxu0 0.0
    %4472 = vmatpush1.xpose.msra.mxu0 0.0
    %4473 = vmatprep.subr.mxu0 0.0
    %4474 = vmatpush1.xpose.msra.mxu0 0.0
    %4475 = vmatprep.subr.mxu0 0.0
    %4476 = vmatpush1.xpose.msra.mxu0 0.0
    %4477 = vmatprep.subr.mxu0 0.0
    %4478 = vmatpush1.xpose.msra.mxu0 0.0
    %4479 = vmatprep.subr.mxu0 0.0
    %4480 = vmatpush1.xpose.msra.mxu0 0.0
    %4481 = vmatprep.subr.mxu0 0.0
    %4482 = vmatpush1.xpose.msra.mxu0 0.0
    %4483 = vmatprep.subr.mxu0 0.0
    %4484 = vmatpush1.xpose.msra.mxu0 0.0
    %4485 = vmatprep.mubr.f32.mxu0 0.0
    %4486 = vmatmul.mubr.f32.gmra.mrb[0].mxu0 %v4416
    %v4487 = vpop.f32.mrb[0].mxu0
    %v4488 = vadd.f32 %v1213, %v4487
    %v4489 = vpop.f32.mrb[0].mxu0
    %4490 = vdwg.mxu0
    %v4492 = vsel %vm1220, %v3591, 0
    %v4495 = vsel %vm1220, %v3887, 0
    %4497 = vmatprep.subr.mxu0 0.0
    %4498 = vmatpush1.xpose.msra.mxu0 %v4495
    %4499 = vmatprep.subr.mxu0 0.0
    %4500 = vmatpush1.xpose.msra.mxu0 0.0
    %4501 = vmatprep.subr.mxu0 0.0
    %4502 = vmatpush1.xpose.msra.mxu0 0.0
    %4503 = vmatprep.subr.mxu0 0.0
    %4504 = vmatpush1.xpose.msra.mxu0 0.0
    %4505 = vmatprep.subr.mxu0 0.0
    %4506 = vmatpush1.xpose.msra.mxu0 0.0
    %4507 = vmatprep.subr.mxu0 0.0
    %4508 = vmatpush1.xpose.msra.mxu0 0.0
    %4509 = vmatprep.subr.mxu0 0.0
    %4510 = vmatpush1.xpose.msra.mxu0 0.0
    %4511 = vmatprep.subr.mxu0 0.0
    %4512 = vmatpush1.xpose.msra.mxu0 0.0
    %4513 = vmatprep.subr.mxu0 0.0
    %4514 = vmatpush1.xpose.msra.mxu0 0.0
    %4515 = vmatprep.subr.mxu0 0.0
    %4516 = vmatpush1.xpose.msra.mxu0 0.0
    %4517 = vmatprep.subr.mxu0 0.0
    %4518 = vmatpush1.xpose.msra.mxu0 0.0
    %4519 = vmatprep.subr.mxu0 0.0
    %4520 = vmatpush1.xpose.msra.mxu0 0.0
    %4521 = vmatprep.subr.mxu0 0.0
    %4522 = vmatpush1.xpose.msra.mxu0 0.0
    %4523 = vmatprep.subr.mxu0 0.0
    %4524 = vmatpush1.xpose.msra.mxu0 0.0
    %4525 = vmatprep.subr.mxu0 0.0
    %4526 = vmatpush1.xpose.msra.mxu0 0.0
    %4527 = vmatprep.subr.mxu0 0.0
    %4528 = vmatpush1.xpose.msra.mxu0 0.0
    %4529 = vmatprep.subr.mxu0 0.0
    %4530 = vmatpush1.xpose.msra.mxu0 0.0
    %4531 = vmatprep.subr.mxu0 0.0
    %4532 = vmatpush1.xpose.msra.mxu0 0.0
    %4533 = vmatprep.subr.mxu0 0.0
    %4534 = vmatpush1.xpose.msra.mxu0 0.0
    %4535 = vmatprep.subr.mxu0 0.0
    %4536 = vmatpush1.xpose.msra.mxu0 0.0
    %4537 = vmatprep.subr.mxu0 0.0
    %4538 = vmatpush1.xpose.msra.mxu0 0.0
    %4539 = vmatprep.subr.mxu0 0.0
    %4540 = vmatpush1.xpose.msra.mxu0 0.0
    %4541 = vmatprep.subr.mxu0 0.0
    %4542 = vmatpush1.xpose.msra.mxu0 0.0
    %4543 = vmatprep.subr.mxu0 0.0
    %4544 = vmatpush1.xpose.msra.mxu0 0.0
    %4545 = vmatprep.subr.mxu0 0.0
    %4546 = vmatpush1.xpose.msra.mxu0 0.0
    %4547 = vmatprep.subr.mxu0 0.0
    %4548 = vmatpush1.xpose.msra.mxu0 0.0
    %4549 = vmatprep.subr.mxu0 0.0
    %4550 = vmatpush1.xpose.msra.mxu0 0.0
    %4551 = vmatprep.subr.mxu0 0.0
    %4552 = vmatpush1.xpose.msra.mxu0 0.0
    %4553 = vmatprep.subr.mxu0 0.0
    %4554 = vmatpush1.xpose.msra.mxu0 0.0
    %4555 = vmatprep.subr.mxu0 0.0
    %4556 = vmatpush1.xpose.msra.mxu0 0.0
    %4557 = vmatprep.subr.mxu0 0.0
    %4558 = vmatpush1.xpose.msra.mxu0 0.0
    %4559 = vmatprep.subr.mxu0 0.0
    %4560 = vmatpush1.xpose.msra.mxu0 0.0
    %4561 = vmatprep.mubr.f32.mxu0 0.0
    %4562 = vmatmul.mubr.f32.gmra.mrb[0].mxu0 %v4492
    %v4563 = vpop.f32.mrb[0].mxu0
    %v4564 = vadd.f32 %v1217, %v4563
    %v4565 = vpop.f32.mrb[0].mxu0
    %4566 = vdwg.mxu0
    %v4568 = vsel %vm1220, %v3592, 0
    %v4571 = vsel %vm1220, %v3888, 0
    %4573 = vmatprep.subr.mxu0 0.0
    %4574 = vmatpush1.xpose.msra.mxu0 %v4571
    %4575 = vmatprep.subr.mxu0 0.0
    %4576 = vmatpush1.xpose.msra.mxu0 0.0
    %4577 = vmatprep.subr.mxu0 0.0
    %4578 = vmatpush1.xpose.msra.mxu0 0.0
    %4579 = vmatprep.subr.mxu0 0.0
    %4580 = vmatpush1.xpose.msra.mxu0 0.0
    %4581 = vmatprep.subr.mxu0 0.0
    %4582 = vmatpush1.xpose.msra.mxu0 0.0
    %4583 = vmatprep.subr.mxu0 0.0
    %4584 = vmatpush1.xpose.msra.mxu0 0.0
    %4585 = vmatprep.subr.mxu0 0.0
    %4586 = vmatpush1.xpose.msra.mxu0 0.0
    %4587 = vmatprep.subr.mxu0 0.0
    %4588 = vmatpush1.xpose.msra.mxu0 0.0
    %4589 = vmatprep.subr.mxu0 0.0
    %4590 = vmatpush1.xpose.msra.mxu0 0.0
    %4591 = vmatprep.subr.mxu0 0.0
    %4592 = vmatpush1.xpose.msra.mxu0 0.0
    %4593 = vmatprep.subr.mxu0 0.0
    %4594 = vmatpush1.xpose.msra.mxu0 0.0
    %4595 = vmatprep.subr.mxu0 0.0
    %4596 = vmatpush1.xpose.msra.mxu0 0.0
    %4597 = vmatprep.subr.mxu0 0.0
    %4598 = vmatpush1.xpose.msra.mxu0 0.0
    %4599 = vmatprep.subr.mxu0 0.0
    %4600 = vmatpush1.xpose.msra.mxu0 0.0
    %4601 = vmatprep.subr.mxu0 0.0
    %4602 = vmatpush1.xpose.msra.mxu0 0.0
    %4603 = vmatprep.subr.mxu0 0.0
    %4604 = vmatpush1.xpose.msra.mxu0 0.0
    %4605 = vmatprep.subr.mxu0 0.0
    %4606 = vmatpush1.xpose.msra.mxu0 0.0
    %4607 = vmatprep.subr.mxu0 0.0
    %4608 = vmatpush1.xpose.msra.mxu0 0.0
    %4609 = vmatprep.subr.mxu0 0.0
    %4610 = vmatpush1.xpose.msra.mxu0 0.0
    %4611 = vmatprep.subr.mxu0 0.0
    %4612 = vmatpush1.xpose.msra.mxu0 0.0
    %4613 = vmatprep.subr.mxu0 0.0
    %4614 = vmatpush1.xpose.msra.mxu0 0.0
    %4615 = vmatprep.subr.mxu0 0.0
    %4616 = vmatpush1.xpose.msra.mxu0 0.0
    %4617 = vmatprep.subr.mxu0 0.0
    %4618 = vmatpush1.xpose.msra.mxu0 0.0
    %4619 = vmatprep.subr.mxu0 0.0
    %4620 = vmatpush1.xpose.msra.mxu0 0.0
    %4621 = vmatprep.subr.mxu0 0.0
    %4622 = vmatpush1.xpose.msra.mxu0 0.0
    %4623 = vmatprep.subr.mxu0 0.0
    %4624 = vmatpush1.xpose.msra.mxu0 0.0
    %4625 = vmatprep.subr.mxu0 0.0
    %4626 = vmatpush1.xpose.msra.mxu0 0.0
    %4627 = vmatprep.subr.mxu0 0.0
    %4628 = vmatpush1.xpose.msra.mxu0 0.0
    %4629 = vmatprep.subr.mxu0 0.0
    %4630 = vmatpush1.xpose.msra.mxu0 0.0
    %4631 = vmatprep.subr.mxu0 0.0
    %4632 = vmatpush1.xpose.msra.mxu0 0.0
    %4633 = vmatprep.subr.mxu0 0.0
    %4634 = vmatpush1.xpose.msra.mxu0 0.0
    %4635 = vmatprep.subr.mxu0 0.0
    %4636 = vmatpush1.xpose.msra.mxu0 0.0
    %4637 = vmatprep.mubr.f32.mxu0 0.0
    %4638 = vmatmul.mubr.f32.gmra.mrb[0].mxu0 %v4568
    %v4639 = vpop.f32.mrb[0].mxu0
    %v4640 = vadd.f32 %v1217, %v4639
    %v4641 = vpop.f32.mrb[0].mxu0
    %4642 = vdwg.mxu0
    %v4644 = vsel %vm1220, %v3593, 0
    %v4647 = vsel %vm1220, %v3889, 0
    %4649 = vmatprep.subr.mxu0 0.0
    %4650 = vmatpush1.xpose.msra.mxu0 %v4647
    %4651 = vmatprep.subr.mxu0 0.0
    %4652 = vmatpush1.xpose.msra.mxu0 0.0
    %4653 = vmatprep.subr.mxu0 0.0
    %4654 = vmatpush1.xpose.msra.mxu0 0.0
    %4655 = vmatprep.subr.mxu0 0.0
    %4656 = vmatpush1.xpose.msra.mxu0 0.0
    %4657 = vmatprep.subr.mxu0 0.0
    %4658 = vmatpush1.xpose.msra.mxu0 0.0
    %4659 = vmatprep.subr.mxu0 0.0
    %4660 = vmatpush1.xpose.msra.mxu0 0.0
    %4661 = vmatprep.subr.mxu0 0.0
    %4662 = vmatpush1.xpose.msra.mxu0 0.0
    %4663 = vmatprep.subr.mxu0 0.0
    %4664 = vmatpush1.xpose.msra.mxu0 0.0
    %4665 = vmatprep.subr.mxu0 0.0
    %4666 = vmatpush1.xpose.msra.mxu0 0.0
    %4667 = vmatprep.subr.mxu0 0.0
    %4668 = vmatpush1.xpose.msra.mxu0 0.0
    %4669 = vmatprep.subr.mxu0 0.0
    %4670 = vmatpush1.xpose.msra.mxu0 0.0
    %4671 = vmatprep.subr.mxu0 0.0
    %4672 = vmatpush1.xpose.msra.mxu0 0.0
    %4673 = vmatprep.subr.mxu0 0.0
    %4674 = vmatpush1.xpose.msra.mxu0 0.0
    %4675 = vmatprep.subr.mxu0 0.0
    %4676 = vmatpush1.xpose.msra.mxu0 0.0
    %4677 = vmatprep.subr.mxu0 0.0
    %4678 = vmatpush1.xpose.msra.mxu0 0.0
    %4679 = vmatprep.subr.mxu0 0.0
    %4680 = vmatpush1.xpose.msra.mxu0 0.0
    %4681 = vmatprep.subr.mxu0 0.0
    %4682 = vmatpush1.xpose.msra.mxu0 0.0
    %4683 = vmatprep.subr.mxu0 0.0
    %4684 = vmatpush1.xpose.msra.mxu0 0.0
    %4685 = vmatprep.subr.mxu0 0.0
    %4686 = vmatpush1.xpose.msra.mxu0 0.0
    %4687 = vmatprep.subr.mxu0 0.0
    %4688 = vmatpush1.xpose.msra.mxu0 0.0
    %4689 = vmatprep.subr.mxu0 0.0
    %4690 = vmatpush1.xpose.msra.mxu0 0.0
    %4691 = vmatprep.subr.mxu0 0.0
    %4692 = vmatpush1.xpose.msra.mxu0 0.0
    %4693 = vmatprep.subr.mxu0 0.0
    %4694 = vmatpush1.xpose.msra.mxu0 0.0
    %4695 = vmatprep.subr.mxu0 0.0
    %4696 = vmatpush1.xpose.msra.mxu0 0.0
    %4697 = vmatprep.subr.mxu0 0.0
    %4698 = vmatpush1.xpose.msra.mxu0 0.0
    %4699 = vmatprep.subr.mxu0 0.0
    %4700 = vmatpush1.xpose.msra.mxu0 0.0
    %4701 = vmatprep.subr.mxu0 0.0
    %4702 = vmatpush1.xpose.msra.mxu0 0.0
    %4703 = vmatprep.subr.mxu0 0.0
    %4704 = vmatpush1.xpose.msra.mxu0 0.0
    %4705 = vmatprep.subr.mxu0 0.0
    %4706 = vmatpush1.xpose.msra.mxu0 0.0
    %4707 = vmatprep.subr.mxu0 0.0
    %4708 = vmatpush1.xpose.msra.mxu0 0.0
    %4709 = vmatprep.subr.mxu0 0.0
    %4710 = vmatpush1.xpose.msra.mxu0 0.0
    %4711 = vmatprep.subr.mxu0 0.0
    %4712 = vmatpush1.xpose.msra.mxu0 0.0
    %4713 = vmatprep.mubr.f32.mxu0 0.0
    %4714 = vmatmul.mubr.f32.gmra.mrb[0].mxu0 %v4644
    %v4715 = vpop.f32.mrb[0].mxu0
    %v4716 = vadd.f32 %v1217, %v4715
    %v4717 = vpop.f32.mrb[0].mxu0
    %4718 = vdwg.mxu0
    %v4720 = vsel %vm1220, %v3594, 0
    %v4723 = vsel %vm1220, %v3890, 0
    %4725 = vmatprep.subr.mxu0 0.0
    %4726 = vmatpush1.xpose.msra.mxu0 %v4723
    %4727 = vmatprep.subr.mxu0 0.0
    %4728 = vmatpush1.xpose.msra.mxu0 0.0
    %4729 = vmatprep.subr.mxu0 0.0
    %4730 = vmatpush1.xpose.msra.mxu0 0.0
    %4731 = vmatprep.subr.mxu0 0.0
    %4732 = vmatpush1.xpose.msra.mxu0 0.0
    %4733 = vmatprep.subr.mxu0 0.0
    %4734 = vmatpush1.xpose.msra.mxu0 0.0
    %4735 = vmatprep.subr.mxu0 0.0
    %4736 = vmatpush1.xpose.msra.mxu0 0.0
    %4737 = vmatprep.subr.mxu0 0.0
    %4738 = vmatpush1.xpose.msra.mxu0 0.0
    %4739 = vmatprep.subr.mxu0 0.0
    %4740 = vmatpush1.xpose.msra.mxu0 0.0
    %4741 = vmatprep.subr.mxu0 0.0
    %4742 = vmatpush1.xpose.msra.mxu0 0.0
    %4743 = vmatprep.subr.mxu0 0.0
    %4744 = vmatpush1.xpose.msra.mxu0 0.0
    %4745 = vmatprep.subr.mxu0 0.0
    %4746 = vmatpush1.xpose.msra.mxu0 0.0
    %4747 = vmatprep.subr.mxu0 0.0
    %4748 = vmatpush1.xpose.msra.mxu0 0.0
    %4749 = vmatprep.subr.mxu0 0.0
    %4750 = vmatpush1.xpose.msra.mxu0 0.0
    %4751 = vmatprep.subr.mxu0 0.0
    %4752 = vmatpush1.xpose.msra.mxu0 0.0
    %4753 = vmatprep.subr.mxu0 0.0
    %4754 = vmatpush1.xpose.msra.mxu0 0.0
    %4755 = vmatprep.subr.mxu0 0.0
    %4756 = vmatpush1.xpose.msra.mxu0 0.0
    %4757 = vmatprep.subr.mxu0 0.0
    %4758 = vmatpush1.xpose.msra.mxu0 0.0
    %4759 = vmatprep.subr.mxu0 0.0
    %4760 = vmatpush1.xpose.msra.mxu0 0.0
    %4761 = vmatprep.subr.mxu0 0.0
    %4762 = vmatpush1.xpose.msra.mxu0 0.0
    %4763 = vmatprep.subr.mxu0 0.0
    %4764 = vmatpush1.xpose.msra.mxu0 0.0
    %4765 = vmatprep.subr.mxu0 0.0
    %4766 = vmatpush1.xpose.msra.mxu0 0.0
    %4767 = vmatprep.subr.mxu0 0.0
    %4768 = vmatpush1.xpose.msra.mxu0 0.0
    %4769 = vmatprep.subr.mxu0 0.0
    %4770 = vmatpush1.xpose.msra.mxu0 0.0
    %4771 = vmatprep.subr.mxu0 0.0
    %4772 = vmatpush1.xpose.msra.mxu0 0.0
    %4773 = vmatprep.subr.mxu0 0.0
    %4774 = vmatpush1.xpose.msra.mxu0 0.0
    %4775 = vmatprep.subr.mxu0 0.0
    %4776 = vmatpush1.xpose.msra.mxu0 0.0
    %4777 = vmatprep.subr.mxu0 0.0
    %4778 = vmatpush1.xpose.msra.mxu0 0.0
    %4779 = vmatprep.subr.mxu0 0.0
    %4780 = vmatpush1.xpose.msra.mxu0 0.0
    %4781 = vmatprep.subr.mxu0 0.0
    %4782 = vmatpush1.xpose.msra.mxu0 0.0
    %4783 = vmatprep.subr.mxu0 0.0
    %4784 = vmatpush1.xpose.msra.mxu0 0.0
    %4785 = vmatprep.subr.mxu0 0.0
    %4786 = vmatpush1.xpose.msra.mxu0 0.0
    %4787 = vmatprep.subr.mxu0 0.0
    %4788 = vmatpush1.xpose.msra.mxu0 0.0
    %4789 = vmatprep.mubr.f32.mxu0 0.0
    %4790 = vmatmul.mubr.f32.gmra.mrb[0].mxu0 %v4720
    %v4791 = vpop.f32.mrb[0].mxu0
    %v4792 = vadd.f32 %v1217, %v4791
    %v4793 = vpop.f32.mrb[0].mxu0
    %4794 = vdwg.mxu0
    %v4795 = vsel %vm1220, %v4260, -inf
    %4796 = vmax.xlane.f32.xlu0 %v4795
    %v4797 = vpop.xlane.xlu0 %4796
    %v4798 = vsel %vm1220, %v4336, -inf
    %4799 = vmax.xlane.f32.xlu0 %v4798
    %v4800 = vpop.xlane.xlu0 %4799
    %v4801 = vsel %vm1220, %v4412, -inf
    %4802 = vmax.xlane.f32.xlu0 %v4801
    %v4803 = vpop.xlane.xlu0 %4802
    %v4804 = vsel %vm1220, %v4488, -inf
    %4805 = vmax.xlane.f32.xlu0 %v4804
    %v4806 = vpop.xlane.xlu0 %4805
    %v4807 = vsel %vm1220, %v4564, -inf
    %4808 = vmax.xlane.f32.xlu0 %v4807
    %v4809 = vpop.xlane.xlu0 %4808
    %v4810 = vsel %vm1220, %v4640, -inf
    %4811 = vmax.xlane.f32.xlu0 %v4810
    %v4812 = vpop.xlane.xlu0 %4811
    %v4813 = vsel %vm1220, %v4716, -inf
    %4814 = vmax.xlane.f32.xlu0 %v4813
    %v4815 = vpop.xlane.xlu0 %4814
    %v4816 = vsel %vm1220, %v4792, -inf
    %4817 = vmax.xlane.f32.xlu0 %v4816
    %v4818 = vpop.xlane.xlu0 %4817
    %v4819 = vsub.f32 %v4260, %v4797
    %v4820 = vsub.f32 %v4336, %v4800
    %v4821 = vsub.f32 %v4412, %v4803
    %v4822 = vsub.f32 %v4488, %v4806
    %v4823 = vsub.f32 %v4564, %v4809
    %v4824 = vsub.f32 %v4640, %v4812
    %v4825 = vsub.f32 %v4716, %v4815
    %v4826 = vsub.f32 %v4792, %v4818
    %v4827 = vmul.f32 %v4819, 1.442695
    %v4828 = vpow.pop %v4827
    %v4829 = vmul.f32 %v4820, 1.442695
    %v4830 = vpow.pop %v4829
    %v4831 = vmul.f32 %v4821, 1.442695
    %v4832 = vpow.pop %v4831
    %v4833 = vmul.f32 %v4822, 1.442695
    %v4834 = vpow.pop %v4833
    %v4835 = vmul.f32 %v4823, 1.442695
    %v4836 = vpow.pop %v4835
    %v4837 = vmul.f32 %v4824, 1.442695
    %v4838 = vpow.pop %v4837
    %v4839 = vmul.f32 %v4825, 1.442695
    %v4840 = vpow.pop %v4839
    %v4841 = vmul.f32 %v4826, 1.442695
    %v4842 = vpow.pop %v4841
    %v4843 = vsel %vm1220, %v4828, 0.0
    %4844 = vadd.xlane.f32.xlu0 %v4843
    %v4845 = vpop.xlane.xlu0 %4844
    %v4846 = vsel %vm1220, %v4830, 0.0
    %4847 = vadd.xlane.f32.xlu0 %v4846
    %v4848 = vpop.xlane.xlu0 %4847
    %v4849 = vsel %vm1220, %v4832, 0.0
    %4850 = vadd.xlane.f32.xlu0 %v4849
    %v4851 = vpop.xlane.xlu0 %4850
    %v4852 = vsel %vm1220, %v4834, 0.0
    %4853 = vadd.xlane.f32.xlu0 %v4852
    %v4854 = vpop.xlane.xlu0 %4853
    %v4855 = vsel %vm1220, %v4836, 0.0
    %4856 = vadd.xlane.f32.xlu0 %v4855
    %v4857 = vpop.xlane.xlu0 %4856
    %v4858 = vsel %vm1220, %v4838, 0.0
    %4859 = vadd.xlane.f32.xlu0 %v4858
    %v4860 = vpop.xlane.xlu0 %4859
    %v4861 = vsel %vm1220, %v4840, 0.0
    %4862 = vadd.xlane.f32.xlu0 %v4861
    %v4863 = vpop.xlane.xlu0 %4862
    %v4864 = vsel %vm1220, %v4842, 0.0
    %4865 = vadd.xlane.f32.xlu0 %v4864
    %v4866 = vpop.xlane.xlu0 %4865
    %v4867 = vrcp.pop %v4845
    %v4868 = vrcp.pop %v4848
    %v4869 = vrcp.pop %v4851
    %v4870 = vrcp.pop %v4854
    %v4871 = vrcp.pop %v4857
    %v4872 = vrcp.pop %v4860
    %v4873 = vrcp.pop %v4863
    %v4874 = vrcp.pop %v4866
    %v4875 = vmul.f32 %v4828, %v4867
    %v4876 = vmul.f32 %v4830, %v4868
    %v4877 = vmul.f32 %v4832, %v4869
    %v4878 = vmul.f32 %v4834, %v4870
    %v4879 = vmul.f32 %v4836, %v4871
    %v4880 = vmul.f32 %v4838, %v4872
    %v4881 = vmul.f32 %v4840, %v4873
    %v4882 = vmul.f32 %v4842, %v4874
    %v4884 = vsel %vm1220, %v4875, 0
    %4886 = vmatprep.subr.mxu0 0.0
    %4887 = vmatpush1.msra.mxu0 %v4115
    %4888 = vmatprep.subr.mxu0 0.0
    %4889 = vmatpush1.msra.mxu0 0.0
    %4890 = vmatprep.subr.mxu0 0.0
    %4891 = vmatpush1.msra.mxu0 0.0
    %4892 = vmatprep.subr.mxu0 0.0
    %4893 = vmatpush1.msra.mxu0 0.0
    %4894 = vmatprep.subr.mxu0 0.0
    %4895 = vmatpush1.msra.mxu0 0.0
    %4896 = vmatprep.subr.mxu0 0.0
    %4897 = vmatpush1.msra.mxu0 0.0
    %4898 = vmatprep.subr.mxu0 0.0
    %4899 = vmatpush1.msra.mxu0 0.0
    %4900 = vmatprep.subr.mxu0 0.0
    %4901 = vmatpush1.msra.mxu0 0.0
    %4902 = vmatprep.subr.mxu0 0.0
    %4903 = vmatpush1.msra.mxu0 0.0
    %4904 = vmatprep.subr.mxu0 0.0
    %4905 = vmatpush1.msra.mxu0 0.0
    %4906 = vmatprep.subr.mxu0 0.0
    %4907 = vmatpush1.msra.mxu0 0.0
    %4908 = vmatprep.subr.mxu0 0.0
    %4909 = vmatpush1.msra.mxu0 0.0
    %4910 = vmatprep.subr.mxu0 0.0
    %4911 = vmatpush1.msra.mxu0 0.0
    %4912 = vmatprep.subr.mxu0 0.0
    %4913 = vmatpush1.msra.mxu0 0.0
    %4914 = vmatprep.subr.mxu0 0.0
    %4915 = vmatpush1.msra.mxu0 0.0
    %4916 = vmatprep.subr.mxu0 0.0
    %4917 = vmatpush1.msra.mxu0 0.0
    %4918 = vmatprep.subr.mxu0 0.0
    %4919 = vmatpush1.msra.mxu0 0.0
    %4920 = vmatprep.subr.mxu0 0.0
    %4921 = vmatpush1.msra.mxu0 0.0
    %4922 = vmatprep.subr.mxu0 0.0
    %4923 = vmatpush1.msra.mxu0 0.0
    %4924 = vmatprep.subr.mxu0 0.0
    %4925 = vmatpush1.msra.mxu0 0.0
    %4926 = vmatprep.subr.mxu0 0.0
    %4927 = vmatpush1.msra.mxu0 0.0
    %4928 = vmatprep.subr.mxu0 0.0
    %4929 = vmatpush1.msra.mxu0 0.0
    %4930 = vmatprep.subr.mxu0 0.0
    %4931 = vmatpush1.msra.mxu0 0.0
    %4932 = vmatprep.subr.mxu0 0.0
    %4933 = vmatpush1.msra.mxu0 0.0
    %4934 = vmatprep.subr.mxu0 0.0
    %4935 = vmatpush1.msra.mxu0 0.0
    %4936 = vmatprep.subr.mxu0 0.0
    %4937 = vmatpush1.msra.mxu0 0.0
    %4938 = vmatprep.subr.mxu0 0.0
    %4939 = vmatpush1.msra.mxu0 0.0
    %4940 = vmatprep.subr.mxu0 0.0
    %4941 = vmatpush1.msra.mxu0 0.0
    %4942 = vmatprep.subr.mxu0 0.0
    %4943 = vmatpush1.msra.mxu0 0.0
    %4944 = vmatprep.subr.mxu0 0.0
    %4945 = vmatpush1.msra.mxu0 0.0
    %4946 = vmatprep.subr.mxu0 0.0
    %4947 = vmatpush1.msra.mxu0 0.0
    %4948 = vmatprep.subr.mxu0 0.0
    %4949 = vmatpush1.msra.mxu0 0.0
    %4950 = vmatprep.mubr.f32.mxu0 0.0
    %4951 = vmatmul.mubr.f32.gmra.mrb[0].mxu0 %v4884
    %v4952 = vpop.f32.mrb[0].mxu0
    %v4953 = vadd.f32 0.0, %v4952
    %v4954 = vpop.f32.mrb[0].mxu0
    %4955 = vdwg.mxu0
    %v4957 = vsel %vm1220, %v4876, 0
    %4959 = vmatprep.subr.mxu0 0.0
    %4960 = vmatpush1.msra.mxu0 %v4116
    %4961 = vmatprep.subr.mxu0 0.0
    %4962 = vmatpush1.msra.mxu0 0.0
    %4963 = vmatprep.subr.mxu0 0.0
    %4964 = vmatpush1.msra.mxu0 0.0
    %4965 = vmatprep.subr.mxu0 0.0
    %4966 = vmatpush1.msra.mxu0 0.0
    %4967 = vmatprep.subr.mxu0 0.0
    %4968 = vmatpush1.msra.mxu0 0.0
    %4969 = vmatprep.subr.mxu0 0.0
    %4970 = vmatpush1.msra.mxu0 0.0
    %4971 = vmatprep.subr.mxu0 0.0
    %4972 = vmatpush1.msra.mxu0 0.0
    %4973 = vmatprep.subr.mxu0 0.0
    %4974 = vmatpush1.msra.mxu0 0.0
    %4975 = vmatprep.subr.mxu0 0.0
    %4976 = vmatpush1.msra.mxu0 0.0
    %4977 = vmatprep.subr.mxu0 0.0
    %4978 = vmatpush1.msra.mxu0 0.0
    %4979 = vmatprep.subr.mxu0 0.0
    %4980 = vmatpush1.msra.mxu0 0.0
    %4981 = vmatprep.subr.mxu0 0.0
    %4982 = vmatpush1.msra.mxu0 0.0
    %4983 = vmatprep.subr.mxu0 0.0
    %4984 = vmatpush1.msra.mxu0 0.0
    %4985 = vmatprep.subr.mxu0 0.0
    %4986 = vmatpush1.msra.mxu0 0.0
    %4987 = vmatprep.subr.mxu0 0.0
    %4988 = vmatpush1.msra.mxu0 0.0
    %4989 = vmatprep.subr.mxu0 0.0
    %4990 = vmatpush1.msra.mxu0 0.0
    %4991 = vmatprep.subr.mxu0 0.0
    %4992 = vmatpush1.msra.mxu0 0.0
    %4993 = vmatprep.subr.mxu0 0.0
    %4994 = vmatpush1.msra.mxu0 0.0
    %4995 = vmatprep.subr.mxu0 0.0
    %4996 = vmatpush1.msra.mxu0 0.0
    %4997 = vmatprep.subr.mxu0 0.0
    %4998 = vmatpush1.msra.mxu0 0.0
    %4999 = vmatprep.subr.mxu0 0.0
    %5000 = vmatpush1.msra.mxu0 0.0
    %5001 = vmatprep.subr.mxu0 0.0
    %5002 = vmatpush1.msra.mxu0 0.0
    %5003 = vmatprep.subr.mxu0 0.0
    %5004 = vmatpush1.msra.mxu0 0.0
    %5005 = vmatprep.subr.mxu0 0.0
    %5006 = vmatpush1.msra.mxu0 0.0
    %5007 = vmatprep.subr.mxu0 0.0
    %5008 = vmatpush1.msra.mxu0 0.0
    %5009 = vmatprep.subr.mxu0 0.0
    %5010 = vmatpush1.msra.mxu0 0.0
    %5011 = vmatprep.subr.mxu0 0.0
    %5012 = vmatpush1.msra.mxu0 0.0
    %5013 = vmatprep.subr.mxu0 0.0
    %5014 = vmatpush1.msra.mxu0 0.0
    %5015 = vmatprep.subr.mxu0 0.0
    %5016 = vmatpush1.msra.mxu0 0.0
    %5017 = vmatprep.subr.mxu0 0.0
    %5018 = vmatpush1.msra.mxu0 0.0
    %5019 = vmatprep.subr.mxu0 0.0
    %5020 = vmatpush1.msra.mxu0 0.0
    %5021 = vmatprep.subr.mxu0 0.0
    %5022 = vmatpush1.msra.mxu0 0.0
    %5023 = vmatprep.mubr.f32.mxu0 0.0
    %5024 = vmatmul.mubr.f32.gmra.mrb[0].mxu0 %v4957
    %v5025 = vpop.f32.mrb[0].mxu0
    %v5026 = vadd.f32 0.0, %v5025
    %v5027 = vpop.f32.mrb[0].mxu0
    %5028 = vdwg.mxu0
    %v5030 = vsel %vm1220, %v4877, 0
    %5032 = vmatprep.subr.mxu0 0.0
    %5033 = vmatpush1.msra.mxu0 %v4117
    %5034 = vmatprep.subr.mxu0 0.0
    %5035 = vmatpush1.msra.mxu0 0.0
    %5036 = vmatprep.subr.mxu0 0.0
    %5037 = vmatpush1.msra.mxu0 0.0
    %5038 = vmatprep.subr.mxu0 0.0
    %5039 = vmatpush1.msra.mxu0 0.0
    %5040 = vmatprep.subr.mxu0 0.0
    %5041 = vmatpush1.msra.mxu0 0.0
    %5042 = vmatprep.subr.mxu0 0.0
    %5043 = vmatpush1.msra.mxu0 0.0
    %5044 = vmatprep.subr.mxu0 0.0
    %5045 = vmatpush1.msra.mxu0 0.0
    %5046 = vmatprep.subr.mxu0 0.0
    %5047 = vmatpush1.msra.mxu0 0.0
    %5048 = vmatprep.subr.mxu0 0.0
    %5049 = vmatpush1.msra.mxu0 0.0
    %5050 = vmatprep.subr.mxu0 0.0
    %5051 = vmatpush1.msra.mxu0 0.0
    %5052 = vmatprep.subr.mxu0 0.0
    %5053 = vmatpush1.msra.mxu0 0.0
    %5054 = vmatprep.subr.mxu0 0.0
    %5055 = vmatpush1.msra.mxu0 0.0
    %5056 = vmatprep.subr.mxu0 0.0
    %5057 = vmatpush1.msra.mxu0 0.0
    %5058 = vmatprep.subr.mxu0 0.0
    %5059 = vmatpush1.msra.mxu0 0.0
    %5060 = vmatprep.subr.mxu0 0.0
    %5061 = vmatpush1.msra.mxu0 0.0
    %5062 = vmatprep.subr.mxu0 0.0
    %5063 = vmatpush1.msra.mxu0 0.0
    %5064 = vmatprep.subr.mxu0 0.0
    %5065 = vmatpush1.msra.mxu0 0.0
    %5066 = vmatprep.subr.mxu0 0.0
    %5067 = vmatpush1.msra.mxu0 0.0
    %5068 = vmatprep.subr.mxu0 0.0
    %5069 = vmatpush1.msra.mxu0 0.0
    %5070 = vmatprep.subr.mxu0 0.0
    %5071 = vmatpush1.msra.mxu0 0.0
    %5072 = vmatprep.subr.mxu0 0.0
    %5073 = vmatpush1.msra.mxu0 0.0
    %5074 = vmatprep.subr.mxu0 0.0
    %5075 = vmatpush1.msra.mxu0 0.0
    %5076 = vmatprep.subr.mxu0 0.0
    %5077 = vmatpush1.msra.mxu0 0.0
    %5078 = vmatprep.subr.mxu0 0.0
    %5079 = vmatpush1.msra.mxu0 0.0
    %5080 = vmatprep.subr.mxu0 0.0
    %5081 = vmatpush1.msra.mxu0 0.0
    %5082 = vmatprep.subr.mxu0 0.0
    %5083 = vmatpush1.msra.mxu0 0.0
    %5084 = vmatprep.subr.mxu0 0.0
    %5085 = vmatpush1.msra.mxu0 0.0
    %5086 = vmatprep.subr.mxu0 0.0
    %5087 = vmatpush1.msra.mxu0 0.0
    %5088 = vmatprep.subr.mxu0 0.0
    %5089 = vmatpush1.msra.mxu0 0.0
    %5090 = vmatprep.subr.mxu0 0.0
    %5091 = vmatpush1.msra.mxu0 0.0
    %5092 = vmatprep.subr.mxu0 0.0
    %5093 = vmatpush1.msra.mxu0 0.0
    %5094 = vmatprep.subr.mxu0 0.0
    %5095 = vmatpush1.msra.mxu0 0.0
    %5096 = vmatprep.mubr.f32.mxu0 0.0
    %5097 = vmatmul.mubr.f32.gmra.mrb[0].mxu0 %v5030
    %v5098 = vpop.f32.mrb[0].mxu0
    %v5099 = vadd.f32 0.0, %v5098
    %v5100 = vpop.f32.mrb[0].mxu0
    %5101 = vdwg.mxu0
    %v5103 = vsel %vm1220, %v4878, 0
    %5105 = vmatprep.subr.mxu0 0.0
    %5106 = vmatpush1.msra.mxu0 %v4118
    %5107 = vmatprep.subr.mxu0 0.0
    %5108 = vmatpush1.msra.mxu0 0.0
    %5109 = vmatprep.subr.mxu0 0.0
    %5110 = vmatpush1.msra.mxu0 0.0
    %5111 = vmatprep.subr.mxu0 0.0
    %5112 = vmatpush1.msra.mxu0 0.0
    %5113 = vmatprep.subr.mxu0 0.0
    %5114 = vmatpush1.msra.mxu0 0.0
    %5115 = vmatprep.subr.mxu0 0.0
    %5116 = vmatpush1.msra.mxu0 0.0
    %5117 = vmatprep.subr.mxu0 0.0
    %5118 = vmatpush1.msra.mxu0 0.0
    %5119 = vmatprep.subr.mxu0 0.0
    %5120 = vmatpush1.msra.mxu0 0.0
    %5121 = vmatprep.subr.mxu0 0.0
    %5122 = vmatpush1.msra.mxu0 0.0
    %5123 = vmatprep.subr.mxu0 0.0
    %5124 = vmatpush1.msra.mxu0 0.0
    %5125 = vmatprep.subr.mxu0 0.0
    %5126 = vmatpush1.msra.mxu0 0.0
    %5127 = vmatprep.subr.mxu0 0.0
    %5128 = vmatpush1.msra.mxu0 0.0
    %5129 = vmatprep.subr.mxu0 0.0
    %5130 = vmatpush1.msra.mxu0 0.0
    %5131 = vmatprep.subr.mxu0 0.0
    %5132 = vmatpush1.msra.mxu0 0.0
    %5133 = vmatprep.subr.mxu0 0.0
    %5134 = vmatpush1.msra.mxu0 0.0
    %5135 = vmatprep.subr.mxu0 0.0
    %5136 = vmatpush1.msra.mxu0 0.0
    %5137 = vmatprep.subr.mxu0 0.0
    %5138 = vmatpush1.msra.mxu0 0.0
    %5139 = vmatprep.subr.mxu0 0.0
    %5140 = vmatpush1.msra.mxu0 0.0
    %5141 = vmatprep.subr.mxu0 0.0
    %5142 = vmatpush1.msra.mxu0 0.0
    %5143 = vmatprep.subr.mxu0 0.0
    %5144 = vmatpush1.msra.mxu0 0.0
    %5145 = vmatprep.subr.mxu0 0.0
    %5146 = vmatpush1.msra.mxu0 0.0
    %5147 = vmatprep.subr.mxu0 0.0
    %5148 = vmatpush1.msra.mxu0 0.0
    %5149 = vmatprep.subr.mxu0 0.0
    %5150 = vmatpush1.msra.mxu0 0.0
    %5151 = vmatprep.subr.mxu0 0.0
    %5152 = vmatpush1.msra.mxu0 0.0
    %5153 = vmatprep.subr.mxu0 0.0
    %5154 = vmatpush1.msra.mxu0 0.0
    %5155 = vmatprep.subr.mxu0 0.0
    %5156 = vmatpush1.msra.mxu0 0.0
    %5157 = vmatprep.subr.mxu0 0.0
    %5158 = vmatpush1.msra.mxu0 0.0
    %5159 = vmatprep.subr.mxu0 0.0
    %5160 = vmatpush1.msra.mxu0 0.0
    %5161 = vmatprep.subr.mxu0 0.0
    %5162 = vmatpush1.msra.mxu0 0.0
    %5163 = vmatprep.subr.mxu0 0.0
    %5164 = vmatpush1.msra.mxu0 0.0
    %5165 = vmatprep.subr.mxu0 0.0
    %5166 = vmatpush1.msra.mxu0 0.0
    %5167 = vmatprep.subr.mxu0 0.0
    %5168 = vmatpush1.msra.mxu0 0.0
    %5169 = vmatprep.mubr.f32.mxu0 0.0
    %5170 = vmatmul.mubr.f32.gmra.mrb[0].mxu0 %v5103
    %v5171 = vpop.f32.mrb[0].mxu0
    %v5172 = vadd.f32 0.0, %v5171
    %v5173 = vpop.f32.mrb[0].mxu0
    %5174 = vdwg.mxu0
    %v5176 = vsel %vm1220, %v4879, 0
    %5178 = vmatprep.subr.mxu0 0.0
    %5179 = vmatpush1.msra.mxu0 %v4183
    %5180 = vmatprep.subr.mxu0 0.0
    %5181 = vmatpush1.msra.mxu0 0.0
    %5182 = vmatprep.subr.mxu0 0.0
    %5183 = vmatpush1.msra.mxu0 0.0
    %5184 = vmatprep.subr.mxu0 0.0
    %5185 = vmatpush1.msra.mxu0 0.0
    %5186 = vmatprep.subr.mxu0 0.0
    %5187 = vmatpush1.msra.mxu0 0.0
    %5188 = vmatprep.subr.mxu0 0.0
    %5189 = vmatpush1.msra.mxu0 0.0
    %5190 = vmatprep.subr.mxu0 0.0
    %5191 = vmatpush1.msra.mxu0 0.0
    %5192 = vmatprep.subr.mxu0 0.0
    %5193 = vmatpush1.msra.mxu0 0.0
    %5194 = vmatprep.subr.mxu0 0.0
    %5195 = vmatpush1.msra.mxu0 0.0
    %5196 = vmatprep.subr.mxu0 0.0
    %5197 = vmatpush1.msra.mxu0 0.0
    %5198 = vmatprep.subr.mxu0 0.0
    %5199 = vmatpush1.msra.mxu0 0.0
    %5200 = vmatprep.subr.mxu0 0.0
    %5201 = vmatpush1.msra.mxu0 0.0
    %5202 = vmatprep.subr.mxu0 0.0
    %5203 = vmatpush1.msra.mxu0 0.0
    %5204 = vmatprep.subr.mxu0 0.0
    %5205 = vmatpush1.msra.mxu0 0.0
    %5206 = vmatprep.subr.mxu0 0.0
    %5207 = vmatpush1.msra.mxu0 0.0
    %5208 = vmatprep.subr.mxu0 0.0
    %5209 = vmatpush1.msra.mxu0 0.0
    %5210 = vmatprep.subr.mxu0 0.0
    %5211 = vmatpush1.msra.mxu0 0.0
    %5212 = vmatprep.subr.mxu0 0.0
    %5213 = vmatpush1.msra.mxu0 0.0
    %5214 = vmatprep.subr.mxu0 0.0
    %5215 = vmatpush1.msra.mxu0 0.0
    %5216 = vmatprep.subr.mxu0 0.0
    %5217 = vmatpush1.msra.mxu0 0.0
    %5218 = vmatprep.subr.mxu0 0.0
    %5219 = vmatpush1.msra.mxu0 0.0
    %5220 = vmatprep.subr.mxu0 0.0
    %5221 = vmatpush1.msra.mxu0 0.0
    %5222 = vmatprep.subr.mxu0 0.0
    %5223 = vmatpush1.msra.mxu0 0.0
    %5224 = vmatprep.subr.mxu0 0.0
    %5225 = vmatpush1.msra.mxu0 0.0
    %5226 = vmatprep.subr.mxu0 0.0
    %5227 = vmatpush1.msra.mxu0 0.0
    %5228 = vmatprep.subr.mxu0 0.0
    %5229 = vmatpush1.msra.mxu0 0.0
    %5230 = vmatprep.subr.mxu0 0.0
    %5231 = vmatpush1.msra.mxu0 0.0
    %5232 = vmatprep.subr.mxu0 0.0
    %5233 = vmatpush1.msra.mxu0 0.0
    %5234 = vmatprep.subr.mxu0 0.0
    %5235 = vmatpush1.msra.mxu0 0.0
    %5236 = vmatprep.subr.mxu0 0.0
    %5237 = vmatpush1.msra.mxu0 0.0
    %5238 = vmatprep.subr.mxu0 0.0
    %5239 = vmatpush1.msra.mxu0 0.0
    %5240 = vmatprep.subr.mxu0 0.0
    %5241 = vmatpush1.msra.mxu0 0.0
    %5242 = vmatprep.mubr.f32.mxu0 0.0
    %5243 = vmatmul.mubr.f32.gmra.mrb[0].mxu0 %v5176
    %v5244 = vpop.f32.mrb[0].mxu0
    %v5245 = vadd.f32 0.0, %v5244
    %v5246 = vpop.f32.mrb[0].mxu0
    %5247 = vdwg.mxu0
    %v5249 = vsel %vm1220, %v4880, 0
    %5251 = vmatprep.subr.mxu0 0.0
    %5252 = vmatpush1.msra.mxu0 %v4184
    %5253 = vmatprep.subr.mxu0 0.0
    %5254 = vmatpush1.msra.mxu0 0.0
    %5255 = vmatprep.subr.mxu0 0.0
    %5256 = vmatpush1.msra.mxu0 0.0
    %5257 = vmatprep.subr.mxu0 0.0
    %5258 = vmatpush1.msra.mxu0 0.0
    %5259 = vmatprep.subr.mxu0 0.0
    %5260 = vmatpush1.msra.mxu0 0.0
    %5261 = vmatprep.subr.mxu0 0.0
    %5262 = vmatpush1.msra.mxu0 0.0
    %5263 = vmatprep.subr.mxu0 0.0
    %5264 = vmatpush1.msra.mxu0 0.0
    %5265 = vmatprep.subr.mxu0 0.0
    %5266 = vmatpush1.msra.mxu0 0.0
    %5267 = vmatprep.subr.mxu0 0.0
    %5268 = vmatpush1.msra.mxu0 0.0
    %5269 = vmatprep.subr.mxu0 0.0
    %5270 = vmatpush1.msra.mxu0 0.0
    %5271 = vmatprep.subr.mxu0 0.0
    %5272 = vmatpush1.msra.mxu0 0.0
    %5273 = vmatprep.subr.mxu0 0.0
    %5274 = vmatpush1.msra.mxu0 0.0
    %5275 = vmatprep.subr.mxu0 0.0
    %5276 = vmatpush1.msra.mxu0 0.0
    %5277 = vmatprep.subr.mxu0 0.0
    %5278 = vmatpush1.msra.mxu0 0.0
    %5279 = vmatprep.subr.mxu0 0.0
    %5280 = vmatpush1.msra.mxu0 0.0
    %5281 = vmatprep.subr.mxu0 0.0
    %5282 = vmatpush1.msra.mxu0 0.0
    %5283 = vmatprep.subr.mxu0 0.0
    %5284 = vmatpush1.msra.mxu0 0.0
    %5285 = vmatprep.subr.mxu0 0.0
    %5286 = vmatpush1.msra.mxu0 0.0
    %5287 = vmatprep.subr.mxu0 0.0
    %5288 = vmatpush1.msra.mxu0 0.0
    %5289 = vmatprep.subr.mxu0 0.0
    %5290 = vmatpush1.msra.mxu0 0.0
    %5291 = vmatprep.subr.mxu0 0.0
    %5292 = vmatpush1.msra.mxu0 0.0
    %5293 = vmatprep.subr.mxu0 0.0
    %5294 = vmatpush1.msra.mxu0 0.0
    %5295 = vmatprep.subr.mxu0 0.0
    %5296 = vmatpush1.msra.mxu0 0.0
    %5297 = vmatprep.subr.mxu0 0.0
    %5298 = vmatpush1.msra.mxu0 0.0
    %5299 = vmatprep.subr.mxu0 0.0
    %5300 = vmatpush1.msra.mxu0 0.0
    %5301 = vmatprep.subr.mxu0 0.0
    %5302 = vmatpush1.msra.mxu0 0.0
    %5303 = vmatprep.subr.mxu0 0.0
    %5304 = vmatpush1.msra.mxu0 0.0
    %5305 = vmatprep.subr.mxu0 0.0
    %5306 = vmatpush1.msra.mxu0 0.0
    %5307 = vmatprep.subr.mxu0 0.0
    %5308 = vmatpush1.msra.mxu0 0.0
    %5309 = vmatprep.subr.mxu0 0.0
    %5310 = vmatpush1.msra.mxu0 0.0
    %5311 = vmatprep.subr.mxu0 0.0
    %5312 = vmatpush1.msra.mxu0 0.0
    %5313 = vmatprep.subr.mxu0 0.0
    %5314 = vmatpush1.msra.mxu0 0.0
    %5315 = vmatprep.mubr.f32.mxu0 0.0
    %5316 = vmatmul.mubr.f32.gmra.mrb[0].mxu0 %v5249
    %v5317 = vpop.f32.mrb[0].mxu0
    %v5318 = vadd.f32 0.0, %v5317
    %v5319 = vpop.f32.mrb[0].mxu0
    %5320 = vdwg.mxu0
    %v5322 = vsel %vm1220, %v4881, 0
    %5324 = vmatprep.subr.mxu0 0.0
    %5325 = vmatpush1.msra.mxu0 %v4185
    %5326 = vmatprep.subr.mxu0 0.0
    %5327 = vmatpush1.msra.mxu0 0.0
    %5328 = vmatprep.subr.mxu0 0.0
    %5329 = vmatpush1.msra.mxu0 0.0
    %5330 = vmatprep.subr.mxu0 0.0
    %5331 = vmatpush1.msra.mxu0 0.0
    %5332 = vmatprep.subr.mxu0 0.0
    %5333 = vmatpush1.msra.mxu0 0.0
    %5334 = vmatprep.subr.mxu0 0.0
    %5335 = vmatpush1.msra.mxu0 0.0
    %5336 = vmatprep.subr.mxu0 0.0
    %5337 = vmatpush1.msra.mxu0 0.0
    %5338 = vmatprep.subr.mxu0 0.0
    %5339 = vmatpush1.msra.mxu0 0.0
    %5340 = vmatprep.subr.mxu0 0.0
    %5341 = vmatpush1.msra.mxu0 0.0
    %5342 = vmatprep.subr.mxu0 0.0
    %5343 = vmatpush1.msra.mxu0 0.0
    %5344 = vmatprep.subr.mxu0 0.0
    %5345 = vmatpush1.msra.mxu0 0.0
    %5346 = vmatprep.subr.mxu0 0.0
    %5347 = vmatpush1.msra.mxu0 0.0
    %5348 = vmatprep.subr.mxu0 0.0
    %5349 = vmatpush1.msra.mxu0 0.0
    %5350 = vmatprep.subr.mxu0 0.0
    %5351 = vmatpush1.msra.mxu0 0.0
    %5352 = vmatprep.subr.mxu0 0.0
    %5353 = vmatpush1.msra.mxu0 0.0
    %5354 = vmatprep.subr.mxu0 0.0
    %5355 = vmatpush1.msra.mxu0 0.0
    %5356 = vmatprep.subr.mxu0 0.0
    %5357 = vmatpush1.msra.mxu0 0.0
    %5358 = vmatprep.subr.mxu0 0.0
    %5359 = vmatpush1.msra.mxu0 0.0
    %5360 = vmatprep.subr.mxu0 0.0
    %5361 = vmatpush1.msra.mxu0 0.0
    %5362 = vmatprep.subr.mxu0 0.0
    %5363 = vmatpush1.msra.mxu0 0.0
    %5364 = vmatprep.subr.mxu0 0.0
    %5365 = vmatpush1.msra.mxu0 0.0
    %5366 = vmatprep.subr.mxu0 0.0
    %5367 = vmatpush1.msra.mxu0 0.0
    %5368 = vmatprep.subr.mxu0 0.0
    %5369 = vmatpush1.msra.mxu0 0.0
    %5370 = vmatprep.subr.mxu0 0.0
    %5371 = vmatpush1.msra.mxu0 0.0
    %5372 = vmatprep.subr.mxu0 0.0
    %5373 = vmatpush1.msra.mxu0 0.0
    %5374 = vmatprep.subr.mxu0 0.0
    %5375 = vmatpush1.msra.mxu0 0.0
    %5376 = vmatprep.subr.mxu0 0.0
    %5377 = vmatpush1.msra.mxu0 0.0
    %5378 = vmatprep.subr.mxu0 0.0
    %5379 = vmatpush1.msra.mxu0 0.0
    %5380 = vmatprep.subr.mxu0 0.0
    %5381 = vmatpush1.msra.mxu0 0.0
    %5382 = vmatprep.subr.mxu0 0.0
    %5383 = vmatpush1.msra.mxu0 0.0
    %5384 = vmatprep.subr.mxu0 0.0
    %5385 = vmatpush1.msra.mxu0 0.0
    %5386 = vmatprep.subr.mxu0 0.0
    %5387 = vmatpush1.msra.mxu0 0.0
    %5388 = vmatprep.mubr.f32.mxu0 0.0
    %5389 = vmatmul.mubr.f32.gmra.mrb[0].mxu0 %v5322
    %v5390 = vpop.f32.mrb[0].mxu0
    %v5391 = vadd.f32 0.0, %v5390
    %v5392 = vpop.f32.mrb[0].mxu0
    %5393 = vdwg.mxu0
    %v5395 = vsel %vm1220, %v4882, 0
    %5397 = vmatprep.subr.mxu0 0.0
    %5398 = vmatpush1.msra.mxu0 %v4186
    %5399 = vmatprep.subr.mxu0 0.0
    %5400 = vmatpush1.msra.mxu0 0.0
    %5401 = vmatprep.subr.mxu0 0.0
    %5402 = vmatpush1.msra.mxu0 0.0
    %5403 = vmatprep.subr.mxu0 0.0
    %5404 = vmatpush1.msra.mxu0 0.0
    %5405 = vmatprep.subr.mxu0 0.0
    %5406 = vmatpush1.msra.mxu0 0.0
    %5407 = vmatprep.subr.mxu0 0.0
    %5408 = vmatpush1.msra.mxu0 0.0
    %5409 = vmatprep.subr.mxu0 0.0
    %5410 = vmatpush1.msra.mxu0 0.0
    %5411 = vmatprep.subr.mxu0 0.0
    %5412 = vmatpush1.msra.mxu0 0.0
    %5413 = vmatprep.subr.mxu0 0.0
    %5414 = vmatpush1.msra.mxu0 0.0
    %5415 = vmatprep.subr.mxu0 0.0
    %5416 = vmatpush1.msra.mxu0 0.0
    %5417 = vmatprep.subr.mxu0 0.0
    %5418 = vmatpush1.msra.mxu0 0.0
    %5419 = vmatprep.subr.mxu0 0.0
    %5420 = vmatpush1.msra.mxu0 0.0
    %5421 = vmatprep.subr.mxu0 0.0
    %5422 = vmatpush1.msra.mxu0 0.0
    %5423 = vmatprep.subr.mxu0 0.0
    %5424 = vmatpush1.msra.mxu0 0.0
    %5425 = vmatprep.subr.mxu0 0.0
    %5426 = vmatpush1.msra.mxu0 0.0
    %5427 = vmatprep.subr.mxu0 0.0
    %5428 = vmatpush1.msra.mxu0 0.0
    %5429 = vmatprep.subr.mxu0 0.0
    %5430 = vmatpush1.msra.mxu0 0.0
    %5431 = vmatprep.subr.mxu0 0.0
    %5432 = vmatpush1.msra.mxu0 0.0
    %5433 = vmatprep.subr.mxu0 0.0
    %5434 = vmatpush1.msra.mxu0 0.0
    %5435 = vmatprep.subr.mxu0 0.0
    %5436 = vmatpush1.msra.mxu0 0.0
    %5437 = vmatprep.subr.mxu0 0.0
    %5438 = vmatpush1.msra.mxu0 0.0
    %5439 = vmatprep.subr.mxu0 0.0
    %5440 = vmatpush1.msra.mxu0 0.0
    %5441 = vmatprep.subr.mxu0 0.0
    %5442 = vmatpush1.msra.mxu0 0.0
    %5443 = vmatprep.subr.mxu0 0.0
    %5444 = vmatpush1.msra.mxu0 0.0
    %5445 = vmatprep.subr.mxu0 0.0
    %5446 = vmatpush1.msra.mxu0 0.0
    %5447 = vmatprep.subr.mxu0 0.0
    %5448 = vmatpush1.msra.mxu0 0.0
    %5449 = vmatprep.subr.mxu0 0.0
    %5450 = vmatpush1.msra.mxu0 0.0
    %5451 = vmatprep.subr.mxu0 0.0
    %5452 = vmatpush1.msra.mxu0 0.0
    %5453 = vmatprep.subr.mxu0 0.0
    %5454 = vmatpush1.msra.mxu0 0.0
    %5455 = vmatprep.subr.mxu0 0.0
    %5456 = vmatpush1.msra.mxu0 0.0
    %5457 = vmatprep.subr.mxu0 0.0
    %5458 = vmatpush1.msra.mxu0 0.0
    %5459 = vmatprep.subr.mxu0 0.0
    %5460 = vmatpush1.msra.mxu0 0.0
    %5461 = vmatprep.mubr.f32.mxu0 0.0
    %5462 = vmatmul.mubr.f32.gmra.mrb[0].mxu0 %v5395
    %v5463 = vpop.f32.mrb[0].mxu0
    %v5464 = vadd.f32 0.0, %v5463
    %v5465 = vpop.f32.mrb[0].mxu0
    %5466 = vdwg.mxu0
    %v5467 = vcombine.low %v4953, %v5099
    %v5468 = vcombine.high %v4953, %v5099
    %v5470 = vunpack.c.l.s4 1983009808
    %v5471 = vunpack.c.0.s8 %v5470
    %v5472 = vlaneseq
    %v5473 = vshrl.u32 %v5472, 7
    %v5474 = vsub.s32 %v5471, %v5473
    %v5475 = vrot.slane %v5467, %v5474
    %v5477 = vunpack.c.l.s4 1983009808
    %v5478 = vunpack.c.0.s8 %v5477
    %v5479 = vlaneseq
    %v5480 = vshrl.u32 %v5479, 7
    %v5481 = vsub.s32 %v5478, %v5480
    %v5482 = vrot.slane %v5468, %v5481
    %v5483 = vcombine.low %v5026, %v5172
    %v5484 = vcombine.high %v5026, %v5172
    %v5486 = vunpack.c.l.s4 1983009808
    %v5487 = vunpack.c.0.s8 %v5486
    %v5488 = vlaneseq
    %v5489 = vshrl.u32 %v5488, 7
    %v5490 = vsub.s32 %v5487, %v5489
    %v5491 = vrot.slane %v5483, %v5490
    %v5493 = vunpack.c.l.s4 1983009808
    %v5494 = vunpack.c.0.s8 %v5493
    %v5495 = vlaneseq
    %v5496 = vshrl.u32 %v5495, 7
    %v5497 = vsub.s32 %v5494, %v5496
    %v5498 = vrot.slane %v5484, %v5497
    %v5499 = vcombine.low %v5475, %v5491
    %v5500 = vcombine.high %v5475, %v5491
    %v5502 = vunpack.c.l.s4 1934713408
    %v5503 = vunpack.c.0.s8 %v5502
    %v5504 = vlaneseq
    %v5505 = vshrl.u32 %v5504, 7
    %v5506 = vsub.s32 %v5503, %v5505
    %v5507 = vrot.slane %v5499, %v5506
    %v5509 = vunpack.c.l.s4 1934713408
    %v5510 = vunpack.c.0.s8 %v5509
    %v5511 = vlaneseq
    %v5512 = vshrl.u32 %v5511, 7
    %v5513 = vsub.s32 %v5510, %v5512
    %v5514 = vrot.slane %v5500, %v5513
    %v5515 = vcombine.low %v5482, %v5498
    %v5516 = vcombine.high %v5482, %v5498
    %v5518 = vunpack.c.l.s4 1934713408
    %v5519 = vunpack.c.0.s8 %v5518
    %v5520 = vlaneseq
    %v5521 = vshrl.u32 %v5520, 7
    %v5522 = vsub.s32 %v5519, %v5521
    %v5523 = vrot.slane %v5515, %v5522
    %v5525 = vunpack.c.l.s4 1934713408
    %v5526 = vunpack.c.0.s8 %v5525
    %v5527 = vlaneseq
    %v5528 = vshrl.u32 %v5527, 7
    %v5529 = vsub.s32 %v5526, %v5528
    %v5530 = vrot.slane %v5516, %v5529
    %v5531 = vcombine.high %v5507, 0.0
    %v5532 = vcombine.high %v5514, 0.0
    %v5533 = vcombine.high %v5523, 0.0
    %v5534 = vcombine.high %v5530, 0.0
    %v5535 = vcombine.low %v5245, %v5391
    %v5536 = vcombine.high %v5245, %v5391
    %v5538 = vunpack.c.l.s4 1983009808
    %v5539 = vunpack.c.0.s8 %v5538
    %v5540 = vlaneseq
    %v5541 = vshrl.u32 %v5540, 7
    %v5542 = vsub.s32 %v5539, %v5541
    %v5543 = vrot.slane %v5535, %v5542
    %v5545 = vunpack.c.l.s4 1983009808
    %v5546 = vunpack.c.0.s8 %v5545
    %v5547 = vlaneseq
    %v5548 = vshrl.u32 %v5547, 7
    %v5549 = vsub.s32 %v5546, %v5548
    %v5550 = vrot.slane %v5536, %v5549
    %v5551 = vcombine.low %v5318, %v5464
    %v5552 = vcombine.high %v5318, %v5464
    %v5554 = vunpack.c.l.s4 1983009808
    %v5555 = vunpack.c.0.s8 %v5554
    %v5556 = vlaneseq
    %v5557 = vshrl.u32 %v5556, 7
    %v5558 = vsub.s32 %v5555, %v5557
    %v5559 = vrot.slane %v5551, %v5558
    %v5561 = vunpack.c.l.s4 1983009808
    %v5562 = vunpack.c.0.s8 %v5561
    %v5563 = vlaneseq
    %v5564 = vshrl.u32 %v5563, 7
    %v5565 = vsub.s32 %v5562, %v5564
    %v5566 = vrot.slane %v5552, %v5565
    %v5567 = vcombine.low %v5543, %v5559
    %v5568 = vcombine.high %v5543, %v5559
    %v5570 = vunpack.c.l.s4 1934713408
    %v5571 = vunpack.c.0.s8 %v5570
    %v5572 = vlaneseq
    %v5573 = vshrl.u32 %v5572, 7
    %v5574 = vsub.s32 %v5571, %v5573
    %v5575 = vrot.slane %v5567, %v5574
    %v5577 = vunpack.c.l.s4 1934713408
    %v5578 = vunpack.c.0.s8 %v5577
    %v5579 = vlaneseq
    %v5580 = vshrl.u32 %v5579, 7
    %v5581 = vsub.s32 %v5578, %v5580
    %v5582 = vrot.slane %v5568, %v5581
    %v5583 = vcombine.low %v5550, %v5566
    %v5584 = vcombine.high %v5550, %v5566
    %v5586 = vunpack.c.l.s4 1934713408
    %v5587 = vunpack.c.0.s8 %v5586
    %v5588 = vlaneseq
    %v5589 = vshrl.u32 %v5588, 7
    %v5590 = vsub.s32 %v5587, %v5589
    %v5591 = vrot.slane %v5583, %v5590
    %v5593 = vunpack.c.l.s4 1934713408
    %v5594 = vunpack.c.0.s8 %v5593
    %v5595 = vlaneseq
    %v5596 = vshrl.u32 %v5595, 7
    %v5597 = vsub.s32 %v5594, %v5596
    %v5598 = vrot.slane %v5584, %v5597
    %v5599 = vcombine.high %v5575, 0.0
    %v5600 = vcombine.high %v5582, 0.0
    %v5601 = vcombine.high %v5591, 0.0
    %v5602 = vcombine.high %v5598, 0.0
    %v5603 = vcombine.low %v5507, %v5514
    %v5605 = vunpack.c.l.s4 1983009808
    %v5606 = vunpack.c.0.s8 %v5605
    %v5607 = vlaneseq
    %v5608 = vshrl.u32 %v5607, 7
    %v5609 = vsub.s32 %v5606, %v5608
    %v5610 = vrot.slane %v5603, %v5609
    %v5611 = vcombine.low %v5531, %v5532
    %v5613 = vunpack.c.l.s4 1983009808
    %v5614 = vunpack.c.0.s8 %v5613
    %v5615 = vlaneseq
    %v5616 = vshrl.u32 %v5615, 7
    %v5617 = vsub.s32 %v5614, %v5616
    %v5618 = vrot.slane %v5611, %v5617
    %v5619 = vcombine.low %v5523, %v5530
    %v5621 = vunpack.c.l.s4 1983009808
    %v5622 = vunpack.c.0.s8 %v5621
    %v5623 = vlaneseq
    %v5624 = vshrl.u32 %v5623, 7
    %v5625 = vsub.s32 %v5622, %v5624
    %v5626 = vrot.slane %v5619, %v5625
    %v5627 = vcombine.low %v5533, %v5534
    %v5629 = vunpack.c.l.s4 1983009808
    %v5630 = vunpack.c.0.s8 %v5629
    %v5631 = vlaneseq
    %v5632 = vshrl.u32 %v5631, 7
    %v5633 = vsub.s32 %v5630, %v5632
    %v5634 = vrot.slane %v5627, %v5633
    %v5635 = vcombine.low %v5610, %v5618
    %v5636 = vcombine.high %v5610, %v5618
    %v5638 = vunpack.c.l.s4 1934713408
    %v5639 = vunpack.c.0.s8 %v5638
    %v5640 = vlaneseq
    %v5641 = vshrl.u32 %v5640, 7
    %v5642 = vsub.s32 %v5639, %v5641
    %v5643 = vrot.slane %v5635, %v5642
    %v5645 = vunpack.c.l.s4 1934713408
    %v5646 = vunpack.c.0.s8 %v5645
    %v5647 = vlaneseq
    %v5648 = vshrl.u32 %v5647, 7
    %v5649 = vsub.s32 %v5646, %v5648
    %v5650 = vrot.slane %v5636, %v5649
    %v5651 = vcombine.low %v5626, %v5634
    %v5652 = vcombine.high %v5626, %v5634
    %v5654 = vunpack.c.l.s4 1934713408
    %v5655 = vunpack.c.0.s8 %v5654
    %v5656 = vlaneseq
    %v5657 = vshrl.u32 %v5656, 7
    %v5658 = vsub.s32 %v5655, %v5657
    %v5659 = vrot.slane %v5651, %v5658
    %v5661 = vunpack.c.l.s4 1934713408
    %v5662 = vunpack.c.0.s8 %v5661
    %v5663 = vlaneseq
    %v5664 = vshrl.u32 %v5663, 7
    %v5665 = vsub.s32 %v5662, %v5664
    %v5666 = vrot.slane %v5652, %v5665
    %v5667 = vcombine.low %v5643, %v5659
    %v5668 = vcombine.high %v5643, %v5659
    %v5669 = vcombine.low %v5650, %v5666
    %v5670 = vcombine.high %v5650, %v5666
    %v5671 = vcombine.low %v5575, %v5582
    %v5673 = vunpack.c.l.s4 1983009808
    %v5674 = vunpack.c.0.s8 %v5673
    %v5675 = vlaneseq
    %v5676 = vshrl.u32 %v5675, 7
    %v5677 = vsub.s32 %v5674, %v5676
    %v5678 = vrot.slane %v5671, %v5677
    %v5679 = vcombine.low %v5599, %v5600
    %v5681 = vunpack.c.l.s4 1983009808
    %v5682 = vunpack.c.0.s8 %v5681
    %v5683 = vlaneseq
    %v5684 = vshrl.u32 %v5683, 7
    %v5685 = vsub.s32 %v5682, %v5684
    %v5686 = vrot.slane %v5679, %v5685
    %v5687 = vcombine.low %v5591, %v5598
    %v5689 = vunpack.c.l.s4 1983009808
    %v5690 = vunpack.c.0.s8 %v5689
    %v5691 = vlaneseq
    %v5692 = vshrl.u32 %v5691, 7
    %v5693 = vsub.s32 %v5690, %v5692
    %v5694 = vrot.slane %v5687, %v5693
    %v5695 = vcombine.low %v5601, %v5602
    %v5697 = vunpack.c.l.s4 1983009808
    %v5698 = vunpack.c.0.s8 %v5697
    %v5699 = vlaneseq
    %v5700 = vshrl.u32 %v5699, 7
    %v5701 = vsub.s32 %v5698, %v5700
    %v5702 = vrot.slane %v5695, %v5701
    %v5703 = vcombine.low %v5678, %v5686
    %v5704 = vcombine.high %v5678, %v5686
    %v5706 = vunpack.c.l.s4 1934713408
    %v5707 = vunpack.c.0.s8 %v5706
    %v5708 = vlaneseq
    %v5709 = vshrl.u32 %v5708, 7
    %v5710 = vsub.s32 %v5707, %v5709
    %v5711 = vrot.slane %v5703, %v5710
    %v5713 = vunpack.c.l.s4 1934713408
    %v5714 = vunpack.c.0.s8 %v5713
    %v5715 = vlaneseq
    %v5716 = vshrl.u32 %v5715, 7
    %v5717 = vsub.s32 %v5714, %v5716
    %v5718 = vrot.slane %v5704, %v5717
    %v5719 = vcombine.low %v5694, %v5702
    %v5720 = vcombine.high %v5694, %v5702
    %v5722 = vunpack.c.l.s4 1934713408
    %v5723 = vunpack.c.0.s8 %v5722
    %v5724 = vlaneseq
    %v5725 = vshrl.u32 %v5724, 7
    %v5726 = vsub.s32 %v5723, %v5725
    %v5727 = vrot.slane %v5719, %v5726
    %v5729 = vunpack.c.l.s4 1934713408
    %v5730 = vunpack.c.0.s8 %v5729
    %v5731 = vlaneseq
    %v5732 = vshrl.u32 %v5731, 7
    %v5733 = vsub.s32 %v5730, %v5732
    %v5734 = vrot.slane %v5720, %v5733
    %v5735 = vcombine.low %v5711, %v5727
    %v5736 = vcombine.high %v5711, %v5727
    %v5737 = vcombine.low %v5718, %v5734
    %v5738 = vcombine.high %v5718, %v5734
    %5741 = vrot.lane.b32.xlu0 %v5668, 8
    %v5742 = vpop.permute.xlu0 %5741
    %5743 = vrot.lane.b32.xlu0 %v5736, 8
    %v5744 = vpop.permute.xlu0 %5743
    %5749 = vrot.lane.b32.xlu0 %v5669, 16
    %v5750 = vpop.permute.xlu0 %5749
    %5751 = vrot.lane.b32.xlu0 %v5737, 16
    %v5752 = vpop.permute.xlu0 %5751
    %5757 = vrot.lane.b32.xlu0 %v5670, 24
    %v5758 = vpop.permute.xlu0 %5757
    %5759 = vrot.lane.b32.xlu0 %v5738, 24
    %v5760 = vpop.permute.xlu0 %5759
    %v5763 = vsel %vm1220, %v5667, %v5742
    %v5764 = vsel %vm1220, %v5735, %v5744
    %v5765 = vsel %vm2799, %v5763, %v5750
    %v5766 = vsel %vm2799, %v5764, %v5752
    %v5767 = vsel %vm2802, %v5765, %v5758
    %v5768 = vsel %vm2802, %v5766, %v5760
    %5773 = vrot.lane.b32.xlu0 %v3185, 32
    %v5774 = vpop.permute.xlu0 %5773
    %5775 = vrot.lane.b32.xlu0 %v3186, 32
    %v5776 = vpop.permute.xlu0 %5775
    %5777 = vrot.lane.b32.xlu0 %v3187, 32
    %v5778 = vpop.permute.xlu0 %5777
    %5779 = vrot.lane.b32.xlu0 %v3188, 32
    %v5780 = vpop.permute.xlu0 %5779
    %5785 = vrot.lane.b32.xlu0 %v3220, 32
    %v5786 = vpop.permute.xlu0 %5785
    %v5789 = vsel %vm143, %v5767, 0
    %v5792 = vsel %vm143, %v5768, 0
    %5794 = vmatprep.subr.mxu0 0.0
    %5795 = vmatpush1.msra.mxu0 %v5774
    %5796 = vmatprep.subr.mxu0 0.0
    %5797 = vmatpush1.msra.mxu0 %v5776
    %5798 = vmatprep.subr.mxu0 0.0
    %5799 = vmatpush1.msra.mxu0 %v5778
    %5800 = vmatprep.subr.mxu0 0.0
    %5801 = vmatpush1.msra.mxu0 %v5780
    %5802 = vmatprep.subr.mxu0 0.0
    %5803 = vmatpush1.msra.mxu0 0.0
    %5804 = vmatprep.subr.mxu0 0.0
    %5805 = vmatpush1.msra.mxu0 0.0
    %5806 = vmatprep.subr.mxu0 0.0
    %5807 = vmatpush1.msra.mxu0 0.0
    %5808 = vmatprep.subr.mxu0 0.0
    %5809 = vmatpush1.msra.mxu0 0.0
    %5810 = vmatprep.subr.mxu0 0.0
    %5811 = vmatpush1.msra.mxu0 0.0
    %5812 = vmatprep.subr.mxu0 0.0
    %5813 = vmatpush1.msra.mxu0 0.0
    %5814 = vmatprep.subr.mxu0 0.0
    %5815 = vmatpush1.msra.mxu0 0.0
    %5816 = vmatprep.subr.mxu0 0.0
    %5817 = vmatpush1.msra.mxu0 0.0
    %5818 = vmatprep.subr.mxu0 0.0
    %5819 = vmatpush1.msra.mxu0 0.0
    %5820 = vmatprep.subr.mxu0 0.0
    %5821 = vmatpush1.msra.mxu0 0.0
    %5822 = vmatprep.subr.mxu0 0.0
    %5823 = vmatpush1.msra.mxu0 0.0
    %5824 = vmatprep.subr.mxu0 0.0
    %5825 = vmatpush1.msra.mxu0 0.0
    %5826 = vmatprep.subr.mxu0 0.0
    %5827 = vmatpush1.msra.mxu0 0.0
    %5828 = vmatprep.subr.mxu0 0.0
    %5829 = vmatpush1.msra.mxu0 0.0
    %5830 = vmatprep.subr.mxu0 0.0
    %5831 = vmatpush1.msra.mxu0 0.0
    %5832 = vmatprep.subr.mxu0 0.0
    %5833 = vmatpush1.msra.mxu0 0.0
    %5834 = vmatprep.subr.mxu0 0.0
    %5835 = vmatpush1.msra.mxu0 0.0
    %5836 = vmatprep.subr.mxu0 0.0
    %5837 = vmatpush1.msra.mxu0 0.0
    %5838 = vmatprep.subr.mxu0 0.0
    %5839 = vmatpush1.msra.mxu0 0.0
    %5840 = vmatprep.subr.mxu0 0.0
    %5841 = vmatpush1.msra.mxu0 0.0
    %5842 = vmatprep.subr.mxu0 0.0
    %5843 = vmatpush1.msra.mxu0 0.0
    %5844 = vmatprep.subr.mxu0 0.0
    %5845 = vmatpush1.msra.mxu0 0.0
    %5846 = vmatprep.subr.mxu0 0.0
    %5847 = vmatpush1.msra.mxu0 0.0
    %5848 = vmatprep.subr.mxu0 0.0
    %5849 = vmatpush1.msra.mxu0 0.0
    %5850 = vmatprep.subr.mxu0 0.0
    %5851 = vmatpush1.msra.mxu0 0.0
    %5852 = vmatprep.subr.mxu0 0.0
    %5853 = vmatpush1.msra.mxu0 0.0
    %5854 = vmatprep.subr.mxu0 0.0
    %5855 = vmatpush1.msra.mxu0 0.0
    %5856 = vmatprep.subr.mxu0 0.0
    %5857 = vmatpush1.msra.mxu0 0.0
    %5858 = vmatprep.mubr.f32.mxu0 0.0
    %5859 = vmatmul.mubr.f32.gmra.mrb[0].mxu0 %v5789
    %v5860 = vpop.f32.mrb[0].mxu0
    %v5861 = vadd.f32 %v5786, %v5860
    %v5862 = vpop.f32.mrb[0].mxu0
    %5863 = vmatprep.mubr.f32.mxu0 0.0
    %5864 = vmatmul.mubr.f32.gmra.mrb[0].mxu0 %v5792
    %v5865 = vpop.f32.mrb[0].mxu0
    %v5866 = vadd.f32 %v5786, %v5865
    %v5867 = vpop.f32.mrb[0].mxu0
    %5868 = vdwg.mxu0
    %v5869 = vadd.f32 %v3182, %v5861
    %v5870 = vadd.f32 %v3183, %v5866
    %v5871 = vsel %vm143, %v5869, 0.0
    %5872 = vadd.xlane.f32.xlu0 %v5871
    %v5873 = vpop.xlane.xlu0 %5872
    %v5874 = vsel %vm143, %v5870, 0.0
    %5875 = vadd.xlane.f32.xlu0 %v5874
    %v5876 = vpop.xlane.xlu0 %5875
    %v5877 = vmul.f32 %v5873, %v150
    %v5878 = vmul.f32 %v5876, %v150
    %v5879 = vsub.f32 %v5869, %v5877
    %v5880 = vsub.f32 %v5870, %v5878
    %v5881 = vmul.f32 %v5879, %v5879
    %v5882 = vmul.f32 %v5880, %v5880
    %v5883 = vsel %vm143, %v5881, 0.0
    %5884 = vadd.xlane.f32.xlu0 %v5883
    %v5885 = vpop.xlane.xlu0 %5884
    %v5886 = vsel %vm143, %v5882, 0.0
    %5887 = vadd.xlane.f32.xlu0 %v5886
    %v5888 = vpop.xlane.xlu0 %5887
    %v5889 = vmul.f32 %v5885, %v150
    %v5890 = vmul.f32 %v5888, %v150
    %v5891 = vadd.f32 %v5889, 1e-12
    %v5892 = vadd.f32 %v5890, 1e-12
    %v5893 = vrsqrt.pop %v5891
    %v5894 = vrsqrt.pop %v5892
    %v5895 = vmul.f32 %v5879, %v5893
    %v5896 = vmul.f32 %v5880, %v5894
    %v5898 = vlaneseq
    %v5899 = vshrl.u32 %v5898, 7
    %v5900 = vsub.s32 0, %v5899
    %v5901 = vrot.slane %v3212, %v5900
    %v5903 = vmul.f32 %v5895, %v5901
    %v5904 = vmul.f32 %v5896, %v5901
    %5905 = vrot.lane.b32.xlu0 %v5901, 96
    %v5906 = vpop.permute.xlu0 %5905
    %v5908 = vadd.f32 %v5903, %v5906
    %v5909 = vadd.f32 %v5904, %v5906
    %v5911 = vlaneseq
    %v5912 = vshrl.u32 %v5911, 7
    %v5913 = vsub.s32 0, %v5912
    %v5914 = vrot.slane %v3213, %v5913
    %v5915 = vlaneseq
    %v5916 = vshrl.u32 %v5915, 7
    %v5917 = vsub.s32 1, %v5916
    %v5918 = vrot.slane %v3213, %v5917
    %5919 = vrot.lane.b32.xlu0 %v5914, 64
    %v5920 = vpop.permute.xlu0 %5919
    %5921 = vrot.lane.b32.xlu0 %v5918, 64
    %v5922 = vpop.permute.xlu0 %5921
    %v5923 = vsel %vm55, %v5920, %v5922
    %v5926 = vsel %vm143, %v5908, 0
    %v5929 = vsel %vm143, %v5909, 0
    %5931 = vmatprep.subr.mxu0 0.0
    %5932 = vmatpush1.msra.mxu0 %v3189
    %5933 = vmatprep.subr.mxu0 0.0
    %5934 = vmatpush1.msra.mxu0 %v3190
    %5935 = vmatprep.subr.mxu0 0.0
    %5936 = vmatpush1.msra.mxu0 %v3191
    %5937 = vmatprep.subr.mxu0 0.0
    %5938 = vmatpush1.msra.mxu0 %v3192
    %5939 = vmatprep.subr.mxu0 0.0
    %5940 = vmatpush1.msra.mxu0 0.0
    %5941 = vmatprep.subr.mxu0 0.0
    %5942 = vmatpush1.msra.mxu0 0.0
    %5943 = vmatprep.subr.mxu0 0.0
    %5944 = vmatpush1.msra.mxu0 0.0
    %5945 = vmatprep.subr.mxu0 0.0
    %5946 = vmatpush1.msra.mxu0 0.0
    %5947 = vmatprep.subr.mxu0 0.0
    %5948 = vmatpush1.msra.mxu0 0.0
    %5949 = vmatprep.subr.mxu0 0.0
    %5950 = vmatpush1.msra.mxu0 0.0
    %5951 = vmatprep.subr.mxu0 0.0
    %5952 = vmatpush1.msra.mxu0 0.0
    %5953 = vmatprep.subr.mxu0 0.0
    %5954 = vmatpush1.msra.mxu0 0.0
    %5955 = vmatprep.subr.mxu0 0.0
    %5956 = vmatpush1.msra.mxu0 0.0
    %5957 = vmatprep.subr.mxu0 0.0
    %5958 = vmatpush1.msra.mxu0 0.0
    %5959 = vmatprep.subr.mxu0 0.0
    %5960 = vmatpush1.msra.mxu0 0.0
    %5961 = vmatprep.subr.mxu0 0.0
    %5962 = vmatpush1.msra.mxu0 0.0
    %5963 = vmatprep.subr.mxu0 0.0
    %5964 = vmatpush1.msra.mxu0 0.0
    %5965 = vmatprep.subr.mxu0 0.0
    %5966 = vmatpush1.msra.mxu0 0.0
    %5967 = vmatprep.subr.mxu0 0.0
    %5968 = vmatpush1.msra.mxu0 0.0
    %5969 = vmatprep.subr.mxu0 0.0
    %5970 = vmatpush1.msra.mxu0 0.0
    %5971 = vmatprep.subr.mxu0 0.0
    %5972 = vmatpush1.msra.mxu0 0.0
    %5973 = vmatprep.subr.mxu0 0.0
    %5974 = vmatpush1.msra.mxu0 0.0
    %5975 = vmatprep.subr.mxu0 0.0
    %5976 = vmatpush1.msra.mxu0 0.0
    %5977 = vmatprep.subr.mxu0 0.0
    %5978 = vmatpush1.msra.mxu0 0.0
    %5979 = vmatprep.subr.mxu0 0.0
    %5980 = vmatpush1.msra.mxu0 0.0
    %5981 = vmatprep.subr.mxu0 0.0
    %5982 = vmatpush1.msra.mxu0 0.0
    %5983 = vmatprep.subr.mxu0 0.0
    %5984 = vmatpush1.msra.mxu0 0.0
    %5985 = vmatprep.subr.mxu0 0.0
    %5986 = vmatpush1.msra.mxu0 0.0
    %5987 = vmatprep.subr.mxu0 0.0
    %5988 = vmatpush1.msra.mxu0 0.0
    %5989 = vmatprep.subr.mxu0 0.0
    %5990 = vmatpush1.msra.mxu0 0.0
    %5991 = vmatprep.subr.mxu0 0.0
    %5992 = vmatpush1.msra.mxu0 0.0
    %5993 = vmatprep.subr.mxu0 0.0
    %5994 = vmatpush1.msra.mxu0 0.0
    %5995 = vmatprep.mubr.f32.mxu0 0.0
    %5996 = vmatmul.mubr.f32.gmra.mrb[0].mxu0 %v5926
    %v5997 = vpop.f32.mrb[0].mxu0
    %v5998 = vadd.f32 %v5923, %v5997
    %v5999 = vpop.f32.mrb[0].mxu0
    %6000 = vmatprep.mubr.f32.mxu0 0.0
    %6001 = vmatmul.mubr.f32.gmra.mrb[0].mxu0 %v5929
    %v6002 = vpop.f32.mrb[0].mxu0
    %v6003 = vadd.f32 %v5923, %v6002
    %v6004 = vpop.f32.mrb[0].mxu0
    %6005 = vdwg.mxu0
    %v6006 = vmul.f32 %v5998, 0.5
    %v6007 = vmul.f32 %v6003, 0.5
    %v6008 = vmul.f32 %v5998, 0.044715
    %v6009 = vmul.f32 %v6003, 0.044715
    %v6010 = vmul.f32 %v6008, %v5998
    %v6011 = vmul.f32 %v6009, %v6003
    %v6012 = vmul.f32 %v6010, %v5998
    %v6013 = vmul.f32 %v6011, %v6003
    %v6014 = vadd.f32 %v5998, %v6012
    %v6015 = vadd.f32 %v6003, %v6013
    %v6016 = vmul.f32 %v6014, 0.7978846
    %v6017 = vmul.f32 %v6015, 0.7978846
    %v6018 = vtanh.pop %v6016
    %v6019 = vtanh.pop %v6017
    %v6020 = vadd.f32 %v6018, 1.0
    %v6021 = vadd.f32 %v6019, 1.0
    %v6022 = vmul.f32 %v6006, %v6020
    %v6023 = vmul.f32 %v6007, %v6021
    %v6025 = vlaneseq
    %v6026 = vshrl.u32 %v6025, 7
    %v6027 = vsub.s32 0, %v6026
    %v6028 = vrot.slane %v3214, %v6027
    %6029 = vrot.lane.b32.xlu0 %v6028, 64
    %v6030 = vpop.permute.xlu0 %6029
    %6032 = vmatprep.subr.mxu0 0.0
    %6033 = vmatpush1.msra.mxu0 %v3194
    %6034 = vmatprep.subr.mxu0 0.0
    %6035 = vmatpush1.msra.mxu0 %v3195
    %6036 = vmatprep.subr.mxu0 0.0
    %6037 = vmatpush1.msra.mxu0 %v3196
    %6038 = vmatprep.subr.mxu0 0.0
    %6039 = vmatpush1.msra.mxu0 %v3197
    %6040 = vmatprep.subr.mxu0 0.0
    %6041 = vmatpush1.msra.mxu0 %v3198
    %6042 = vmatprep.subr.mxu0 0.0
    %6043 = vmatpush1.msra.mxu0 %v3199
    %6044 = vmatprep.subr.mxu0 0.0
    %6045 = vmatpush1.msra.mxu0 %v3200
    %6046 = vmatprep.subr.mxu0 0.0
    %6047 = vmatpush1.msra.mxu0 %v3201
    %6048 = vmatprep.subr.mxu0 0.0
    %6049 = vmatpush1.msra.mxu0 %v3202
    %6050 = vmatprep.subr.mxu0 0.0
    %6051 = vmatpush1.msra.mxu0 %v3203
    %6052 = vmatprep.subr.mxu0 0.0
    %6053 = vmatpush1.msra.mxu0 %v3204
    %6054 = vmatprep.subr.mxu0 0.0
    %6055 = vmatpush1.msra.mxu0 %v3205
    %6056 = vmatprep.subr.mxu0 0.0
    %6057 = vmatpush1.msra.mxu0 %v3206
    %6058 = vmatprep.subr.mxu0 0.0
    %6059 = vmatpush1.msra.mxu0 %v3207
    %6060 = vmatprep.subr.mxu0 0.0
    %6061 = vmatpush1.msra.mxu0 %v3208
    %6062 = vmatprep.subr.mxu0 0.0
    %6063 = vmatpush1.msra.mxu0 %v3209
    %6064 = vmatprep.subr.mxu0 0.0
    %6065 = vmatpush1.msra.mxu0 0.0
    %6066 = vmatprep.subr.mxu0 0.0
    %6067 = vmatpush1.msra.mxu0 0.0
    %6068 = vmatprep.subr.mxu0 0.0
    %6069 = vmatpush1.msra.mxu0 0.0
    %6070 = vmatprep.subr.mxu0 0.0
    %6071 = vmatpush1.msra.mxu0 0.0
    %6072 = vmatprep.subr.mxu0 0.0
    %6073 = vmatpush1.msra.mxu0 0.0
    %6074 = vmatprep.subr.mxu0 0.0
    %6075 = vmatpush1.msra.mxu0 0.0
    %6076 = vmatprep.subr.mxu0 0.0
    %6077 = vmatpush1.msra.mxu0 0.0
    %6078 = vmatprep.subr.mxu0 0.0
    %6079 = vmatpush1.msra.mxu0 0.0
    %6080 = vmatprep.subr.mxu0 0.0
    %6081 = vmatpush1.msra.mxu0 0.0
    %6082 = vmatprep.subr.mxu0 0.0
    %6083 = vmatpush1.msra.mxu0 0.0
    %6084 = vmatprep.subr.mxu0 0.0
    %6085 = vmatpush1.msra.mxu0 0.0
    %6086 = vmatprep.subr.mxu0 0.0
    %6087 = vmatpush1.msra.mxu0 0.0
    %6088 = vmatprep.subr.mxu0 0.0
    %6089 = vmatpush1.msra.mxu0 0.0
    %6090 = vmatprep.subr.mxu0 0.0
    %6091 = vmatpush1.msra.mxu0 0.0
    %6092 = vmatprep.subr.mxu0 0.0
    %6093 = vmatpush1.msra.mxu0 0.0
    %6094 = vmatprep.subr.mxu0 0.0
    %6095 = vmatpush1.msra.mxu0 0.0
    %6096 = vmatprep.mubr.f32.mxu0 0.0
    %6097 = vmatmul.mubr.f32.gmra.mrb[0].mxu0 %v6022
    %v6098 = vpop.f32.mrb[0].mxu0
    %v6099 = vadd.f32 %v6030, %v6098
    %v6100 = vpop.f32.mrb[0].mxu0
    %6101 = vmatprep.mubr.f32.mxu0 0.0
    %6102 = vmatmul.mubr.f32.gmra.mrb[0].mxu0 %v6023
    %v6103 = vpop.f32.mrb[0].mxu0
    %v6104 = vadd.f32 %v6030, %v6103
    %v6105 = vpop.f32.mrb[0].mxu0
    %6106 = vdwg.mxu0
    %v6107 = vadd.f32 %v5908, %v6099
    %v6108 = vadd.f32 %v5909, %v6104
    %v6109 = vsel %vm143, %v6107, 0.0
    %6110 = vadd.xlane.f32.xlu0 %v6109
    %v6111 = vpop.xlane.xlu0 %6110
    %v6112 = vsel %vm143, %v6108, 0.0
    %6113 = vadd.xlane.f32.xlu0 %v6112
    %v6114 = vpop.xlane.xlu0 %6113
    %v6115 = vmul.f32 %v6111, %v150
    %v6116 = vmul.f32 %v6114, %v150
    %v6117 = vsub.f32 %v6107, %v6115
    %v6118 = vsub.f32 %v6108, %v6116
    %v6119 = vmul.f32 %v6117, %v6117
    %v6120 = vmul.f32 %v6118, %v6118
    %v6121 = vsel %vm143, %v6119, 0.0
    %6122 = vadd.xlane.f32.xlu0 %v6121
    %v6123 = vpop.xlane.xlu0 %6122
    %v6124 = vsel %vm143, %v6120, 0.0
    %6125 = vadd.xlane.f32.xlu0 %v6124
    %v6126 = vpop.xlane.xlu0 %6125
    %v6127 = vmul.f32 %v6123, %v150
    %v6128 = vmul.f32 %v6126, %v150
    %v6129 = vadd.f32 %v6127, 1e-12
    %v6130 = vadd.f32 %v6128, 1e-12
    %v6131 = vrsqrt.pop %v6129
    %v6132 = vrsqrt.pop %v6130
    %v6133 = vmul.f32 %v6117, %v6131
    %v6134 = vmul.f32 %v6118, %v6132
    %6135 = vrot.lane.b32.xlu0 %v6028, 32
    %v6136 = vpop.permute.xlu0 %6135
    %v6138 = vmul.f32 %v6133, %v6136
    %v6139 = vmul.f32 %v6134, %v6136
    %v6141 = vlaneseq
    %v6142 = vshrl.u32 %v6141, 7
    %v6143 = vsub.s32 0, %v6142
    %v6144 = vrot.slane %v3215, %v6143
    %v6146 = vadd.f32 %v6138, %v6144
    %v6147 = vadd.f32 %v6139, %v6144
    %v6148 = vld [vmem:[%s5 + $0x48] sm:$0xff]
    %v6149 = vld [vmem:[%s5 + $0x50] sm:$0xff]
    %v6150 = vld [vmem:[%s5 + $0x58] sm:$0xff]
    %v6151 = vld [vmem:[%s5 + $0x60] sm:$0xff]
    %v6152 = vld [vmem:[%s5 + $0x6b] sm:$0x1]
    %v6153 = vld [vmem:[%s6] sm:$0xff]
    %v6154 = vld [vmem:[%s6 + $0x8] sm:$0xff]
    %v6155 = vld [vmem:[%s6 + $0x10] sm:$0xff]
    %v6156 = vld [vmem:[%s6 + $0x18] sm:$0xff]
    %v6157 = vld [vmem:[%s6 + $0x20] sm:$0x1]
    %v6158 = vlaneseq
    %v6159 = vshrl.u32 %v6158, 7
    %v6160 = vsub.s32 0, %v6159
    %v6161 = vrot.slane %v6152, %v6160
    %v6164 = vrot.slane %v6147, 7
    %vm6165 = vcmask 1041409
    %v6166 = vsel %vm6165, %v6164, %v6146
    %v6167 = vsel %vm143, %v6166, 0
    %6169 = vmatprep.subr.mxu0 0.0
    %6170 = vmatpush1.msra.mxu0 %v6148
    %6171 = vmatprep.subr.mxu0 0.0
    %6172 = vmatpush1.msra.mxu0 %v6149
    %6173 = vmatprep.subr.mxu0 0.0
    %6174 = vmatpush1.msra.mxu0 %v6150
    %6175 = vmatprep.subr.mxu0 0.0
    %6176 = vmatpush1.msra.mxu0 %v6151
    %6177 = vmatprep.subr.mxu0 0.0
    %6178 = vmatpush1.msra.mxu0 0.0
    %6179 = vmatprep.subr.mxu0 0.0
    %6180 = vmatpush1.msra.mxu0 0.0
    %6181 = vmatprep.subr.mxu0 0.0
    %6182 = vmatpush1.msra.mxu0 0.0
    %6183 = vmatprep.subr.mxu0 0.0
    %6184 = vmatpush1.msra.mxu0 0.0
    %6185 = vmatprep.subr.mxu0 0.0
    %6186 = vmatpush1.msra.mxu0 0.0
    %6187 = vmatprep.subr.mxu0 0.0
    %6188 = vmatpush1.msra.mxu0 0.0
    %6189 = vmatprep.subr.mxu0 0.0
    %6190 = vmatpush1.msra.mxu0 0.0
    %6191 = vmatprep.subr.mxu0 0.0
    %6192 = vmatpush1.msra.mxu0 0.0
    %6193 = vmatprep.subr.mxu0 0.0
    %6194 = vmatpush1.msra.mxu0 0.0
    %6195 = vmatprep.subr.mxu0 0.0
    %6196 = vmatpush1.msra.mxu0 0.0
    %6197 = vmatprep.subr.mxu0 0.0
    %6198 = vmatpush1.msra.mxu0 0.0
    %6199 = vmatprep.subr.mxu0 0.0
    %6200 = vmatpush1.msra.mxu0 0.0
    %6201 = vmatprep.subr.mxu0 0.0
    %6202 = vmatpush1.msra.mxu0 0.0
    %6203 = vmatprep.subr.mxu0 0.0
    %6204 = vmatpush1.msra.mxu0 0.0
    %6205 = vmatprep.subr.mxu0 0.0
    %6206 = vmatpush1.msra.mxu0 0.0
    %6207 = vmatprep.subr.mxu0 0.0
    %6208 = vmatpush1.msra.mxu0 0.0
    %6209 = vmatprep.subr.mxu0 0.0
    %6210 = vmatpush1.msra.mxu0 0.0
    %6211 = vmatprep.subr.mxu0 0.0
    %6212 = vmatpush1.msra.mxu0 0.0
    %6213 = vmatprep.subr.mxu0 0.0
    %6214 = vmatpush1.msra.mxu0 0.0
    %6215 = vmatprep.subr.mxu0 0.0
    %6216 = vmatpush1.msra.mxu0 0.0
    %6217 = vmatprep.subr.mxu0 0.0
    %6218 = vmatpush1.msra.mxu0 0.0
    %6219 = vmatprep.subr.mxu0 0.0
    %6220 = vmatpush1.msra.mxu0 0.0
    %6221 = vmatprep.subr.mxu0 0.0
    %6222 = vmatpush1.msra.mxu0 0.0
    %6223 = vmatprep.subr.mxu0 0.0
    %6224 = vmatpush1.msra.mxu0 0.0
    %6225 = vmatprep.subr.mxu0 0.0
    %6226 = vmatpush1.msra.mxu0 0.0
    %6227 = vmatprep.subr.mxu0 0.0
    %6228 = vmatpush1.msra.mxu0 0.0
    %6229 = vmatprep.subr.mxu0 0.0
    %6230 = vmatpush1.msra.mxu0 0.0
    %6231 = vmatprep.subr.mxu0 0.0
    %6232 = vmatpush1.msra.mxu0 0.0
    %6233 = vmatprep.mubr.f32.mxu0 0.0
    %6234 = vmatmul.mubr.f32.gmra.mrb[0].mxu0 %v6167
    %v6235 = vpop.f32.mrb[0].mxu0
    %v6236 = vadd.f32 %v6161, %v6235
    %v6237 = vpop.f32.mrb[0].mxu0
    %6238 = vdwg.mxu0
    %v6239 = vtanh.pop %v6236
    %v6240 = vlaneseq
    %v6241 = vshrl.u32 %v6240, 7
    %v6242 = vsub.s32 0, %v6241
    %v6243 = vrot.slane %v6157, %v6242
    %v6245 = vsel %vm143, %v6239, 0
    %6247 = vmatprep.subr.mxu0 0.0
    %6248 = vmatpush1.msra.mxu0 %v6153
    %6249 = vmatprep.subr.mxu0 0.0
    %6250 = vmatpush1.msra.mxu0 %v6154
    %6251 = vmatprep.subr.mxu0 0.0
    %6252 = vmatpush1.msra.mxu0 %v6155
    %6253 = vmatprep.subr.mxu0 0.0
    %6254 = vmatpush1.msra.mxu0 %v6156
    %6255 = vmatprep.subr.mxu0 0.0
    %6256 = vmatpush1.msra.mxu0 0.0
    %6257 = vmatprep.subr.mxu0 0.0
    %6258 = vmatpush1.msra.mxu0 0.0
    %6259 = vmatprep.subr.mxu0 0.0
    %6260 = vmatpush1.msra.mxu0 0.0
    %6261 = vmatprep.subr.mxu0 0.0
    %6262 = vmatpush1.msra.mxu0 0.0
    %6263 = vmatprep.subr.mxu0 0.0
    %6264 = vmatpush1.msra.mxu0 0.0
    %6265 = vmatprep.subr.mxu0 0.0
    %6266 = vmatpush1.msra.mxu0 0.0
    %6267 = vmatprep.subr.mxu0 0.0
    %6268 = vmatpush1.msra.mxu0 0.0
    %6269 = vmatprep.subr.mxu0 0.0
    %6270 = vmatpush1.msra.mxu0 0.0
    %6271 = vmatprep.subr.mxu0 0.0
    %6272 = vmatpush1.msra.mxu0 0.0
    %6273 = vmatprep.subr.mxu0 0.0
    %6274 = vmatpush1.msra.mxu0 0.0
    %6275 = vmatprep.subr.mxu0 0.0
    %6276 = vmatpush1.msra.mxu0 0.0
    %6277 = vmatprep.subr.mxu0 0.0
    %6278 = vmatpush1.msra.mxu0 0.0
    %6279 = vmatprep.subr.mxu0 0.0
    %6280 = vmatpush1.msra.mxu0 0.0
    %6281 = vmatprep.subr.mxu0 0.0
    %6282 = vmatpush1.msra.mxu0 0.0
    %6283 = vmatprep.subr.mxu0 0.0
    %6284 = vmatpush1.msra.mxu0 0.0
    %6285 = vmatprep.subr.mxu0 0.0
    %6286 = vmatpush1.msra.mxu0 0.0
    %6287 = vmatprep.subr.mxu0 0.0
    %6288 = vmatpush1.msra.mxu0 0.0
    %6289 = vmatprep.subr.mxu0 0.0
    %6290 = vmatpush1.msra.mxu0 0.0
    %6291 = vmatprep.subr.mxu0 0.0
    %6292 = vmatpush1.msra.mxu0 0.0
    %6293 = vmatprep.subr.mxu0 0.0
    %6294 = vmatpush1.msra.mxu0 0.0
    %6295 = vmatprep.subr.mxu0 0.0
    %6296 = vmatpush1.msra.mxu0 0.0
    %6297 = vmatprep.subr.mxu0 0.0
    %6298 = vmatpush1.msra.mxu0 0.0
    %6299 = vmatprep.subr.mxu0 0.0
    %6300 = vmatpush1.msra.mxu0 0.0
    %6301 = vmatprep.subr.mxu0 0.0
    %6302 = vmatpush1.msra.mxu0 0.0
    %6303 = vmatprep.subr.mxu0 0.0
    %6304 = vmatpush1.msra.mxu0 0.0
    %6305 = vmatprep.subr.mxu0 0.0
    %6306 = vmatpush1.msra.mxu0 0.0
    %6307 = vmatprep.subr.mxu0 0.0
    %6308 = vmatpush1.msra.mxu0 0.0
    %6309 = vmatprep.subr.mxu0 0.0
    %6310 = vmatpush1.msra.mxu0 0.0
    %6311 = vmatprep.mubr.f32.mxu0 0.0
    %6312 = vmatmul.mubr.f32.gmra.mrb[0].mxu0 %v6245
    %v6313 = vpop.f32.mrb[0].mxu0
    %v6314 = vadd.f32 %v6243, %v6313
    %v6315 = vpop.f32.mrb[0].mxu0
    %6316 = vdwg.mxu0
    %6317 = vst [vmem:[#allocation2] sm:$0x3] %v6314
    // Predicated region
    $region30: #{offensive_word_classifier_forward.1} parent=1 // pred_check
      _
    $region31: #{offensive_word_classifier_forward.1} parent=1 // pred_check_branch
      %6319 = sbr.rel (0) target = $region33
    $region32: #{offensive_word_classifier_forward.1} parent=1 // pred_region
      %s6321 = ssub.s32 32, 32
      %6322 = vsyncadd [#allocation3], %s6321
      %s6324 = sshll.u32 [#allocation2], 4
      %s6325 = int_to_ptr.vmem [resolvable:$true] %s6324
      %6327 = dma.vmem_to_hbm [thread:$0]  %s6325, 32, %s7, [#allocation3]
    $region33: #{offensive_word_classifier_forward.1} parent=1 // pred_fallthru
      _
    // Predicated region
    $region34: #{offensive_word_classifier_forward.1} parent=1 // pred_check
      _
    $region35: #{offensive_word_classifier_forward.1} parent=1 // pred_check_branch
      %6329 = sbr.rel (0) target = $region37
    $region36: #{offensive_word_classifier_forward.1} parent=1 // pred_region
      %6330 = dma.done [#allocation3], 32
    $region37: #{offensive_word_classifier_forward.1} parent=1 // pred_fallthru
      _
    %6331 = vsyncpa [#allocation3], 1

</llo_original>
